<compile_context>
chip_gen: v7x
topology: tpu7x:2x2x1
jax: 0.10.0
libtpu: 0.0.40
codegen_flags: <defaults>
</compile_context>

<pallas_src>
import functools

import jax
import jax.numpy as jnp
import numpy as np
from jax import lax
from jax.experimental import pallas as pl
from jax.experimental.pallas import tpu as pltpu

# ---------------------------------------------------------------------------
# Model hyper-parameters (small, consistent with the module's __init__)
# ---------------------------------------------------------------------------
NUM_FEATURES = 4
HIDDEN_SIZE = 32
NUM_LAYERS = 2
OUTPUT_SIZE = 1
PROBABILITY = 0.1   # dropout prob; identity in eval mode
BATCH = 2
SEQ = 8

SUBLANE = 8         # f32 sublane group


# ---------------------------------------------------------------------------
# LSTM cell (shared by both kernel paths).  pre_t already holds x_t @ W_ih^T + b.
# ---------------------------------------------------------------------------
def _lstm_cell(pre_t, h, c, whh, hidden_size):
    H = hidden_size
    # Only the recurrent matmul + add sit on the serial path.
    gates = pre_t + jnp.dot(h, whh, preferred_element_type=jnp.float32)   # (Bp, 4H)
    # Full-tile activations (one sigmoid + one tanh EUP push), then slice gates.
    sg = jax.nn.sigmoid(gates)
    tg = jnp.tanh(gates)
    i_g = sg[:, 0 * H:1 * H]
    f_g = sg[:, 1 * H:2 * H]
    g_g = tg[:, 2 * H:3 * H]
    o_g = sg[:, 3 * H:4 * H]
    c_new = f_g * c + i_g * g_g
    h_new = o_g * jnp.tanh(c_new)
    return h_new, c_new


# ---------------------------------------------------------------------------
# Pallas kernel factory
# ---------------------------------------------------------------------------
def _make_lstm_kernel(num_layers: int, hidden_size: int, seq_len: int, batch_pad: int):
    """refs = (x2d, [wihT, whhT, b] * L, w_outT, b_out, out, pre_buf, h_buf)."""
    T, Bp, H = seq_len, batch_pad, hidden_size
    n_in = 1 + 3 * num_layers + 2

    def kernel(*refs):
        x_ref = refs[0]                                   # (T*Bp, F) f32
        layer_refs = refs[1:1 + 3 * num_layers]
        w_out_ref = refs[n_in - 2]                        # (H, O)
        b_out_ref = refs[n_in - 1]                        # (1, O)
        out_ref = refs[n_in]                              # (T*Bp, O)
        pre_buf = refs[n_in + 1]                          # VMEM scratch (T*Bp, 4H)
        h_buf = refs[n_in + 2]                            # VMEM scratch (T*Bp, H)

        wih = [layer_refs[3 * l + 0][...] for l in range(num_layers)]   # (F_in, 4H)
        whh = [layer_refs[3 * l + 1][...] for l in range(num_layers)]   # (H,    4H)
        b = [layer_refs[3 * l + 2][...] for l in range(num_layers)]     # (1,    4H)

        # Hoisted layer-0 input projection + bias for ALL timesteps at once:
        # one (T*Bp, F) x (F, 4H) MXU call.
        pre_buf[...] = jnp.dot(x_ref[...], wih[0],
                               preferred_element_type=jnp.float32) + b[0]

        zeros = jnp.zeros((Bp, H), jnp.float32)

        # TODO(synk): pltpu.matmul_push_rhs / matmul_acc_lhs staging of whh across the
        # time loop (and bf16 matmul operands for v5e) were suggested by the perf review
        # but are left out to keep lowering robust on all generations and preserve the
        # f32 1e-5 accuracy contract.

        if num_layers == 2:
            # --- Wavefront: layer 0 at step w overlaps layer 1 at step w-1. ---
            # Prologue wave 0: layer 0 at t=0.
            h0, c0 = _lstm_cell(pre_buf[pl.ds(0, Bp), :], zeros, zeros, whh[0], H)
            h1, c1 = zeros, zeros

            def wave(w, carry):
                h0, c0, h1, c1 = carry
                # Layer 1 at t = w-1, consuming the carried h0 (layer 0's output at
                # t = w-1) straight from registers; per-step input projection.
                pre1 = jnp.dot(h0, wih[1], preferred_element_type=jnp.float32) + b[1]
                h1n, c1n = _lstm_cell(pre1, h1, c1, whh[1], H)
                off1 = pl.multiple_of((w - 1) * Bp, Bp)
                h_buf[pl.ds(off1, Bp), :] = h1n              # aligned full-sublane store
                # Layer 0 at t = w (independent of the layer-1 work above).
                off0 = pl.multiple_of(w * Bp, Bp)
                h0n, c0n = _lstm_cell(pre_buf[pl.ds(off0, Bp), :], h0, c0, whh[0], H)
                return h0n, c0n, h1n, c1n

            h0, c0, h1, c1 = lax.fori_loop(1, T, wave, (h0, c0, h1, c1), unroll=True)

            # Epilogue wave T: layer 1 at t = T-1.
            pre1 = jnp.dot(h0, wih[1], preferred_element_type=jnp.float32) + b[1]
            h1, c1 = _lstm_cell(pre1, h1, c1, whh[1], H)
            h_buf[(T - 1) * Bp:T * Bp, :] = h1
        else:
            # --- Generic sequential fallback (any num_layers). ---
            for l in range(num_layers):
                def step(t, carry, _l=l):
                    h, c = carry
                    off = pl.multiple_of(t * Bp, Bp)
                    h_new, c_new = _lstm_cell(pre_buf[pl.ds(off, Bp), :], h, c,
                                              whh[_l], H)
                    h_buf[pl.ds(off, Bp), :] = h_new
                    return h_new, c_new

                lax.fori_loop(0, T, step, (zeros, zeros), unroll=True)
                if l + 1 < num_layers:
                    pre_buf[...] = jnp.dot(h_buf[...], wih[l + 1],
                                           preferred_element_type=jnp.float32) + b[l + 1]

        # TODO(synk): nn.Dropout is identity in eval/inference mode; training-mode
        # stochastic dropout (pltpu.prng_*) is intentionally not applied here.

        # Final Linear on every timestep as a single 2-D matmul: (T*Bp, H) @ (H, O).
        y = jnp.dot(h_buf[...], w_out_ref[...],
                    preferred_element_type=jnp.float32) + b_out_ref[...]
        out_ref[...] = y.astype(out_ref.dtype)

    return kernel


# ---------------------------------------------------------------------------
# One-time parameter preparation (transposes + bias folding hoisted out of the
# per-call path, per review).
# ---------------------------------------------------------------------------
def prepare_params(lstm_params, w_out, b_out):
    flat = []
    for (w_ih, w_hh, b_ih, b_hh) in lstm_params:
        flat.append(jnp.asarray(w_ih, jnp.float32).T)                         # (F_in, 4H)
        flat.append(jnp.asarray(w_hh, jnp.float32).T)                         # (H,    4H)
        flat.append((jnp.asarray(b_ih, jnp.float32)
                     + jnp.asarray(b_hh, jnp.float32))[None, :])              # (1,    4H)
    flat.append(jnp.asarray(w_out, jnp.float32).T)                            # (H, O)
    flat.append(jnp.asarray(b_out, jnp.float32)[None, :])                     # (1, O)
    return tuple(flat)


# ---------------------------------------------------------------------------
# Wrapper (batch padding, time-major layout, pallas_call)
# ---------------------------------------------------------------------------
@functools.partial(jax.jit, static_argnames=("num_layers", "hidden_size", "output_size"))
def lstm_model_forward(x, prepared, *, num_layers: int, hidden_size: int,
                       output_size: int):
    """x: (B, T, F) float32, batch_first (PyTorch convention)."""
    B, T, F = x.shape
    Bp = max(SUBLANE, ((B + SUBLANE - 1) // SUBLANE) * SUBLANE)
    # Zero-pad the batch to a full sublane group; padded rows are independent of the
    # real rows (LSTM is row-wise) and are sliced away after the kernel.
    x_p = jnp.pad(x.astype(jnp.float32), ((0, Bp - B), (0, 0), (0, 0)))
    # Time-major, flattened: row t*Bp + b.
    x_2d = jnp.transpose(x_p, (1, 0, 2)).reshape(T * Bp, F)

    inputs = (x_2d,) + tuple(prepared)
    kernel = _make_lstm_kernel(num_layers, hidden_size, T, Bp)
    out_2d = pl.pallas_call(
        kernel,
        out_shape=jax.ShapeDtypeStruct((T * Bp, output_size), jnp.float32),
        in_specs=[pl.BlockSpec(memory_space=pltpu.MemorySpace.VMEM)] * len(inputs),
        out_specs=pl.BlockSpec(memory_space=pltpu.MemorySpace.VMEM),
        scratch_shapes=[
            pltpu.VMEM((T * Bp, 4 * hidden_size), jnp.float32),   # pre_buf
            pltpu.VMEM((T * Bp, hidden_size), jnp.float32),       # h_buf
        ],
    )(*inputs)

    # (T*Bp, O) -> (T, Bp, O) -> (Bp, T, O) -> drop padded batch rows.
    return jnp.transpose(out_2d.reshape(T, Bp, output_size), (1, 0, 2))[:B]


# ---------------------------------------------------------------------------
# Pure-JAX reference (mirrors PyTorch nn.LSTM + nn.Linear semantics, eval mode)
# ---------------------------------------------------------------------------
def reference_forward(x, lstm_params, w_out, b_out):
    B, T, _ = x.shape
    H = lstm_params[0][1].shape[1]
    layer_in = x
    for (w_ih, w_hh, b_ih, b_hh) in lstm_params:
        h = jnp.zeros((B, H), jnp.float32)
        c = jnp.zeros((B, H), jnp.float32)
        outs = []
        for t in range(T):
            gates = layer_in[:, t, :] @ w_ih.T + h @ w_hh.T + b_ih + b_hh
            i_g = jax.nn.sigmoid(gates[:, 0 * H:1 * H])
            f_g = jax.nn.sigmoid(gates[:, 1 * H:2 * H])
            g_g = jnp.tanh(gates[:, 2 * H:3 * H])
            o_g = jax.nn.sigmoid(gates[:, 3 * H:4 * H])
            c = f_g * c + i_g * g_g
            h = o_g * jnp.tanh(c)
            outs.append(h)
        layer_in = jnp.stack(outs, axis=1)                # (B, T, H)
    return layer_in @ w_out.T + b_out


# ---------------------------------------------------------------------------
# Deterministic parameter init (PyTorch-style U(-1/sqrt(H), 1/sqrt(H)))
# ---------------------------------------------------------------------------
def init_params(key):
    k = 1.0 / np.sqrt(HIDDEN_SIZE)
    lstm_params = []
    for l in range(NUM_LAYERS):
        in_dim = NUM_FEATURES if l == 0 else HIDDEN_SIZE
        key, k1, k2, k3, k4 = jax.random.split(key, 5)
        w_ih = jax.random.uniform(k1, (4 * HIDDEN_SIZE, in_dim), jnp.float32, -k, k)
        w_hh = jax.random.uniform(k2, (4 * HIDDEN_SIZE, HIDDEN_SIZE), jnp.float32, -k, k)
        b_ih = jax.random.uniform(k3, (4 * HIDDEN_SIZE,), jnp.float32, -k, k)
        b_hh = jax.random.uniform(k4, (4 * HIDDEN_SIZE,), jnp.float32, -k, k)
        lstm_params.append((w_ih, w_hh, b_ih, b_hh))
    key, k5, k6 = jax.random.split(key, 3)
    w_out = jax.random.uniform(k5, (OUTPUT_SIZE, HIDDEN_SIZE), jnp.float32, -k, k)
    b_out = jax.random.uniform(k6, (OUTPUT_SIZE,), jnp.float32, -k, k)
    return lstm_params, w_out, b_out, key


if __name__ == "__main__":
    root_key = jax.random.PRNGKey(0)
    lstm_params, w_out, b_out, root_key = init_params(root_key)

    x = jax.random.normal(root_key, (BATCH, SEQ, NUM_FEATURES), jnp.float32)

    prepared = prepare_params(lstm_params, w_out, b_out)   # one-time weight layout
    y = lstm_model_forward(
        x, prepared,
        num_layers=NUM_LAYERS, hidden_size=HIDDEN_SIZE, output_size=OUTPUT_SIZE)
    y = jax.block_until_ready(y)

    y_ref = reference_forward(x, lstm_params, w_out, b_out)

    assert y.shape == (BATCH, SEQ, OUTPUT_SIZE), y.shape
    np.testing.assert_allclose(np.asarray(y), np.asarray(y_ref), rtol=1e-5, atol=1e-5)

    print("KERNEL_OK")
</pallas_src>

<mosaic_0001>
module attributes {stable_mosaic.version = 11 : i64} {
  func.func @kernel(%arg0: memref<64x4xf32, #tpu.memory_space<vmem>>, %arg1: memref<4x128xf32, #tpu.memory_space<vmem>>, %arg2: memref<32x128xf32, #tpu.memory_space<vmem>>, %arg3: memref<1x128xf32, #tpu.memory_space<vmem>>, %arg4: memref<32x128xf32, #tpu.memory_space<vmem>>, %arg5: memref<32x128xf32, #tpu.memory_space<vmem>>, %arg6: memref<1x128xf32, #tpu.memory_space<vmem>>, %arg7: memref<32x1xf32, #tpu.memory_space<vmem>>, %arg8: memref<1x1xf32, #tpu.memory_space<vmem>>, %arg9: memref<64x1xf32, #tpu.memory_space<vmem>>, %arg10: memref<64x128xf32, #tpu.memory_space<vmem>>, %arg11: memref<64x32xf32, #tpu.memory_space<vmem>>) attributes {dimension_semantics = [], scalar_prefetch = 0 : i64, scratch_operands = 2 : i64, tpu.core_type = #tpu.core_type<tc>} {
    %c0 = arith.constant 0 : index
    %c0_0 = arith.constant 0 : index
    %0 = vector.load %arg1[%c0, %c0_0] : memref<4x128xf32, #tpu.memory_space<vmem>>, vector<4x128xf32>
    %c0_1 = arith.constant 0 : index
    %c0_2 = arith.constant 0 : index
    %1 = vector.load %arg4[%c0_1, %c0_2] : memref<32x128xf32, #tpu.memory_space<vmem>>, vector<32x128xf32>
    %c0_3 = arith.constant 0 : index
    %c0_4 = arith.constant 0 : index
    %2 = vector.load %arg2[%c0_3, %c0_4] : memref<32x128xf32, #tpu.memory_space<vmem>>, vector<32x128xf32>
    %c0_5 = arith.constant 0 : index
    %c0_6 = arith.constant 0 : index
    %3 = vector.load %arg5[%c0_5, %c0_6] : memref<32x128xf32, #tpu.memory_space<vmem>>, vector<32x128xf32>
    %c0_7 = arith.constant 0 : index
    %c0_8 = arith.constant 0 : index
    %4 = vector.load %arg3[%c0_7, %c0_8] : memref<1x128xf32, #tpu.memory_space<vmem>>, vector<1x128xf32>
    %c0_9 = arith.constant 0 : index
    %c0_10 = arith.constant 0 : index
    %5 = vector.load %arg6[%c0_9, %c0_10] : memref<1x128xf32, #tpu.memory_space<vmem>>, vector<1x128xf32>
    %c0_11 = arith.constant 0 : index
    %c0_12 = arith.constant 0 : index
    %6 = vector.load %arg0[%c0_11, %c0_12] : memref<64x4xf32, #tpu.memory_space<vmem>>, vector<64x4xf32>
    %cst = arith.constant dense<0.000000e+00> : vector<64x128xf32>
    %7 = tpu.matmul %6, %0, %cst {dimension_numbers = #tpu.dot_dimension_numbers<[1], [0], [0], [1], [0, 0, 1, 1], [], []>} : vector<64x4xf32>, vector<4x128xf32>, vector<64x128xf32> -> vector<64x128xf32>
    %8 = vector.broadcast %4 : vector<1x128xf32> to vector<64x128xf32>
    %9 = arith.addf %7, %8 : vector<64x128xf32>
    %c0_13 = arith.constant 0 : index
    %c0_14 = arith.constant 0 : index
    %10 = vector.load %arg10[%c0_13, %c0_14] : memref<64x128xf32, #tpu.memory_space<vmem>>, vector<64x128xf32>
    tpu.vector_store %arg10[%c0_13, %c0_14], %9 {strides = array<i32>} : memref<64x128xf32, #tpu.memory_space<vmem>>, vector<64x128xf32>,
    %cst_15 = arith.constant 0.000000e+00 : f32
    %11 = vector.broadcast %cst_15 : f32 to vector<8x32xf32>
    %c0_16 = arith.constant 0 : index
    %c0_17 = arith.constant 0 : index
    %12 = vector.load %arg10[%c0_16, %c0_17] : memref<64x128xf32, #tpu.memory_space<vmem>>, vector<8x128xf32>
    %cst_18 = arith.constant dense<0.000000e+00> : vector<8x128xf32>
    %13 = tpu.matmul %11, %2, %cst_18 {dimension_numbers = #tpu.dot_dimension_numbers<[1], [0], [0], [1], [0, 0, 1, 1], [], []>} : vector<8x32xf32>, vector<32x128xf32>, vector<8x128xf32> -> vector<8x128xf32>
    %14 = arith.addf %12, %13 : vector<8x128xf32>
    %15 = arith.negf %14 : vector<8x128xf32>
    %16 = math.exp %15 : vector<8x128xf32>
    %cst_19 = arith.constant 1.000000e+00 : f32
    %17 = vector.broadcast %cst_19 : f32 to vector<8x128xf32>
    %18 = arith.addf %17, %16 : vector<8x128xf32>
    %19 = arith.divf %17, %18 : vector<8x128xf32>
    %20 = math.tanh %14 : vector<8x128xf32>
    %21 = vector.extract_strided_slice %19 {offsets = [0, 0], sizes = [8, 32], strides = [1, 1]} : vector<8x128xf32> to vector<8x32xf32>
    %22 = vector.extract_strided_slice %19 {offsets = [0, 32], sizes = [8, 32], strides = [1, 1]} : vector<8x128xf32> to vector<8x32xf32>
    %23 = vector.extract_strided_slice %20 {offsets = [0, 64], sizes = [8, 32], strides = [1, 1]} : vector<8x128xf32> to vector<8x32xf32>
    %24 = vector.extract_strided_slice %19 {offsets = [0, 96], sizes = [8, 32], strides = [1, 1]} : vector<8x128xf32> to vector<8x32xf32>
    %25 = arith.mulf %22, %11 : vector<8x32xf32>
    %26 = arith.mulf %21, %23 : vector<8x32xf32>
    %27 = arith.addf %25, %26 : vector<8x32xf32>
    %28 = math.tanh %27 : vector<8x32xf32>
    %29 = arith.mulf %24, %28 : vector<8x32xf32>
    %c1_i32 = arith.constant 1 : i32
    %cst_20 = arith.constant dense<0.000000e+00> : vector<8x128xf32>
    %30 = tpu.matmul %29, %1, %cst_20 {dimension_numbers = #tpu.dot_dimension_numbers<[1], [0], [0], [1], [0, 0, 1, 1], [], []>} : vector<8x32xf32>, vector<32x128xf32>, vector<8x128xf32> -> vector<8x128xf32>
    %31 = vector.broadcast %5 : vector<1x128xf32> to vector<8x128xf32>
    %32 = arith.addf %30, %31 : vector<8x128xf32>
    %cst_21 = arith.constant dense<0.000000e+00> : vector<8x128xf32>
    %33 = tpu.matmul %11, %3, %cst_21 {dimension_numbers = #tpu.dot_dimension_numbers<[1], [0], [0], [1], [0, 0, 1, 1], [], []>} : vector<8x32xf32>, vector<32x128xf32>, vector<8x128xf32> -> vector<8x128xf32>
    %34 = arith.addf %32, %33 : vector<8x128xf32>
    %35 = arith.negf %34 : vector<8x128xf32>
    %36 = math.exp %35 : vector<8x128xf32>
    %cst_22 = arith.constant 1.000000e+00 : f32
    %37 = vector.broadcast %cst_22 : f32 to vector<8x128xf32>
    %38 = arith.addf %37, %36 : vector<8x128xf32>
    %39 = arith.divf %37, %38 : vector<8x128xf32>
    %40 = math.tanh %34 : vector<8x128xf32>
    %41 = vector.extract_strided_slice %39 {offsets = [0, 0], sizes = [8, 32], strides = [1, 1]} : vector<8x128xf32> to vector<8x32xf32>
    %42 = vector.extract_strided_slice %39 {offsets = [0, 32], sizes = [8, 32], strides = [1, 1]} : vector<8x128xf32> to vector<8x32xf32>
    %43 = vector.extract_strided_slice %40 {offsets = [0, 64], sizes = [8, 32], strides = [1, 1]} : vector<8x128xf32> to vector<8x32xf32>
    %44 = vector.extract_strided_slice %39 {offsets = [0, 96], sizes = [8, 32], strides = [1, 1]} : vector<8x128xf32> to vector<8x32xf32>
    %45 = arith.mulf %42, %11 : vector<8x32xf32>
    %46 = arith.mulf %41, %43 : vector<8x32xf32>
    %47 = arith.addf %45, %46 : vector<8x32xf32>
    %48 = math.tanh %47 : vector<8x32xf32>
    %49 = arith.mulf %44, %48 : vector<8x32xf32>
    %c1_i32_23 = arith.constant 1 : i32
    %50 = arith.subi %c1_i32, %c1_i32_23 : i32
    %c8_i32 = arith.constant 8 : i32
    %51 = arith.muli %50, %c8_i32 : i32
    %52 = tpu.assume_multiple %51, 8 : i32
    %53 = arith.index_cast %52 : i32 to index
    %c0_24 = arith.constant 0 : index
    %54 = vector.load %arg11[%53, %c0_24] : memref<64x32xf32, #tpu.memory_space<vmem>>, vector<8x32xf32>
    tpu.vector_store %arg11[%53, %c0_24], %49 {strides = array<i32>} : memref<64x32xf32, #tpu.memory_space<vmem>>, vector<8x32xf32>,
    %c8_i32_25 = arith.constant 8 : i32
    %55 = arith.muli %c1_i32, %c8_i32_25 : i32
    %56 = tpu.assume_multiple %55, 8 : i32
    %57 = arith.index_cast %56 : i32 to index
    %c0_26 = arith.constant 0 : index
    %58 = vector.load %arg10[%57, %c0_26] : memref<64x128xf32, #tpu.memory_space<vmem>>, vector<8x128xf32>
    %cst_27 = arith.constant dense<0.000000e+00> : vector<8x128xf32>
    %59 = tpu.matmul %29, %2, %cst_27 {dimension_numbers = #tpu.dot_dimension_numbers<[1], [0], [0], [1], [0, 0, 1, 1], [], []>} : vector<8x32xf32>, vector<32x128xf32>, vector<8x128xf32> -> vector<8x128xf32>
    %60 = arith.addf %58, %59 : vector<8x128xf32>
    %61 = arith.negf %60 : vector<8x128xf32>
    %62 = math.exp %61 : vector<8x128xf32>
    %cst_28 = arith.constant 1.000000e+00 : f32
    %63 = vector.broadcast %cst_28 : f32 to vector<8x128xf32>
    %64 = arith.addf %63, %62 : vector<8x128xf32>
    %65 = arith.divf %63, %64 : vector<8x128xf32>
    %66 = math.tanh %60 : vector<8x128xf32>
    %67 = vector.extract_strided_slice %65 {offsets = [0, 0], sizes = [8, 32], strides = [1, 1]} : vector<8x128xf32> to vector<8x32xf32>
    %68 = vector.extract_strided_slice %65 {offsets = [0, 32], sizes = [8, 32], strides = [1, 1]} : vector<8x128xf32> to vector<8x32xf32>
    %69 = vector.extract_strided_slice %66 {offsets = [0, 64], sizes = [8, 32], strides = [1, 1]} : vector<8x128xf32> to vector<8x32xf32>
    %70 = vector.extract_strided_slice %65 {offsets = [0, 96], sizes = [8, 32], strides = [1, 1]} : vector<8x128xf32> to vector<8x32xf32>
    %71 = arith.mulf %68, %27 : vector<8x32xf32>
    %72 = arith.mulf %67, %69 : vector<8x32xf32>
    %73 = arith.addf %71, %72 : vector<8x32xf32>
    %74 = math.tanh %73 : vector<8x32xf32>
    %75 = arith.mulf %70, %74 : vector<8x32xf32>
    %c2_i32 = arith.constant 2 : i32
    %cst_29 = arith.constant dense<0.000000e+00> : vector<8x128xf32>
    %76 = tpu.matmul %75, %1, %cst_29 {dimension_numbers = #tpu.dot_dimension_numbers<[1], [0], [0], [1], [0, 0, 1, 1], [], []>} : vector<8x32xf32>, vector<32x128xf32>, vector<8x128xf32> -> vector<8x128xf32>
    %77 = vector.broadcast %5 : vector<1x128xf32> to vector<8x128xf32>
    %78 = arith.addf %76, %77 : vector<8x128xf32>
    %cst_30 = arith.constant dense<0.000000e+00> : vector<8x128xf32>
    %79 = tpu.matmul %49, %3, %cst_30 {dimension_numbers = #tpu.dot_dimension_numbers<[1], [0], [0], [1], [0, 0, 1, 1], [], []>} : vector<8x32xf32>, vector<32x128xf32>, vector<8x128xf32> -> vector<8x128xf32>
    %80 = arith.addf %78, %79 : vector<8x128xf32>
    %81 = arith.negf %80 : vector<8x128xf32>
    %82 = math.exp %81 : vector<8x128xf32>
    %cst_31 = arith.constant 1.000000e+00 : f32
    %83 = vector.broadcast %cst_31 : f32 to vector<8x128xf32>
    %84 = arith.addf %83, %82 : vector<8x128xf32>
    %85 = arith.divf %83, %84 : vector<8x128xf32>
    %86 = math.tanh %80 : vector<8x128xf32>
    %87 = vector.extract_strided_slice %85 {offsets = [0, 0], sizes = [8, 32], strides = [1, 1]} : vector<8x128xf32> to vector<8x32xf32>
    %88 = vector.extract_strided_slice %85 {offsets = [0, 32], sizes = [8, 32], strides = [1, 1]} : vector<8x128xf32> to vector<8x32xf32>
    %89 = vector.extract_strided_slice %86 {offsets = [0, 64], sizes = [8, 32], strides = [1, 1]} : vector<8x128xf32> to vector<8x32xf32>
    %90 = vector.extract_strided_slice %85 {offsets = [0, 96], sizes = [8, 32], strides = [1, 1]} : vector<8x128xf32> to vector<8x32xf32>
    %91 = arith.mulf %88, %47 : vector<8x32xf32>
    %92 = arith.mulf %87, %89 : vector<8x32xf32>
    %93 = arith.addf %91, %92 : vector<8x32xf32>
    %94 = math.tanh %93 : vector<8x32xf32>
    %95 = arith.mulf %90, %94 : vector<8x32xf32>
    %c1_i32_32 = arith.constant 1 : i32
    %96 = arith.subi %c2_i32, %c1_i32_32 : i32
    %c8_i32_33 = arith.constant 8 : i32
    %97 = arith.muli %96, %c8_i32_33 : i32
    %98 = tpu.assume_multiple %97, 8 : i32
    %99 = arith.index_cast %98 : i32 to index
    %c0_34 = arith.constant 0 : index
    %100 = vector.load %arg11[%99, %c0_34] : memref<64x32xf32, #tpu.memory_space<vmem>>, vector<8x32xf32>
    tpu.vector_store %arg11[%99, %c0_34], %95 {strides = array<i32>} : memref<64x32xf32, #tpu.memory_space<vmem>>, vector<8x32xf32>,
    %c8_i32_35 = arith.constant 8 : i32
    %101 = arith.muli %c2_i32, %c8_i32_35 : i32
    %102 = tpu.assume_multiple %101, 8 : i32
    %103 = arith.index_cast %102 : i32 to index
    %c0_36 = arith.constant 0 : index
    %104 = vector.load %arg10[%103, %c0_36] : memref<64x128xf32, #tpu.memory_space<vmem>>, vector<8x128xf32>
    %cst_37 = arith.constant dense<0.000000e+00> : vector<8x128xf32>
    %105 = tpu.matmul %75, %2, %cst_37 {dimension_numbers = #tpu.dot_dimension_numbers<[1], [0], [0], [1], [0, 0, 1, 1], [], []>} : vector<8x32xf32>, vector<32x128xf32>, vector<8x128xf32> -> vector<8x128xf32>
    %106 = arith.addf %104, %105 : vector<8x128xf32>
    %107 = arith.negf %106 : vector<8x128xf32>
    %108 = math.exp %107 : vector<8x128xf32>
    %cst_38 = arith.constant 1.000000e+00 : f32
    %109 = vector.broadcast %cst_38 : f32 to vector<8x128xf32>
    %110 = arith.addf %109, %108 : vector<8x128xf32>
    %111 = arith.divf %109, %110 : vector<8x128xf32>
    %112 = math.tanh %106 : vector<8x128xf32>
    %113 = vector.extract_strided_slice %111 {offsets = [0, 0], sizes = [8, 32], strides = [1, 1]} : vector<8x128xf32> to vector<8x32xf32>
    %114 = vector.extract_strided_slice %111 {offsets = [0, 32], sizes = [8, 32], strides = [1, 1]} : vector<8x128xf32> to vector<8x32xf32>
    %115 = vector.extract_strided_slice %112 {offsets = [0, 64], sizes = [8, 32], strides = [1, 1]} : vector<8x128xf32> to vector<8x32xf32>
    %116 = vector.extract_strided_slice %111 {offsets = [0, 96], sizes = [8, 32], strides = [1, 1]} : vector<8x128xf32> to vector<8x32xf32>
    %117 = arith.mulf %114, %73 : vector<8x32xf32>
    %118 = arith.mulf %113, %115 : vector<8x32xf32>
    %119 = arith.addf %117, %118 : vector<8x32xf32>
    %120 = math.tanh %119 : vector<8x32xf32>
    %121 = arith.mulf %116, %120 : vector<8x32xf32>
    %c3_i32 = arith.constant 3 : i32
    %cst_39 = arith.constant dense<0.000000e+00> : vector<8x128xf32>
    %122 = tpu.matmul %121, %1, %cst_39 {dimension_numbers = #tpu.dot_dimension_numbers<[1], [0], [0], [1], [0, 0, 1, 1], [], []>} : vector<8x32xf32>, vector<32x128xf32>, vector<8x128xf32> -> vector<8x128xf32>
    %123 = vector.broadcast %5 : vector<1x128xf32> to vector<8x128xf32>
    %124 = arith.addf %122, %123 : vector<8x128xf32>
    %cst_40 = arith.constant dense<0.000000e+00> : vector<8x128xf32>
    %125 = tpu.matmul %95, %3, %cst_40 {dimension_numbers = #tpu.dot_dimension_numbers<[1], [0], [0], [1], [0, 0, 1, 1], [], []>} : vector<8x32xf32>, vector<32x128xf32>, vector<8x128xf32> -> vector<8x128xf32>
    %126 = arith.addf %124, %125 : vector<8x128xf32>
    %127 = arith.negf %126 : vector<8x128xf32>
    %128 = math.exp %127 : vector<8x128xf32>
    %cst_41 = arith.constant 1.000000e+00 : f32
    %129 = vector.broadcast %cst_41 : f32 to vector<8x128xf32>
    %130 = arith.addf %129, %128 : vector<8x128xf32>
    %131 = arith.divf %129, %130 : vector<8x128xf32>
    %132 = math.tanh %126 : vector<8x128xf32>
    %133 = vector.extract_strided_slice %131 {offsets = [0, 0], sizes = [8, 32], strides = [1, 1]} : vector<8x128xf32> to vector<8x32xf32>
    %134 = vector.extract_strided_slice %131 {offsets = [0, 32], sizes = [8, 32], strides = [1, 1]} : vector<8x128xf32> to vector<8x32xf32>
    %135 = vector.extract_strided_slice %132 {offsets = [0, 64], sizes = [8, 32], strides = [1, 1]} : vector<8x128xf32> to vector<8x32xf32>
    %136 = vector.extract_strided_slice %131 {offsets = [0, 96], sizes = [8, 32], strides = [1, 1]} : vector<8x128xf32> to vector<8x32xf32>
    %137 = arith.mulf %134, %93 : vector<8x32xf32>
    %138 = arith.mulf %133, %135 : vector<8x32xf32>
    %139 = arith.addf %137, %138 : vector<8x32xf32>
    %140 = math.tanh %139 : vector<8x32xf32>
    %141 = arith.mulf %136, %140 : vector<8x32xf32>
    %c1_i32_42 = arith.constant 1 : i32
    %142 = arith.subi %c3_i32, %c1_i32_42 : i32
    %c8_i32_43 = arith.constant 8 : i32
    %143 = arith.muli %142, %c8_i32_43 : i32
    %144 = tpu.assume_multiple %143, 8 : i32
    %145 = arith.index_cast %144 : i32 to index
    %c0_44 = arith.constant 0 : index
    %146 = vector.load %arg11[%145, %c0_44] : memref<64x32xf32, #tpu.memory_space<vmem>>, vector<8x32xf32>
    tpu.vector_store %arg11[%145, %c0_44], %141 {strides = array<i32>} : memref<64x32xf32, #tpu.memory_space<vmem>>, vector<8x32xf32>,
    %c8_i32_45 = arith.constant 8 : i32
    %147 = arith.muli %c3_i32, %c8_i32_45 : i32
    %148 = tpu.assume_multiple %147, 8 : i32
    %149 = arith.index_cast %148 : i32 to index
    %c0_46 = arith.constant 0 : index
    %150 = vector.load %arg10[%149, %c0_46] : memref<64x128xf32, #tpu.memory_space<vmem>>, vector<8x128xf32>
    %cst_47 = arith.constant dense<0.000000e+00> : vector<8x128xf32>
    %151 = tpu.matmul %121, %2, %cst_47 {dimension_numbers = #tpu.dot_dimension_numbers<[1], [0], [0], [1], [0, 0, 1, 1], [], []>} : vector<8x32xf32>, vector<32x128xf32>, vector<8x128xf32> -> vector<8x128xf32>
    %152 = arith.addf %150, %151 : vector<8x128xf32>
    %153 = arith.negf %152 : vector<8x128xf32>
    %154 = math.exp %153 : vector<8x128xf32>
    %cst_48 = arith.constant 1.000000e+00 : f32
    %155 = vector.broadcast %cst_48 : f32 to vector<8x128xf32>
    %156 = arith.addf %155, %154 : vector<8x128xf32>
    %157 = arith.divf %155, %156 : vector<8x128xf32>
    %158 = math.tanh %152 : vector<8x128xf32>
    %159 = vector.extract_strided_slice %157 {offsets = [0, 0], sizes = [8, 32], strides = [1, 1]} : vector<8x128xf32> to vector<8x32xf32>
    %160 = vector.extract_strided_slice %157 {offsets = [0, 32], sizes = [8, 32], strides = [1, 1]} : vector<8x128xf32> to vector<8x32xf32>
    %161 = vector.extract_strided_slice %158 {offsets = [0, 64], sizes = [8, 32], strides = [1, 1]} : vector<8x128xf32> to vector<8x32xf32>
    %162 = vector.extract_strided_slice %157 {offsets = [0, 96], sizes = [8, 32], strides = [1, 1]} : vector<8x128xf32> to vector<8x32xf32>
    %163 = arith.mulf %160, %119 : vector<8x32xf32>
    %164 = arith.mulf %159, %161 : vector<8x32xf32>
    %165 = arith.addf %163, %164 : vector<8x32xf32>
    %166 = math.tanh %165 : vector<8x32xf32>
    %167 = arith.mulf %162, %166 : vector<8x32xf32>
    %c4_i32 = arith.constant 4 : i32
    %cst_49 = arith.constant dense<0.000000e+00> : vector<8x128xf32>
    %168 = tpu.matmul %167, %1, %cst_49 {dimension_numbers = #tpu.dot_dimension_numbers<[1], [0], [0], [1], [0, 0, 1, 1], [], []>} : vector<8x32xf32>, vector<32x128xf32>, vector<8x128xf32> -> vector<8x128xf32>
    %169 = vector.broadcast %5 : vector<1x128xf32> to vector<8x128xf32>
    %170 = arith.addf %168, %169 : vector<8x128xf32>
    %cst_50 = arith.constant dense<0.000000e+00> : vector<8x128xf32>
    %171 = tpu.matmul %141, %3, %cst_50 {dimension_numbers = #tpu.dot_dimension_numbers<[1], [0], [0], [1], [0, 0, 1, 1], [], []>} : vector<8x32xf32>, vector<32x128xf32>, vector<8x128xf32> -> vector<8x128xf32>
    %172 = arith.addf %170, %171 : vector<8x128xf32>
    %173 = arith.negf %172 : vector<8x128xf32>
    %174 = math.exp %173 : vector<8x128xf32>
    %cst_51 = arith.constant 1.000000e+00 : f32
    %175 = vector.broadcast %cst_51 : f32 to vector<8x128xf32>
    %176 = arith.addf %175, %174 : vector<8x128xf32>
    %177 = arith.divf %175, %176 : vector<8x128xf32>
    %178 = math.tanh %172 : vector<8x128xf32>
    %179 = vector.extract_strided_slice %177 {offsets = [0, 0], sizes = [8, 32], strides = [1, 1]} : vector<8x128xf32> to vector<8x32xf32>
    %180 = vector.extract_strided_slice %177 {offsets = [0, 32], sizes = [8, 32], strides = [1, 1]} : vector<8x128xf32> to vector<8x32xf32>
    %181 = vector.extract_strided_slice %178 {offsets = [0, 64], sizes = [8, 32], strides = [1, 1]} : vector<8x128xf32> to vector<8x32xf32>
    %182 = vector.extract_strided_slice %177 {offsets = [0, 96], sizes = [8, 32], strides = [1, 1]} : vector<8x128xf32> to vector<8x32xf32>
    %183 = arith.mulf %180, %139 : vector<8x32xf32>
    %184 = arith.mulf %179, %181 : vector<8x32xf32>
    %185 = arith.addf %183, %184 : vector<8x32xf32>
    %186 = math.tanh %185 : vector<8x32xf32>
    %187 = arith.mulf %182, %186 : vector<8x32xf32>
    %c1_i32_52 = arith.constant 1 : i32
    %188 = arith.subi %c4_i32, %c1_i32_52 : i32
    %c8_i32_53 = arith.constant 8 : i32
    %189 = arith.muli %188, %c8_i32_53 : i32
    %190 = tpu.assume_multiple %189, 8 : i32
    %191 = arith.index_cast %190 : i32 to index
    %c0_54 = arith.constant 0 : index
    %192 = vector.load %arg11[%191, %c0_54] : memref<64x32xf32, #tpu.memory_space<vmem>>, vector<8x32xf32>
    tpu.vector_store %arg11[%191, %c0_54], %187 {strides = array<i32>} : memref<64x32xf32, #tpu.memory_space<vmem>>, vector<8x32xf32>,
    %c8_i32_55 = arith.constant 8 : i32
    %193 = arith.muli %c4_i32, %c8_i32_55 : i32
    %194 = tpu.assume_multiple %193, 8 : i32
    %195 = arith.index_cast %194 : i32 to index
    %c0_56 = arith.constant 0 : index
    %196 = vector.load %arg10[%195, %c0_56] : memref<64x128xf32, #tpu.memory_space<vmem>>, vector<8x128xf32>
    %cst_57 = arith.constant dense<0.000000e+00> : vector<8x128xf32>
    %197 = tpu.matmul %167, %2, %cst_57 {dimension_numbers = #tpu.dot_dimension_numbers<[1], [0], [0], [1], [0, 0, 1, 1], [], []>} : vector<8x32xf32>, vector<32x128xf32>, vector<8x128xf32> -> vector<8x128xf32>
    %198 = arith.addf %196, %197 : vector<8x128xf32>
    %199 = arith.negf %198 : vector<8x128xf32>
    %200 = math.exp %199 : vector<8x128xf32>
    %cst_58 = arith.constant 1.000000e+00 : f32
    %201 = vector.broadcast %cst_58 : f32 to vector<8x128xf32>
    %202 = arith.addf %201, %200 : vector<8x128xf32>
    %203 = arith.divf %201, %202 : vector<8x128xf32>
    %204 = math.tanh %198 : vector<8x128xf32>
    %205 = vector.extract_strided_slice %203 {offsets = [0, 0], sizes = [8, 32], strides = [1, 1]} : vector<8x128xf32> to vector<8x32xf32>
    %206 = vector.extract_strided_slice %203 {offsets = [0, 32], sizes = [8, 32], strides = [1, 1]} : vector<8x128xf32> to vector<8x32xf32>
    %207 = vector.extract_strided_slice %204 {offsets = [0, 64], sizes = [8, 32], strides = [1, 1]} : vector<8x128xf32> to vector<8x32xf32>
    %208 = vector.extract_strided_slice %203 {offsets = [0, 96], sizes = [8, 32], strides = [1, 1]} : vector<8x128xf32> to vector<8x32xf32>
    %209 = arith.mulf %206, %165 : vector<8x32xf32>
    %210 = arith.mulf %205, %207 : vector<8x32xf32>
    %211 = arith.addf %209, %210 : vector<8x32xf32>
    %212 = math.tanh %211 : vector<8x32xf32>
    %213 = arith.mulf %208, %212 : vector<8x32xf32>
    %c5_i32 = arith.constant 5 : i32
    %cst_59 = arith.constant dense<0.000000e+00> : vector<8x128xf32>
    %214 = tpu.matmul %213, %1, %cst_59 {dimension_numbers = #tpu.dot_dimension_numbers<[1], [0], [0], [1], [0, 0, 1, 1], [], []>} : vector<8x32xf32>, vector<32x128xf32>, vector<8x128xf32> -> vector<8x128xf32>
    %215 = vector.broadcast %5 : vector<1x128xf32> to vector<8x128xf32>
    %216 = arith.addf %214, %215 : vector<8x128xf32>
    %cst_60 = arith.constant dense<0.000000e+00> : vector<8x128xf32>
    %217 = tpu.matmul %187, %3, %cst_60 {dimension_numbers = #tpu.dot_dimension_numbers<[1], [0], [0], [1], [0, 0, 1, 1], [], []>} : vector<8x32xf32>, vector<32x128xf32>, vector<8x128xf32> -> vector<8x128xf32>
    %218 = arith.addf %216, %217 : vector<8x128xf32>
    %219 = arith.negf %218 : vector<8x128xf32>
    %220 = math.exp %219 : vector<8x128xf32>
    %cst_61 = arith.constant 1.000000e+00 : f32
    %221 = vector.broadcast %cst_61 : f32 to vector<8x128xf32>
    %222 = arith.addf %221, %220 : vector<8x128xf32>
    %223 = arith.divf %221, %222 : vector<8x128xf32>
    %224 = math.tanh %218 : vector<8x128xf32>
    %225 = vector.extract_strided_slice %223 {offsets = [0, 0], sizes = [8, 32], strides = [1, 1]} : vector<8x128xf32> to vector<8x32xf32>
    %226 = vector.extract_strided_slice %223 {offsets = [0, 32], sizes = [8, 32], strides = [1, 1]} : vector<8x128xf32> to vector<8x32xf32>
    %227 = vector.extract_strided_slice %224 {offsets = [0, 64], sizes = [8, 32], strides = [1, 1]} : vector<8x128xf32> to vector<8x32xf32>
    %228 = vector.extract_strided_slice %223 {offsets = [0, 96], sizes = [8, 32], strides = [1, 1]} : vector<8x128xf32> to vector<8x32xf32>
    %229 = arith.mulf %226, %185 : vector<8x32xf32>
    %230 = arith.mulf %225, %227 : vector<8x32xf32>
    %231 = arith.addf %229, %230 : vector<8x32xf32>
    %232 = math.tanh %231 : vector<8x32xf32>
    %233 = arith.mulf %228, %232 : vector<8x32xf32>
    %c1_i32_62 = arith.constant 1 : i32
    %234 = arith.subi %c5_i32, %c1_i32_62 : i32
    %c8_i32_63 = arith.constant 8 : i32
    %235 = arith.muli %234, %c8_i32_63 : i32
    %236 = tpu.assume_multiple %235, 8 : i32
    %237 = arith.index_cast %236 : i32 to index
    %c0_64 = arith.constant 0 : index
    %238 = vector.load %arg11[%237, %c0_64] : memref<64x32xf32, #tpu.memory_space<vmem>>, vector<8x32xf32>
    tpu.vector_store %arg11[%237, %c0_64], %233 {strides = array<i32>} : memref<64x32xf32, #tpu.memory_space<vmem>>, vector<8x32xf32>,
    %c8_i32_65 = arith.constant 8 : i32
    %239 = arith.muli %c5_i32, %c8_i32_65 : i32
    %240 = tpu.assume_multiple %239, 8 : i32
    %241 = arith.index_cast %240 : i32 to index
    %c0_66 = arith.constant 0 : index
    %242 = vector.load %arg10[%241, %c0_66] : memref<64x128xf32, #tpu.memory_space<vmem>>, vector<8x128xf32>
    %cst_67 = arith.constant dense<0.000000e+00> : vector<8x128xf32>
    %243 = tpu.matmul %213, %2, %cst_67 {dimension_numbers = #tpu.dot_dimension_numbers<[1], [0], [0], [1], [0, 0, 1, 1], [], []>} : vector<8x32xf32>, vector<32x128xf32>, vector<8x128xf32> -> vector<8x128xf32>
    %244 = arith.addf %242, %243 : vector<8x128xf32>
    %245 = arith.negf %244 : vector<8x128xf32>
    %246 = math.exp %245 : vector<8x128xf32>
    %cst_68 = arith.constant 1.000000e+00 : f32
    %247 = vector.broadcast %cst_68 : f32 to vector<8x128xf32>
    %248 = arith.addf %247, %246 : vector<8x128xf32>
    %249 = arith.divf %247, %248 : vector<8x128xf32>
    %250 = math.tanh %244 : vector<8x128xf32>
    %251 = vector.extract_strided_slice %249 {offsets = [0, 0], sizes = [8, 32], strides = [1, 1]} : vector<8x128xf32> to vector<8x32xf32>
    %252 = vector.extract_strided_slice %249 {offsets = [0, 32], sizes = [8, 32], strides = [1, 1]} : vector<8x128xf32> to vector<8x32xf32>
    %253 = vector.extract_strided_slice %250 {offsets = [0, 64], sizes = [8, 32], strides = [1, 1]} : vector<8x128xf32> to vector<8x32xf32>
    %254 = vector.extract_strided_slice %249 {offsets = [0, 96], sizes = [8, 32], strides = [1, 1]} : vector<8x128xf32> to vector<8x32xf32>
    %255 = arith.mulf %252, %211 : vector<8x32xf32>
    %256 = arith.mulf %251, %253 : vector<8x32xf32>
    %257 = arith.addf %255, %256 : vector<8x32xf32>
    %258 = math.tanh %257 : vector<8x32xf32>
    %259 = arith.mulf %254, %258 : vector<8x32xf32>
    %c6_i32 = arith.constant 6 : i32
    %cst_69 = arith.constant dense<0.000000e+00> : vector<8x128xf32>
    %260 = tpu.matmul %259, %1, %cst_69 {dimension_numbers = #tpu.dot_dimension_numbers<[1], [0], [0], [1], [0, 0, 1, 1], [], []>} : vector<8x32xf32>, vector<32x128xf32>, vector<8x128xf32> -> vector<8x128xf32>
    %261 = vector.broadcast %5 : vector<1x128xf32> to vector<8x128xf32>
    %262 = arith.addf %260, %261 : vector<8x128xf32>
    %cst_70 = arith.constant dense<0.000000e+00> : vector<8x128xf32>
    %263 = tpu.matmul %233, %3, %cst_70 {dimension_numbers = #tpu.dot_dimension_numbers<[1], [0], [0], [1], [0, 0, 1, 1], [], []>} : vector<8x32xf32>, vector<32x128xf32>, vector<8x128xf32> -> vector<8x128xf32>
    %264 = arith.addf %262, %263 : vector<8x128xf32>
    %265 = arith.negf %264 : vector<8x128xf32>
    %266 = math.exp %265 : vector<8x128xf32>
    %cst_71 = arith.constant 1.000000e+00 : f32
    %267 = vector.broadcast %cst_71 : f32 to vector<8x128xf32>
    %268 = arith.addf %267, %266 : vector<8x128xf32>
    %269 = arith.divf %267, %268 : vector<8x128xf32>
    %270 = math.tanh %264 : vector<8x128xf32>
    %271 = vector.extract_strided_slice %269 {offsets = [0, 0], sizes = [8, 32], strides = [1, 1]} : vector<8x128xf32> to vector<8x32xf32>
    %272 = vector.extract_strided_slice %269 {offsets = [0, 32], sizes = [8, 32], strides = [1, 1]} : vector<8x128xf32> to vector<8x32xf32>
    %273 = vector.extract_strided_slice %270 {offsets = [0, 64], sizes = [8, 32], strides = [1, 1]} : vector<8x128xf32> to vector<8x32xf32>
    %274 = vector.extract_strided_slice %269 {offsets = [0, 96], sizes = [8, 32], strides = [1, 1]} : vector<8x128xf32> to vector<8x32xf32>
    %275 = arith.mulf %272, %231 : vector<8x32xf32>
    %276 = arith.mulf %271, %273 : vector<8x32xf32>
    %277 = arith.addf %275, %276 : vector<8x32xf32>
    %278 = math.tanh %277 : vector<8x32xf32>
    %279 = arith.mulf %274, %278 : vector<8x32xf32>
    %c1_i32_72 = arith.constant 1 : i32
    %280 = arith.subi %c6_i32, %c1_i32_72 : i32
    %c8_i32_73 = arith.constant 8 : i32
    %281 = arith.muli %280, %c8_i32_73 : i32
    %282 = tpu.assume_multiple %281, 8 : i32
    %283 = arith.index_cast %282 : i32 to index
    %c0_74 = arith.constant 0 : index
    %284 = vector.load %arg11[%283, %c0_74] : memref<64x32xf32, #tpu.memory_space<vmem>>, vector<8x32xf32>
    tpu.vector_store %arg11[%283, %c0_74], %279 {strides = array<i32>} : memref<64x32xf32, #tpu.memory_space<vmem>>, vector<8x32xf32>,
    %c8_i32_75 = arith.constant 8 : i32
    %285 = arith.muli %c6_i32, %c8_i32_75 : i32
    %286 = tpu.assume_multiple %285, 8 : i32
    %287 = arith.index_cast %286 : i32 to index
    %c0_76 = arith.constant 0 : index
    %288 = vector.load %arg10[%287, %c0_76] : memref<64x128xf32, #tpu.memory_space<vmem>>, vector<8x128xf32>
    %cst_77 = arith.constant dense<0.000000e+00> : vector<8x128xf32>
    %289 = tpu.matmul %259, %2, %cst_77 {dimension_numbers = #tpu.dot_dimension_numbers<[1], [0], [0], [1], [0, 0, 1, 1], [], []>} : vector<8x32xf32>, vector<32x128xf32>, vector<8x128xf32> -> vector<8x128xf32>
    %290 = arith.addf %288, %289 : vector<8x128xf32>
    %291 = arith.negf %290 : vector<8x128xf32>
    %292 = math.exp %291 : vector<8x128xf32>
    %cst_78 = arith.constant 1.000000e+00 : f32
    %293 = vector.broadcast %cst_78 : f32 to vector<8x128xf32>
    %294 = arith.addf %293, %292 : vector<8x128xf32>
    %295 = arith.divf %293, %294 : vector<8x128xf32>
    %296 = math.tanh %290 : vector<8x128xf32>
    %297 = vector.extract_strided_slice %295 {offsets = [0, 0], sizes = [8, 32], strides = [1, 1]} : vector<8x128xf32> to vector<8x32xf32>
    %298 = vector.extract_strided_slice %295 {offsets = [0, 32], sizes = [8, 32], strides = [1, 1]} : vector<8x128xf32> to vector<8x32xf32>
    %299 = vector.extract_strided_slice %296 {offsets = [0, 64], sizes = [8, 32], strides = [1, 1]} : vector<8x128xf32> to vector<8x32xf32>
    %300 = vector.extract_strided_slice %295 {offsets = [0, 96], sizes = [8, 32], strides = [1, 1]} : vector<8x128xf32> to vector<8x32xf32>
    %301 = arith.mulf %298, %257 : vector<8x32xf32>
    %302 = arith.mulf %297, %299 : vector<8x32xf32>
    %303 = arith.addf %301, %302 : vector<8x32xf32>
    %304 = math.tanh %303 : vector<8x32xf32>
    %305 = arith.mulf %300, %304 : vector<8x32xf32>
    %c7_i32 = arith.constant 7 : i32
    %cst_79 = arith.constant dense<0.000000e+00> : vector<8x128xf32>
    %306 = tpu.matmul %305, %1, %cst_79 {dimension_numbers = #tpu.dot_dimension_numbers<[1], [0], [0], [1], [0, 0, 1, 1], [], []>} : vector<8x32xf32>, vector<32x128xf32>, vector<8x128xf32> -> vector<8x128xf32>
    %307 = vector.broadcast %5 : vector<1x128xf32> to vector<8x128xf32>
    %308 = arith.addf %306, %307 : vector<8x128xf32>
    %cst_80 = arith.constant dense<0.000000e+00> : vector<8x128xf32>
    %309 = tpu.matmul %279, %3, %cst_80 {dimension_numbers = #tpu.dot_dimension_numbers<[1], [0], [0], [1], [0, 0, 1, 1], [], []>} : vector<8x32xf32>, vector<32x128xf32>, vector<8x128xf32> -> vector<8x128xf32>
    %310 = arith.addf %308, %309 : vector<8x128xf32>
    %311 = arith.negf %310 : vector<8x128xf32>
    %312 = math.exp %311 : vector<8x128xf32>
    %cst_81 = arith.constant 1.000000e+00 : f32
    %313 = vector.broadcast %cst_81 : f32 to vector<8x128xf32>
    %314 = arith.addf %313, %312 : vector<8x128xf32>
    %315 = arith.divf %313, %314 : vector<8x128xf32>
    %316 = math.tanh %310 : vector<8x128xf32>
    %317 = vector.extract_strided_slice %315 {offsets = [0, 0], sizes = [8, 32], strides = [1, 1]} : vector<8x128xf32> to vector<8x32xf32>
    %318 = vector.extract_strided_slice %315 {offsets = [0, 32], sizes = [8, 32], strides = [1, 1]} : vector<8x128xf32> to vector<8x32xf32>
    %319 = vector.extract_strided_slice %316 {offsets = [0, 64], sizes = [8, 32], strides = [1, 1]} : vector<8x128xf32> to vector<8x32xf32>
    %320 = vector.extract_strided_slice %315 {offsets = [0, 96], sizes = [8, 32], strides = [1, 1]} : vector<8x128xf32> to vector<8x32xf32>
    %321 = arith.mulf %318, %277 : vector<8x32xf32>
    %322 = arith.mulf %317, %319 : vector<8x32xf32>
    %323 = arith.addf %321, %322 : vector<8x32xf32>
    %324 = math.tanh %323 : vector<8x32xf32>
    %325 = arith.mulf %320, %324 : vector<8x32xf32>
    %c1_i32_82 = arith.constant 1 : i32
    %326 = arith.subi %c7_i32, %c1_i32_82 : i32
    %c8_i32_83 = arith.constant 8 : i32
    %327 = arith.muli %326, %c8_i32_83 : i32
    %328 = tpu.assume_multiple %327, 8 : i32
    %329 = arith.index_cast %328 : i32 to index
    %c0_84 = arith.constant 0 : index
    %330 = vector.load %arg11[%329, %c0_84] : memref<64x32xf32, #tpu.memory_space<vmem>>, vector<8x32xf32>
    tpu.vector_store %arg11[%329, %c0_84], %325 {strides = array<i32>} : memref<64x32xf32, #tpu.memory_space<vmem>>, vector<8x32xf32>,
    %c8_i32_85 = arith.constant 8 : i32
    %331 = arith.muli %c7_i32, %c8_i32_85 : i32
    %332 = tpu.assume_multiple %331, 8 : i32
    %333 = arith.index_cast %332 : i32 to index
    %c0_86 = arith.constant 0 : index
    %334 = vector.load %arg10[%333, %c0_86] : memref<64x128xf32, #tpu.memory_space<vmem>>, vector<8x128xf32>
    %cst_87 = arith.constant dense<0.000000e+00> : vector<8x128xf32>
    %335 = tpu.matmul %305, %2, %cst_87 {dimension_numbers = #tpu.dot_dimension_numbers<[1], [0], [0], [1], [0, 0, 1, 1], [], []>} : vector<8x32xf32>, vector<32x128xf32>, vector<8x128xf32> -> vector<8x128xf32>
    %336 = arith.addf %334, %335 : vector<8x128xf32>
    %337 = arith.negf %336 : vector<8x128xf32>
    %338 = math.exp %337 : vector<8x128xf32>
    %cst_88 = arith.constant 1.000000e+00 : f32
    %339 = vector.broadcast %cst_88 : f32 to vector<8x128xf32>
    %340 = arith.addf %339, %338 : vector<8x128xf32>
    %341 = arith.divf %339, %340 : vector<8x128xf32>
    %342 = math.tanh %336 : vector<8x128xf32>
    %343 = vector.extract_strided_slice %341 {offsets = [0, 0], sizes = [8, 32], strides = [1, 1]} : vector<8x128xf32> to vector<8x32xf32>
    %344 = vector.extract_strided_slice %341 {offsets = [0, 32], sizes = [8, 32], strides = [1, 1]} : vector<8x128xf32> to vector<8x32xf32>
    %345 = vector.extract_strided_slice %342 {offsets = [0, 64], sizes = [8, 32], strides = [1, 1]} : vector<8x128xf32> to vector<8x32xf32>
    %346 = vector.extract_strided_slice %341 {offsets = [0, 96], sizes = [8, 32], strides = [1, 1]} : vector<8x128xf32> to vector<8x32xf32>
    %347 = arith.mulf %344, %303 : vector<8x32xf32>
    %348 = arith.mulf %343, %345 : vector<8x32xf32>
    %349 = arith.addf %347, %348 : vector<8x32xf32>
    %350 = math.tanh %349 : vector<8x32xf32>
    %351 = arith.mulf %346, %350 : vector<8x32xf32>
    %c7_i32_89 = arith.constant 7 : i32
    %cst_90 = arith.constant dense<0.000000e+00> : vector<8x128xf32>
    %352 = tpu.matmul %351, %1, %cst_90 {dimension_numbers = #tpu.dot_dimension_numbers<[1], [0], [0], [1], [0, 0, 1, 1], [], []>} : vector<8x32xf32>, vector<32x128xf32>, vector<8x128xf32> -> vector<8x128xf32>
    %353 = vector.broadcast %5 : vector<1x128xf32> to vector<8x128xf32>
    %354 = arith.addf %352, %353 : vector<8x128xf32>
    %cst_91 = arith.constant dense<0.000000e+00> : vector<8x128xf32>
    %355 = tpu.matmul %325, %3, %cst_91 {dimension_numbers = #tpu.dot_dimension_numbers<[1], [0], [0], [1], [0, 0, 1, 1], [], []>} : vector<8x32xf32>, vector<32x128xf32>, vector<8x128xf32> -> vector<8x128xf32>
    %356 = arith.addf %354, %355 : vector<8x128xf32>
    %357 = arith.negf %356 : vector<8x128xf32>
    %358 = math.exp %357 : vector<8x128xf32>
    %cst_92 = arith.constant 1.000000e+00 : f32
    %359 = vector.broadcast %cst_92 : f32 to vector<8x128xf32>
    %360 = arith.addf %359, %358 : vector<8x128xf32>
    %361 = arith.divf %359, %360 : vector<8x128xf32>
    %362 = math.tanh %356 : vector<8x128xf32>
    %363 = vector.extract_strided_slice %361 {offsets = [0, 0], sizes = [8, 32], strides = [1, 1]} : vector<8x128xf32> to vector<8x32xf32>
    %364 = vector.extract_strided_slice %361 {offsets = [0, 32], sizes = [8, 32], strides = [1, 1]} : vector<8x128xf32> to vector<8x32xf32>
    %365 = vector.extract_strided_slice %362 {offsets = [0, 64], sizes = [8, 32], strides = [1, 1]} : vector<8x128xf32> to vector<8x32xf32>
    %366 = vector.extract_strided_slice %361 {offsets = [0, 96], sizes = [8, 32], strides = [1, 1]} : vector<8x128xf32> to vector<8x32xf32>
    %367 = arith.mulf %364, %323 : vector<8x32xf32>
    %368 = arith.mulf %363, %365 : vector<8x32xf32>
    %369 = arith.addf %367, %368 : vector<8x32xf32>
    %370 = math.tanh %369 : vector<8x32xf32>
    %371 = arith.mulf %366, %370 : vector<8x32xf32>
    %c56 = arith.constant 56 : index
    %c0_93 = arith.constant 0 : index
    %372 = vector.load %arg11[%c56, %c0_93] : memref<64x32xf32, #tpu.memory_space<vmem>>, vector<8x32xf32>
    tpu.vector_store %arg11[%c56, %c0_93], %371 {strides = array<i32>} : memref<64x32xf32, #tpu.memory_space<vmem>>, vector<8x32xf32>,
    %c0_94 = arith.constant 0 : index
    %c0_95 = arith.constant 0 : index
    %373 = vector.load %arg11[%c0_94, %c0_95] : memref<64x32xf32, #tpu.memory_space<vmem>>, vector<64x32xf32>
    %c0_96 = arith.constant 0 : index
    %c0_97 = arith.constant 0 : index
    %374 = vector.load %arg7[%c0_96, %c0_97] : memref<32x1xf32, #tpu.memory_space<vmem>>, vector<32x1xf32>
    %cst_98 = arith.constant dense<0.000000e+00> : vector<64x1xf32>
    %375 = tpu.matmul %373, %374, %cst_98 {dimension_numbers = #tpu.dot_dimension_numbers<[1], [0], [0], [1], [0, 0, 1, 1], [], []>} : vector<64x32xf32>, vector<32x1xf32>, vector<64x1xf32> -> vector<64x1xf32>
    %c0_99 = arith.constant 0 : index
    %c0_100 = arith.constant 0 : index
    %376 = vector.load %arg8[%c0_99, %c0_100] : memref<1x1xf32, #tpu.memory_space<vmem>>, vector<1x1xf32>
    %377 = vector.broadcast %376 : vector<1x1xf32> to vector<64x1xf32>
    %378 = arith.addf %375, %377 : vector<64x1xf32>
    %c0_101 = arith.constant 0 : index
    %c0_102 = arith.constant 0 : index
    %379 = vector.load %arg9[%c0_101, %c0_102] : memref<64x1xf32, #tpu.memory_space<vmem>>, vector<64x1xf32>
    tpu.vector_store %arg9[%c0_101, %c0_102], %378 {strides = array<i32>} : memref<64x1xf32, #tpu.memory_space<vmem>>, vector<64x1xf32>,
    return
  }
}

</mosaic_0001>

<llo_original>
// kernel: lstm_model_forward.1
$region0: #{lstm_model_forward.1}
  #allocation0 [shape = 'u32[]', space=smem, size = 0x4, offset = 0x4, fixed_abs, tag = 'smem constant byte address 0x4 - core index']
  #allocation1 [shape = 'u32[144,128]{1,0:T(1,128)}', space=vmem, size = 0x12000, scoped, tag = 'internal scratch']
  #allocation2 [shape = 'f32[64,128]{1,0:T(8,128)}', space=vmem, size = 0x8000, scoped, tag = 'scratch operand']
  #allocation3 [shape = 'f32[64,32]{1,0:T(8,128)}', space=vmem, size = 0x8000, scoped, tag = 'scratch operand']
  #allocation4 [shape = 'f32[1,1]{1,0:T(1,128)S(1)}', space=vmem, size = 0x200, scoped, tag = 'scoped memory for lstm_model_forward.1']
  %s0 = inlined_call_operand.vmem [shape: f32[64,4], index: 0, kind: input, shape index: {}]
  %s1 = inlined_call_operand.vmem [shape: f32[4,128], index: 1, kind: input, shape index: {}]
  %s2 = inlined_call_operand.vmem [shape: f32[32,128], index: 2, kind: input, shape index: {}]
  %s3 = inlined_call_operand.vmem [shape: f32[1,128], index: 3, kind: input, shape index: {}]
  %s4 = inlined_call_operand.vmem [shape: f32[32,128], index: 4, kind: input, shape index: {}]
  %s5 = inlined_call_operand.vmem [shape: f32[32,128], index: 5, kind: input, shape index: {}]
  %s6 = inlined_call_operand.vmem [shape: f32[1,128], index: 6, kind: input, shape index: {}]
  %s7 = inlined_call_operand.vmem [shape: f32[32,1], index: 7, kind: input, shape index: {}]
  %s8 = inlined_call_operand.<no memory space> [shape: f32[1,1], index: 8, kind: input, shape index: {}]
  %s9 = inlined_call_operand.vmem [shape: f32[64,1], index: 9, kind: output, shape index: {}]
  %s10 = sld [smem:[#allocation0]]
  $region46: #{lstm_model_forward.1} parent=0
    _
  %s12 = ssub.s32 1, %s10
  %s13 = scalar_select 0, %s12, %s10
  %v14 = vstv %s8
  %15 = vst [vmem:[#allocation4] sm:$0x1] %v14
  // Predicated region
  $region2: #{lstm_model_forward.1} parent=0 // pred_check
    _
  $region3: #{lstm_model_forward.1} parent=0 // pred_check_branch
    %17 = sbr.rel (0) target = $region5
  $region4: #{lstm_model_forward.1} parent=0 // pred_region
    _
  $region5: #{lstm_model_forward.1} parent=0 // pred_fallthru
    _
  // Predicated region
  $region6: #{lstm_model_forward.1} parent=0 // pred_check
    _
  $region7: #{lstm_model_forward.1} parent=0 // pred_check_branch
    %19 = sbr.rel (0) target = $region9
  $region8: #{lstm_model_forward.1} parent=0 // pred_region
    _
  $region9: #{lstm_model_forward.1} parent=0 // pred_fallthru
    _
  // Predicated region
  $region10: #{lstm_model_forward.1} parent=0 // pred_check
    _
  $region11: #{lstm_model_forward.1} parent=0 // pred_check_branch
    %21 = sbr.rel (0) target = $region13
  $region12: #{lstm_model_forward.1} parent=0 // pred_region
    _
  $region13: #{lstm_model_forward.1} parent=0 // pred_fallthru
    _
  // Predicated region
  $region14: #{lstm_model_forward.1} parent=0 // pred_check
    _
  $region15: #{lstm_model_forward.1} parent=0 // pred_check_branch
    %23 = sbr.rel (0) target = $region17
  $region16: #{lstm_model_forward.1} parent=0 // pred_region
    _
  $region17: #{lstm_model_forward.1} parent=0 // pred_fallthru
    _
  // Predicated region
  $region18: #{lstm_model_forward.1} parent=0 // pred_check
    _
  $region19: #{lstm_model_forward.1} parent=0 // pred_check_branch
    %25 = sbr.rel (0) target = $region21
  $region20: #{lstm_model_forward.1} parent=0 // pred_region
    _
  $region21: #{lstm_model_forward.1} parent=0 // pred_fallthru
    _
  // Predicated region
  $region22: #{lstm_model_forward.1} parent=0 // pred_check
    _
  $region23: #{lstm_model_forward.1} parent=0 // pred_check_branch
    %27 = sbr.rel (0) target = $region25
  $region24: #{lstm_model_forward.1} parent=0 // pred_region
    _
  $region25: #{lstm_model_forward.1} parent=0 // pred_fallthru
    _
  // Predicated region
  $region26: #{lstm_model_forward.1} parent=0 // pred_check
    _
  $region27: #{lstm_model_forward.1} parent=0 // pred_check_branch
    %29 = sbr.rel (0) target = $region29
  $region28: #{lstm_model_forward.1} parent=0 // pred_region
    _
  $region29: #{lstm_model_forward.1} parent=0 // pred_fallthru
    _
  // Predicated region
  $region30: #{lstm_model_forward.1} parent=0 // pred_check
    _
  $region31: #{lstm_model_forward.1} parent=0 // pred_check_branch
    %31 = sbr.rel (0) target = $region33
  $region32: #{lstm_model_forward.1} parent=0 // pred_region
    _
  $region33: #{lstm_model_forward.1} parent=0 // pred_fallthru
    _
  // Predicated region
  $region34: #{lstm_model_forward.1} parent=0 // pred_check
    _
  $region35: #{lstm_model_forward.1} parent=0 // pred_check_branch
    %33 = sbr.rel (0) target = $region37
  $region36: #{lstm_model_forward.1} parent=0 // pred_region
    _
  $region37: #{lstm_model_forward.1} parent=0 // pred_fallthru
    _
  %v34 = vld [vmem:[%s1] sm:$0xf]
  %v35 = vld [vmem:[%s4] sm:$0xff]
  %v36 = vld [vmem:[%s4 + $0x8] sm:$0xff]
  %v37 = vld [vmem:[%s4 + $0x10] sm:$0xff]
  %v38 = vld [vmem:[%s4 + $0x18] sm:$0xff]
  %v39 = vld [vmem:[%s2] sm:$0xff]
  %v40 = vld [vmem:[%s2 + $0x8] sm:$0xff]
  %v41 = vld [vmem:[%s2 + $0x10] sm:$0xff]
  %v42 = vld [vmem:[%s2 + $0x18] sm:$0xff]
  %v43 = vld [vmem:[%s5] sm:$0xff]
  %v44 = vld [vmem:[%s5 + $0x8] sm:$0xff]
  %v45 = vld [vmem:[%s5 + $0x10] sm:$0xff]
  %v46 = vld [vmem:[%s5 + $0x18] sm:$0xff]
  %v47 = vld [vmem:[%s3] sm:$0x1]
  %v48 = vld [vmem:[%s6] sm:$0x1]
  %v49 = vld [vmem:[%s0] sm:$0xff]
  %v50 = vld [vmem:[%s0 + $0x8] sm:$0xff]
  %v51 = vld [vmem:[%s0 + $0x10] sm:$0xff]
  %v52 = vld [vmem:[%s0 + $0x18] sm:$0xff]
  %v53 = vld [vmem:[%s0 + $0x20] sm:$0xff]
  %v54 = vld [vmem:[%s0 + $0x28] sm:$0xff]
  %v55 = vld [vmem:[%s0 + $0x30] sm:$0xff]
  %v56 = vld [vmem:[%s0 + $0x38] sm:$0xff]
  %v58 = vlaneseq
  %v59 = vshrl.u32 %v58, 7
  %v60 = vsub.s32 0, %v59
  %v61 = vrot.slane %v47, %v60
  %vm63 = vcmask 31744
  %v65 = vsel %vm63, %v49, 0
  %v68 = vsel %vm63, %v50, 0
  %v71 = vsel %vm63, %v51, 0
  %v74 = vsel %vm63, %v52, 0
  %v77 = vsel %vm63, %v53, 0
  %v80 = vsel %vm63, %v54, 0
  %v83 = vsel %vm63, %v55, 0
  %v86 = vsel %vm63, %v56, 0
  %vm88 = vcmask 1043456
  %v90 = vsel %vm88, %v34, 0
  %92 = vmatprep.subr.mxu0 0.0
  %93 = vmatpush1.msra.mxu0 %v90
  %94 = vmatprep.subr.mxu0 0.0
  %95 = vmatpush1.msra.mxu0 0.0
  %96 = vmatprep.subr.mxu0 0.0
  %97 = vmatpush1.msra.mxu0 0.0
  %98 = vmatprep.subr.mxu0 0.0
  %99 = vmatpush1.msra.mxu0 0.0
  %100 = vmatprep.subr.mxu0 0.0
  %101 = vmatpush1.msra.mxu0 0.0
  %102 = vmatprep.subr.mxu0 0.0
  %103 = vmatpush1.msra.mxu0 0.0
  %104 = vmatprep.subr.mxu0 0.0
  %105 = vmatpush1.msra.mxu0 0.0
  %106 = vmatprep.subr.mxu0 0.0
  %107 = vmatpush1.msra.mxu0 0.0
  %108 = vmatprep.subr.mxu0 0.0
  %109 = vmatpush1.msra.mxu0 0.0
  %110 = vmatprep.subr.mxu0 0.0
  %111 = vmatpush1.msra.mxu0 0.0
  %112 = vmatprep.subr.mxu0 0.0
  %113 = vmatpush1.msra.mxu0 0.0
  %114 = vmatprep.subr.mxu0 0.0
  %115 = vmatpush1.msra.mxu0 0.0
  %116 = vmatprep.subr.mxu0 0.0
  %117 = vmatpush1.msra.mxu0 0.0
  %118 = vmatprep.subr.mxu0 0.0
  %119 = vmatpush1.msra.mxu0 0.0
  %120 = vmatprep.subr.mxu0 0.0
  %121 = vmatpush1.msra.mxu0 0.0
  %122 = vmatprep.subr.mxu0 0.0
  %123 = vmatpush1.msra.mxu0 0.0
  %124 = vmatprep.subr.mxu0 0.0
  %125 = vmatpush1.msra.mxu0 0.0
  %126 = vmatprep.subr.mxu0 0.0
  %127 = vmatpush1.msra.mxu0 0.0
  %128 = vmatprep.subr.mxu0 0.0
  %129 = vmatpush1.msra.mxu0 0.0
  %130 = vmatprep.subr.mxu0 0.0
  %131 = vmatpush1.msra.mxu0 0.0
  %132 = vmatprep.subr.mxu0 0.0
  %133 = vmatpush1.msra.mxu0 0.0
  %134 = vmatprep.subr.mxu0 0.0
  %135 = vmatpush1.msra.mxu0 0.0
  %136 = vmatprep.subr.mxu0 0.0
  %137 = vmatpush1.msra.mxu0 0.0
  %138 = vmatprep.subr.mxu0 0.0
  %139 = vmatpush1.msra.mxu0 0.0
  %140 = vmatprep.subr.mxu0 0.0
  %141 = vmatpush1.msra.mxu0 0.0
  %142 = vmatprep.subr.mxu0 0.0
  %143 = vmatpush1.msra.mxu0 0.0
  %144 = vmatprep.subr.mxu0 0.0
  %145 = vmatpush1.msra.mxu0 0.0
  %146 = vmatprep.subr.mxu0 0.0
  %147 = vmatpush1.msra.mxu0 0.0
  %148 = vmatprep.subr.mxu0 0.0
  %149 = vmatpush1.msra.mxu0 0.0
  %150 = vmatprep.subr.mxu0 0.0
  %151 = vmatpush1.msra.mxu0 0.0
  %152 = vmatprep.subr.mxu0 0.0
  %153 = vmatpush1.msra.mxu0 0.0
  %154 = vmatprep.subr.mxu0 0.0
  %155 = vmatpush1.msra.mxu0 0.0
  %156 = vmatprep.mubr.f32.mxu0 0.0
  %157 = vmatmul.mubr.f32.gmra.mrb[0].mxu0 %v65
  %v158 = vpop.f32.mrb[0].mxu0
  %v159 = vadd.f32 %v61, %v158
  %v160 = vpop.f32.mrb[0].mxu0
  %161 = vmatprep.mubr.f32.mxu0 0.0
  %162 = vmatmul.mubr.f32.gmra.mrb[0].mxu0 %v68
  %v163 = vpop.f32.mrb[0].mxu0
  %v164 = vadd.f32 %v61, %v163
  %v165 = vpop.f32.mrb[0].mxu0
  %166 = vmatprep.mubr.f32.mxu0 0.0
  %167 = vmatmul.mubr.f32.gmra.mrb[0].mxu0 %v71
  %v168 = vpop.f32.mrb[0].mxu0
  %v169 = vadd.f32 %v61, %v168
  %v170 = vpop.f32.mrb[0].mxu0
  %171 = vmatprep.mubr.f32.mxu0 0.0
  %172 = vmatmul.mubr.f32.gmra.mrb[0].mxu0 %v74
  %v173 = vpop.f32.mrb[0].mxu0
  %v174 = vadd.f32 %v61, %v173
  %v175 = vpop.f32.mrb[0].mxu0
  %176 = vmatprep.mubr.f32.mxu0 0.0
  %177 = vmatmul.mubr.f32.gmra.mrb[0].mxu0 %v77
  %v178 = vpop.f32.mrb[0].mxu0
  %v179 = vadd.f32 %v61, %v178
  %v180 = vpop.f32.mrb[0].mxu0
  %181 = vmatprep.mubr.f32.mxu0 0.0
  %182 = vmatmul.mubr.f32.gmra.mrb[0].mxu0 %v80
  %v183 = vpop.f32.mrb[0].mxu0
  %v184 = vadd.f32 %v61, %v183
  %v185 = vpop.f32.mrb[0].mxu0
  %186 = vmatprep.mubr.f32.mxu0 0.0
  %187 = vmatmul.mubr.f32.gmra.mrb[0].mxu0 %v83
  %v188 = vpop.f32.mrb[0].mxu0
  %v189 = vadd.f32 %v61, %v188
  %v190 = vpop.f32.mrb[0].mxu0
  %191 = vmatprep.mubr.f32.mxu0 0.0
  %192 = vmatmul.mubr.f32.gmra.mrb[0].mxu0 %v86
  %v193 = vpop.f32.mrb[0].mxu0
  %v194 = vadd.f32 %v61, %v193
  %v195 = vpop.f32.mrb[0].mxu0
  %196 = vdwg.mxu0
  %197 = vst [vmem:[#allocation2] sm:$0xff] %v159
  %198 = vst [vmem:[#allocation2 + $0x8] sm:$0xff] %v164
  %199 = vst [vmem:[#allocation2 + $0x10] sm:$0xff] %v169
  %200 = vst [vmem:[#allocation2 + $0x18] sm:$0xff] %v174
  %201 = vst [vmem:[#allocation2 + $0x20] sm:$0xff] %v179
  %202 = vst [vmem:[#allocation2 + $0x28] sm:$0xff] %v184
  %203 = vst [vmem:[#allocation2 + $0x30] sm:$0xff] %v189
  %204 = vst [vmem:[#allocation2 + $0x38] sm:$0xff] %v194
  %v205 = vld [vmem:[#allocation2] sm:$0xff]
  %vm206 = vcmask 261120
  %v208 = vsel %vm206, 0.0, 0
  %210 = vmatprep.subr.mxu0 0.0
  %211 = vmatpush1.msra.mxu0 %v39
  %212 = vmatprep.subr.mxu0 0.0
  %213 = vmatpush1.msra.mxu0 %v40
  %214 = vmatprep.subr.mxu0 0.0
  %215 = vmatpush1.msra.mxu0 %v41
  %216 = vmatprep.subr.mxu0 0.0
  %217 = vmatpush1.msra.mxu0 %v42
  %218 = vmatprep.subr.mxu0 0.0
  %219 = vmatpush1.msra.mxu0 0.0
  %220 = vmatprep.subr.mxu0 0.0
  %221 = vmatpush1.msra.mxu0 0.0
  %222 = vmatprep.subr.mxu0 0.0
  %223 = vmatpush1.msra.mxu0 0.0
  %224 = vmatprep.subr.mxu0 0.0
  %225 = vmatpush1.msra.mxu0 0.0
  %226 = vmatprep.subr.mxu0 0.0
  %227 = vmatpush1.msra.mxu0 0.0
  %228 = vmatprep.subr.mxu0 0.0
  %229 = vmatpush1.msra.mxu0 0.0
  %230 = vmatprep.subr.mxu0 0.0
  %231 = vmatpush1.msra.mxu0 0.0
  %232 = vmatprep.subr.mxu0 0.0
  %233 = vmatpush1.msra.mxu0 0.0
  %234 = vmatprep.subr.mxu0 0.0
  %235 = vmatpush1.msra.mxu0 0.0
  %236 = vmatprep.subr.mxu0 0.0
  %237 = vmatpush1.msra.mxu0 0.0
  %238 = vmatprep.subr.mxu0 0.0
  %239 = vmatpush1.msra.mxu0 0.0
  %240 = vmatprep.subr.mxu0 0.0
  %241 = vmatpush1.msra.mxu0 0.0
  %242 = vmatprep.subr.mxu0 0.0
  %243 = vmatpush1.msra.mxu0 0.0
  %244 = vmatprep.subr.mxu0 0.0
  %245 = vmatpush1.msra.mxu0 0.0
  %246 = vmatprep.subr.mxu0 0.0
  %247 = vmatpush1.msra.mxu0 0.0
  %248 = vmatprep.subr.mxu0 0.0
  %249 = vmatpush1.msra.mxu0 0.0
  %250 = vmatprep.subr.mxu0 0.0
  %251 = vmatpush1.msra.mxu0 0.0
  %252 = vmatprep.subr.mxu0 0.0
  %253 = vmatpush1.msra.mxu0 0.0
  %254 = vmatprep.subr.mxu0 0.0
  %255 = vmatpush1.msra.mxu0 0.0
  %256 = vmatprep.subr.mxu0 0.0
  %257 = vmatpush1.msra.mxu0 0.0
  %258 = vmatprep.subr.mxu0 0.0
  %259 = vmatpush1.msra.mxu0 0.0
  %260 = vmatprep.subr.mxu0 0.0
  %261 = vmatpush1.msra.mxu0 0.0
  %262 = vmatprep.subr.mxu0 0.0
  %263 = vmatpush1.msra.mxu0 0.0
  %264 = vmatprep.subr.mxu0 0.0
  %265 = vmatpush1.msra.mxu0 0.0
  %266 = vmatprep.subr.mxu0 0.0
  %267 = vmatpush1.msra.mxu0 0.0
  %268 = vmatprep.subr.mxu0 0.0
  %269 = vmatpush1.msra.mxu0 0.0
  %270 = vmatprep.subr.mxu0 0.0
  %271 = vmatpush1.msra.mxu0 0.0
  %272 = vmatprep.subr.mxu0 0.0
  %273 = vmatpush1.msra.mxu0 0.0
  %274 = vmatprep.mubr.f32.mxu0 0.0
  %275 = vmatmul.mubr.f32.gmra.mrb[0].mxu0 %v208
  %v276 = vpop.f32.mrb[0].mxu0
  %v277 = vadd.f32 0.0, %v276
  %v278 = vpop.f32.mrb[0].mxu0
  %279 = vdwg.mxu0
  %v280 = vadd.f32 %v205, %v277
  %v281 = vxor.u32 %v280, 2147483648
  %v282 = vmul.f32 %v281, 1.442695
  %v283 = vpow.pop %v282
  %v284 = vadd.f32 %v283, 1.0
  %v285 = vrcp.pop %v284
  %v286 = vmul.f32 1.0, %v285
  %v287 = vtanh.pop %v280
  %v288 = vmul.f32 %v286, 0.0
  %290 = vrot.lane.b32.xlu0 %v287, 64
  %v291 = vpop.permute.xlu0 %290
  %v293 = vmul.f32 %v286, %v291
  %295 = vrot.lane.b32.xlu0 %v293, 32
  %v296 = vpop.permute.xlu0 %295
  %v298 = vadd.f32 %v288, %v296
  %v299 = vtanh.pop %v298
  %301 = vrot.lane.b32.xlu0 %v299, 64
  %v302 = vpop.permute.xlu0 %301
  %v304 = vmul.f32 %v286, %v302
  %v306 = vlaneseq
  %v307 = vshrl.u32 %v306, 7
  %v308 = vsub.s32 0, %v307
  %v309 = vrot.slane %v48, %v308
  %312 = vrot.lane.b32.xlu0 %v304, 32
  %v313 = vpop.permute.xlu0 %312
  %v314 = vsel %vm206, %v313, 0
  %316 = vmatprep.subr.mxu0 0.0
  %317 = vmatpush1.msra.mxu0 %v35
  %318 = vmatprep.subr.mxu0 0.0
  %319 = vmatpush1.msra.mxu0 %v36
  %320 = vmatprep.subr.mxu0 0.0
  %321 = vmatpush1.msra.mxu0 %v37
  %322 = vmatprep.subr.mxu0 0.0
  %323 = vmatpush1.msra.mxu0 %v38
  %324 = vmatprep.subr.mxu0 0.0
  %325 = vmatpush1.msra.mxu0 0.0
  %326 = vmatprep.subr.mxu0 0.0
  %327 = vmatpush1.msra.mxu0 0.0
  %328 = vmatprep.subr.mxu0 0.0
  %329 = vmatpush1.msra.mxu0 0.0
  %330 = vmatprep.subr.mxu0 0.0
  %331 = vmatpush1.msra.mxu0 0.0
  %332 = vmatprep.subr.mxu0 0.0
  %333 = vmatpush1.msra.mxu0 0.0
  %334 = vmatprep.subr.mxu0 0.0
  %335 = vmatpush1.msra.mxu0 0.0
  %336 = vmatprep.subr.mxu0 0.0
  %337 = vmatpush1.msra.mxu0 0.0
  %338 = vmatprep.subr.mxu0 0.0
  %339 = vmatpush1.msra.mxu0 0.0
  %340 = vmatprep.subr.mxu0 0.0
  %341 = vmatpush1.msra.mxu0 0.0
  %342 = vmatprep.subr.mxu0 0.0
  %343 = vmatpush1.msra.mxu0 0.0
  %344 = vmatprep.subr.mxu0 0.0
  %345 = vmatpush1.msra.mxu0 0.0
  %346 = vmatprep.subr.mxu0 0.0
  %347 = vmatpush1.msra.mxu0 0.0
  %348 = vmatprep.subr.mxu0 0.0
  %349 = vmatpush1.msra.mxu0 0.0
  %350 = vmatprep.subr.mxu0 0.0
  %351 = vmatpush1.msra.mxu0 0.0
  %352 = vmatprep.subr.mxu0 0.0
  %353 = vmatpush1.msra.mxu0 0.0
  %354 = vmatprep.subr.mxu0 0.0
  %355 = vmatpush1.msra.mxu0 0.0
  %356 = vmatprep.subr.mxu0 0.0
  %357 = vmatpush1.msra.mxu0 0.0
  %358 = vmatprep.subr.mxu0 0.0
  %359 = vmatpush1.msra.mxu0 0.0
  %360 = vmatprep.subr.mxu0 0.0
  %361 = vmatpush1.msra.mxu0 0.0
  %362 = vmatprep.subr.mxu0 0.0
  %363 = vmatpush1.msra.mxu0 0.0
  %364 = vmatprep.subr.mxu0 0.0
  %365 = vmatpush1.msra.mxu0 0.0
  %366 = vmatprep.subr.mxu0 0.0
  %367 = vmatpush1.msra.mxu0 0.0
  %368 = vmatprep.subr.mxu0 0.0
  %369 = vmatpush1.msra.mxu0 0.0
  %370 = vmatprep.subr.mxu0 0.0
  %371 = vmatpush1.msra.mxu0 0.0
  %372 = vmatprep.subr.mxu0 0.0
  %373 = vmatpush1.msra.mxu0 0.0
  %374 = vmatprep.subr.mxu0 0.0
  %375 = vmatpush1.msra.mxu0 0.0
  %376 = vmatprep.subr.mxu0 0.0
  %377 = vmatpush1.msra.mxu0 0.0
  %378 = vmatprep.subr.mxu0 0.0
  %379 = vmatpush1.msra.mxu0 0.0
  %380 = vmatprep.mubr.f32.mxu0 0.0
  %381 = vmatmul.mubr.f32.gmra.mrb[0].mxu0 %v314
  %v382 = vpop.f32.mrb[0].mxu0
  %v383 = vadd.f32 %v309, %v382
  %v384 = vpop.f32.mrb[0].mxu0
  %385 = vdwg.mxu0
  %386 = vmatprep.subr.mxu0 0.0
  %387 = vmatpush1.msra.mxu0 %v43
  %388 = vmatprep.subr.mxu0 0.0
  %389 = vmatpush1.msra.mxu0 %v44
  %390 = vmatprep.subr.mxu0 0.0
  %391 = vmatpush1.msra.mxu0 %v45
  %392 = vmatprep.subr.mxu0 0.0
  %393 = vmatpush1.msra.mxu0 %v46
  %394 = vmatprep.subr.mxu0 0.0
  %395 = vmatpush1.msra.mxu0 0.0
  %396 = vmatprep.subr.mxu0 0.0
  %397 = vmatpush1.msra.mxu0 0.0
  %398 = vmatprep.subr.mxu0 0.0
  %399 = vmatpush1.msra.mxu0 0.0
  %400 = vmatprep.subr.mxu0 0.0
  %401 = vmatpush1.msra.mxu0 0.0
  %402 = vmatprep.subr.mxu0 0.0
  %403 = vmatpush1.msra.mxu0 0.0
  %404 = vmatprep.subr.mxu0 0.0
  %405 = vmatpush1.msra.mxu0 0.0
  %406 = vmatprep.subr.mxu0 0.0
  %407 = vmatpush1.msra.mxu0 0.0
  %408 = vmatprep.subr.mxu0 0.0
  %409 = vmatpush1.msra.mxu0 0.0
  %410 = vmatprep.subr.mxu0 0.0
  %411 = vmatpush1.msra.mxu0 0.0
  %412 = vmatprep.subr.mxu0 0.0
  %413 = vmatpush1.msra.mxu0 0.0
  %414 = vmatprep.subr.mxu0 0.0
  %415 = vmatpush1.msra.mxu0 0.0
  %416 = vmatprep.subr.mxu0 0.0
  %417 = vmatpush1.msra.mxu0 0.0
  %418 = vmatprep.subr.mxu0 0.0
  %419 = vmatpush1.msra.mxu0 0.0
  %420 = vmatprep.subr.mxu0 0.0
  %421 = vmatpush1.msra.mxu0 0.0
  %422 = vmatprep.subr.mxu0 0.0
  %423 = vmatpush1.msra.mxu0 0.0
  %424 = vmatprep.subr.mxu0 0.0
  %425 = vmatpush1.msra.mxu0 0.0
  %426 = vmatprep.subr.mxu0 0.0
  %427 = vmatpush1.msra.mxu0 0.0
  %428 = vmatprep.subr.mxu0 0.0
  %429 = vmatpush1.msra.mxu0 0.0
  %430 = vmatprep.subr.mxu0 0.0
  %431 = vmatpush1.msra.mxu0 0.0
  %432 = vmatprep.subr.mxu0 0.0
  %433 = vmatpush1.msra.mxu0 0.0
  %434 = vmatprep.subr.mxu0 0.0
  %435 = vmatpush1.msra.mxu0 0.0
  %436 = vmatprep.subr.mxu0 0.0
  %437 = vmatpush1.msra.mxu0 0.0
  %438 = vmatprep.subr.mxu0 0.0
  %439 = vmatpush1.msra.mxu0 0.0
  %440 = vmatprep.subr.mxu0 0.0
  %441 = vmatpush1.msra.mxu0 0.0
  %442 = vmatprep.subr.mxu0 0.0
  %443 = vmatpush1.msra.mxu0 0.0
  %444 = vmatprep.subr.mxu0 0.0
  %445 = vmatpush1.msra.mxu0 0.0
  %446 = vmatprep.subr.mxu0 0.0
  %447 = vmatpush1.msra.mxu0 0.0
  %448 = vmatprep.subr.mxu0 0.0
  %449 = vmatpush1.msra.mxu0 0.0
  %450 = vmatprep.mubr.f32.mxu0 0.0
  %451 = vmatmul.mubr.f32.gmra.mrb[0].mxu0 %v208
  %v452 = vpop.f32.mrb[0].mxu0
  %v453 = vadd.f32 0.0, %v452
  %v454 = vpop.f32.mrb[0].mxu0
  %455 = vdwg.mxu0
  %v456 = vadd.f32 %v383, %v453
  %v457 = vxor.u32 %v456, 2147483648
  %v458 = vmul.f32 %v457, 1.442695
  %v459 = vpow.pop %v458
  %v460 = vadd.f32 %v459, 1.0
  %v461 = vrcp.pop %v460
  %v462 = vmul.f32 1.0, %v461
  %v463 = vtanh.pop %v456
  %v464 = vmul.f32 %v462, 0.0
  %466 = vrot.lane.b32.xlu0 %v463, 64
  %v467 = vpop.permute.xlu0 %466
  %v469 = vmul.f32 %v462, %v467
  %471 = vrot.lane.b32.xlu0 %v469, 32
  %v472 = vpop.permute.xlu0 %471
  %v474 = vadd.f32 %v464, %v472
  %v475 = vtanh.pop %v474
  %477 = vrot.lane.b32.xlu0 %v475, 64
  %v478 = vpop.permute.xlu0 %477
  %v480 = vmul.f32 %v462, %v478
  %482 = vrot.lane.b32.xlu0 %v480, 32
  %v483 = vpop.permute.xlu0 %482
  %485 = vst.msk [vmem:[#allocation3] sm:$0xff] %vm206, %v483
  %s486 = scalar_lea.vmem [#allocation2], 8
  %v487 = vld [vmem:[%s486] sm:$0xff]
  %488 = vmatprep.subr.mxu0 0.0
  %489 = vmatpush1.msra.mxu0 %v39
  %490 = vmatprep.subr.mxu0 0.0
  %491 = vmatpush1.msra.mxu0 %v40
  %492 = vmatprep.subr.mxu0 0.0
  %493 = vmatpush1.msra.mxu0 %v41
  %494 = vmatprep.subr.mxu0 0.0
  %495 = vmatpush1.msra.mxu0 %v42
  %496 = vmatprep.subr.mxu0 0.0
  %497 = vmatpush1.msra.mxu0 0.0
  %498 = vmatprep.subr.mxu0 0.0
  %499 = vmatpush1.msra.mxu0 0.0
  %500 = vmatprep.subr.mxu0 0.0
  %501 = vmatpush1.msra.mxu0 0.0
  %502 = vmatprep.subr.mxu0 0.0
  %503 = vmatpush1.msra.mxu0 0.0
  %504 = vmatprep.subr.mxu0 0.0
  %505 = vmatpush1.msra.mxu0 0.0
  %506 = vmatprep.subr.mxu0 0.0
  %507 = vmatpush1.msra.mxu0 0.0
  %508 = vmatprep.subr.mxu0 0.0
  %509 = vmatpush1.msra.mxu0 0.0
  %510 = vmatprep.subr.mxu0 0.0
  %511 = vmatpush1.msra.mxu0 0.0
  %512 = vmatprep.subr.mxu0 0.0
  %513 = vmatpush1.msra.mxu0 0.0
  %514 = vmatprep.subr.mxu0 0.0
  %515 = vmatpush1.msra.mxu0 0.0
  %516 = vmatprep.subr.mxu0 0.0
  %517 = vmatpush1.msra.mxu0 0.0
  %518 = vmatprep.subr.mxu0 0.0
  %519 = vmatpush1.msra.mxu0 0.0
  %520 = vmatprep.subr.mxu0 0.0
  %521 = vmatpush1.msra.mxu0 0.0
  %522 = vmatprep.subr.mxu0 0.0
  %523 = vmatpush1.msra.mxu0 0.0
  %524 = vmatprep.subr.mxu0 0.0
  %525 = vmatpush1.msra.mxu0 0.0
  %526 = vmatprep.subr.mxu0 0.0
  %527 = vmatpush1.msra.mxu0 0.0
  %528 = vmatprep.subr.mxu0 0.0
  %529 = vmatpush1.msra.mxu0 0.0
  %530 = vmatprep.subr.mxu0 0.0
  %531 = vmatpush1.msra.mxu0 0.0
  %532 = vmatprep.subr.mxu0 0.0
  %533 = vmatpush1.msra.mxu0 0.0
  %534 = vmatprep.subr.mxu0 0.0
  %535 = vmatpush1.msra.mxu0 0.0
  %536 = vmatprep.subr.mxu0 0.0
  %537 = vmatpush1.msra.mxu0 0.0
  %538 = vmatprep.subr.mxu0 0.0
  %539 = vmatpush1.msra.mxu0 0.0
  %540 = vmatprep.subr.mxu0 0.0
  %541 = vmatpush1.msra.mxu0 0.0
  %542 = vmatprep.subr.mxu0 0.0
  %543 = vmatpush1.msra.mxu0 0.0
  %544 = vmatprep.subr.mxu0 0.0
  %545 = vmatpush1.msra.mxu0 0.0
  %546 = vmatprep.subr.mxu0 0.0
  %547 = vmatpush1.msra.mxu0 0.0
  %548 = vmatprep.subr.mxu0 0.0
  %549 = vmatpush1.msra.mxu0 0.0
  %550 = vmatprep.subr.mxu0 0.0
  %551 = vmatpush1.msra.mxu0 0.0
  %552 = vmatprep.mubr.f32.mxu0 0.0
  %553 = vmatmul.mubr.f32.gmra.mrb[0].mxu0 %v314
  %v554 = vpop.f32.mrb[0].mxu0
  %v555 = vadd.f32 0.0, %v554
  %v556 = vpop.f32.mrb[0].mxu0
  %557 = vdwg.mxu0
  %v558 = vadd.f32 %v487, %v555
  %v559 = vxor.u32 %v558, 2147483648
  %v560 = vmul.f32 %v559, 1.442695
  %v561 = vpow.pop %v560
  %v562 = vadd.f32 %v561, 1.0
  %v563 = vrcp.pop %v562
  %v564 = vmul.f32 1.0, %v563
  %v565 = vtanh.pop %v558
  %v566 = vmul.f32 %v564, %v298
  %568 = vrot.lane.b32.xlu0 %v565, 64
  %v569 = vpop.permute.xlu0 %568
  %v571 = vmul.f32 %v564, %v569
  %573 = vrot.lane.b32.xlu0 %v571, 32
  %v574 = vpop.permute.xlu0 %573
  %v576 = vadd.f32 %v566, %v574
  %v577 = vtanh.pop %v576
  %579 = vrot.lane.b32.xlu0 %v577, 64
  %v580 = vpop.permute.xlu0 %579
  %v582 = vmul.f32 %v564, %v580
  %584 = vrot.lane.b32.xlu0 %v582, 32
  %v585 = vpop.permute.xlu0 %584
  %v586 = vsel %vm206, %v585, 0
  %588 = vmatprep.subr.mxu0 0.0
  %589 = vmatpush1.msra.mxu0 %v35
  %590 = vmatprep.subr.mxu0 0.0
  %591 = vmatpush1.msra.mxu0 %v36
  %592 = vmatprep.subr.mxu0 0.0
  %593 = vmatpush1.msra.mxu0 %v37
  %594 = vmatprep.subr.mxu0 0.0
  %595 = vmatpush1.msra.mxu0 %v38
  %596 = vmatprep.subr.mxu0 0.0
  %597 = vmatpush1.msra.mxu0 0.0
  %598 = vmatprep.subr.mxu0 0.0
  %599 = vmatpush1.msra.mxu0 0.0
  %600 = vmatprep.subr.mxu0 0.0
  %601 = vmatpush1.msra.mxu0 0.0
  %602 = vmatprep.subr.mxu0 0.0
  %603 = vmatpush1.msra.mxu0 0.0
  %604 = vmatprep.subr.mxu0 0.0
  %605 = vmatpush1.msra.mxu0 0.0
  %606 = vmatprep.subr.mxu0 0.0
  %607 = vmatpush1.msra.mxu0 0.0
  %608 = vmatprep.subr.mxu0 0.0
  %609 = vmatpush1.msra.mxu0 0.0
  %610 = vmatprep.subr.mxu0 0.0
  %611 = vmatpush1.msra.mxu0 0.0
  %612 = vmatprep.subr.mxu0 0.0
  %613 = vmatpush1.msra.mxu0 0.0
  %614 = vmatprep.subr.mxu0 0.0
  %615 = vmatpush1.msra.mxu0 0.0
  %616 = vmatprep.subr.mxu0 0.0
  %617 = vmatpush1.msra.mxu0 0.0
  %618 = vmatprep.subr.mxu0 0.0
  %619 = vmatpush1.msra.mxu0 0.0
  %620 = vmatprep.subr.mxu0 0.0
  %621 = vmatpush1.msra.mxu0 0.0
  %622 = vmatprep.subr.mxu0 0.0
  %623 = vmatpush1.msra.mxu0 0.0
  %624 = vmatprep.subr.mxu0 0.0
  %625 = vmatpush1.msra.mxu0 0.0
  %626 = vmatprep.subr.mxu0 0.0
  %627 = vmatpush1.msra.mxu0 0.0
  %628 = vmatprep.subr.mxu0 0.0
  %629 = vmatpush1.msra.mxu0 0.0
  %630 = vmatprep.subr.mxu0 0.0
  %631 = vmatpush1.msra.mxu0 0.0
  %632 = vmatprep.subr.mxu0 0.0
  %633 = vmatpush1.msra.mxu0 0.0
  %634 = vmatprep.subr.mxu0 0.0
  %635 = vmatpush1.msra.mxu0 0.0
  %636 = vmatprep.subr.mxu0 0.0
  %637 = vmatpush1.msra.mxu0 0.0
  %638 = vmatprep.subr.mxu0 0.0
  %639 = vmatpush1.msra.mxu0 0.0
  %640 = vmatprep.subr.mxu0 0.0
  %641 = vmatpush1.msra.mxu0 0.0
  %642 = vmatprep.subr.mxu0 0.0
  %643 = vmatpush1.msra.mxu0 0.0
  %644 = vmatprep.subr.mxu0 0.0
  %645 = vmatpush1.msra.mxu0 0.0
  %646 = vmatprep.subr.mxu0 0.0
  %647 = vmatpush1.msra.mxu0 0.0
  %648 = vmatprep.subr.mxu0 0.0
  %649 = vmatpush1.msra.mxu0 0.0
  %650 = vmatprep.subr.mxu0 0.0
  %651 = vmatpush1.msra.mxu0 0.0
  %652 = vmatprep.mubr.f32.mxu0 0.0
  %653 = vmatmul.mubr.f32.gmra.mrb[0].mxu0 %v586
  %v654 = vpop.f32.mrb[0].mxu0
  %v655 = vadd.f32 %v309, %v654
  %v656 = vpop.f32.mrb[0].mxu0
  %657 = vdwg.mxu0
  %v658 = vsel %vm206, %v483, 0
  %660 = vmatprep.subr.mxu0 0.0
  %661 = vmatpush1.msra.mxu0 %v43
  %662 = vmatprep.subr.mxu0 0.0
  %663 = vmatpush1.msra.mxu0 %v44
  %664 = vmatprep.subr.mxu0 0.0
  %665 = vmatpush1.msra.mxu0 %v45
  %666 = vmatprep.subr.mxu0 0.0
  %667 = vmatpush1.msra.mxu0 %v46
  %668 = vmatprep.subr.mxu0 0.0
  %669 = vmatpush1.msra.mxu0 0.0
  %670 = vmatprep.subr.mxu0 0.0
  %671 = vmatpush1.msra.mxu0 0.0
  %672 = vmatprep.subr.mxu0 0.0
  %673 = vmatpush1.msra.mxu0 0.0
  %674 = vmatprep.subr.mxu0 0.0
  %675 = vmatpush1.msra.mxu0 0.0
  %676 = vmatprep.subr.mxu0 0.0
  %677 = vmatpush1.msra.mxu0 0.0
  %678 = vmatprep.subr.mxu0 0.0
  %679 = vmatpush1.msra.mxu0 0.0
  %680 = vmatprep.subr.mxu0 0.0
  %681 = vmatpush1.msra.mxu0 0.0
  %682 = vmatprep.subr.mxu0 0.0
  %683 = vmatpush1.msra.mxu0 0.0
  %684 = vmatprep.subr.mxu0 0.0
  %685 = vmatpush1.msra.mxu0 0.0
  %686 = vmatprep.subr.mxu0 0.0
  %687 = vmatpush1.msra.mxu0 0.0
  %688 = vmatprep.subr.mxu0 0.0
  %689 = vmatpush1.msra.mxu0 0.0
  %690 = vmatprep.subr.mxu0 0.0
  %691 = vmatpush1.msra.mxu0 0.0
  %692 = vmatprep.subr.mxu0 0.0
  %693 = vmatpush1.msra.mxu0 0.0
  %694 = vmatprep.subr.mxu0 0.0
  %695 = vmatpush1.msra.mxu0 0.0
  %696 = vmatprep.subr.mxu0 0.0
  %697 = vmatpush1.msra.mxu0 0.0
  %698 = vmatprep.subr.mxu0 0.0
  %699 = vmatpush1.msra.mxu0 0.0
  %700 = vmatprep.subr.mxu0 0.0
  %701 = vmatpush1.msra.mxu0 0.0
  %702 = vmatprep.subr.mxu0 0.0
  %703 = vmatpush1.msra.mxu0 0.0
  %704 = vmatprep.subr.mxu0 0.0
  %705 = vmatpush1.msra.mxu0 0.0
  %706 = vmatprep.subr.mxu0 0.0
  %707 = vmatpush1.msra.mxu0 0.0
  %708 = vmatprep.subr.mxu0 0.0
  %709 = vmatpush1.msra.mxu0 0.0
  %710 = vmatprep.subr.mxu0 0.0
  %711 = vmatpush1.msra.mxu0 0.0
  %712 = vmatprep.subr.mxu0 0.0
  %713 = vmatpush1.msra.mxu0 0.0
  %714 = vmatprep.subr.mxu0 0.0
  %715 = vmatpush1.msra.mxu0 0.0
  %716 = vmatprep.subr.mxu0 0.0
  %717 = vmatpush1.msra.mxu0 0.0
  %718 = vmatprep.subr.mxu0 0.0
  %719 = vmatpush1.msra.mxu0 0.0
  %720 = vmatprep.subr.mxu0 0.0
  %721 = vmatpush1.msra.mxu0 0.0
  %722 = vmatprep.subr.mxu0 0.0
  %723 = vmatpush1.msra.mxu0 0.0
  %724 = vmatprep.mubr.f32.mxu0 0.0
  %725 = vmatmul.mubr.f32.gmra.mrb[0].mxu0 %v658
  %v726 = vpop.f32.mrb[0].mxu0
  %v727 = vadd.f32 0.0, %v726
  %v728 = vpop.f32.mrb[0].mxu0
  %729 = vdwg.mxu0
  %v730 = vadd.f32 %v655, %v727
  %v731 = vxor.u32 %v730, 2147483648
  %v732 = vmul.f32 %v731, 1.442695
  %v733 = vpow.pop %v732
  %v734 = vadd.f32 %v733, 1.0
  %v735 = vrcp.pop %v734
  %v736 = vmul.f32 1.0, %v735
  %v737 = vtanh.pop %v730
  %v738 = vmul.f32 %v736, %v474
  %740 = vrot.lane.b32.xlu0 %v737, 64
  %v741 = vpop.permute.xlu0 %740
  %v743 = vmul.f32 %v736, %v741
  %745 = vrot.lane.b32.xlu0 %v743, 32
  %v746 = vpop.permute.xlu0 %745
  %v748 = vadd.f32 %v738, %v746
  %v749 = vtanh.pop %v748
  %751 = vrot.lane.b32.xlu0 %v749, 64
  %v752 = vpop.permute.xlu0 %751
  %v754 = vmul.f32 %v736, %v752
  %756 = vrot.lane.b32.xlu0 %v754, 32
  %v757 = vpop.permute.xlu0 %756
  %s759 = scalar_lea.vmem [#allocation3], 8
  %760 = vst.msk [vmem:[%s759] sm:$0xff] %vm206, %v757
  %s761 = scalar_lea.vmem [#allocation2], 16
  %v762 = vld [vmem:[%s761] sm:$0xff]
  %763 = vmatprep.subr.mxu0 0.0
  %764 = vmatpush1.msra.mxu0 %v39
  %765 = vmatprep.subr.mxu0 0.0
  %766 = vmatpush1.msra.mxu0 %v40
  %767 = vmatprep.subr.mxu0 0.0
  %768 = vmatpush1.msra.mxu0 %v41
  %769 = vmatprep.subr.mxu0 0.0
  %770 = vmatpush1.msra.mxu0 %v42
  %771 = vmatprep.subr.mxu0 0.0
  %772 = vmatpush1.msra.mxu0 0.0
  %773 = vmatprep.subr.mxu0 0.0
  %774 = vmatpush1.msra.mxu0 0.0
  %775 = vmatprep.subr.mxu0 0.0
  %776 = vmatpush1.msra.mxu0 0.0
  %777 = vmatprep.subr.mxu0 0.0
  %778 = vmatpush1.msra.mxu0 0.0
  %779 = vmatprep.subr.mxu0 0.0
  %780 = vmatpush1.msra.mxu0 0.0
  %781 = vmatprep.subr.mxu0 0.0
  %782 = vmatpush1.msra.mxu0 0.0
  %783 = vmatprep.subr.mxu0 0.0
  %784 = vmatpush1.msra.mxu0 0.0
  %785 = vmatprep.subr.mxu0 0.0
  %786 = vmatpush1.msra.mxu0 0.0
  %787 = vmatprep.subr.mxu0 0.0
  %788 = vmatpush1.msra.mxu0 0.0
  %789 = vmatprep.subr.mxu0 0.0
  %790 = vmatpush1.msra.mxu0 0.0
  %791 = vmatprep.subr.mxu0 0.0
  %792 = vmatpush1.msra.mxu0 0.0
  %793 = vmatprep.subr.mxu0 0.0
  %794 = vmatpush1.msra.mxu0 0.0
  %795 = vmatprep.subr.mxu0 0.0
  %796 = vmatpush1.msra.mxu0 0.0
  %797 = vmatprep.subr.mxu0 0.0
  %798 = vmatpush1.msra.mxu0 0.0
  %799 = vmatprep.subr.mxu0 0.0
  %800 = vmatpush1.msra.mxu0 0.0
  %801 = vmatprep.subr.mxu0 0.0
  %802 = vmatpush1.msra.mxu0 0.0
  %803 = vmatprep.subr.mxu0 0.0
  %804 = vmatpush1.msra.mxu0 0.0
  %805 = vmatprep.subr.mxu0 0.0
  %806 = vmatpush1.msra.mxu0 0.0
  %807 = vmatprep.subr.mxu0 0.0
  %808 = vmatpush1.msra.mxu0 0.0
  %809 = vmatprep.subr.mxu0 0.0
  %810 = vmatpush1.msra.mxu0 0.0
  %811 = vmatprep.subr.mxu0 0.0
  %812 = vmatpush1.msra.mxu0 0.0
  %813 = vmatprep.subr.mxu0 0.0
  %814 = vmatpush1.msra.mxu0 0.0
  %815 = vmatprep.subr.mxu0 0.0
  %816 = vmatpush1.msra.mxu0 0.0
  %817 = vmatprep.subr.mxu0 0.0
  %818 = vmatpush1.msra.mxu0 0.0
  %819 = vmatprep.subr.mxu0 0.0
  %820 = vmatpush1.msra.mxu0 0.0
  %821 = vmatprep.subr.mxu0 0.0
  %822 = vmatpush1.msra.mxu0 0.0
  %823 = vmatprep.subr.mxu0 0.0
  %824 = vmatpush1.msra.mxu0 0.0
  %825 = vmatprep.subr.mxu0 0.0
  %826 = vmatpush1.msra.mxu0 0.0
  %827 = vmatprep.mubr.f32.mxu0 0.0
  %828 = vmatmul.mubr.f32.gmra.mrb[0].mxu0 %v586
  %v829 = vpop.f32.mrb[0].mxu0
  %v830 = vadd.f32 0.0, %v829
  %v831 = vpop.f32.mrb[0].mxu0
  %832 = vdwg.mxu0
  %v833 = vadd.f32 %v762, %v830
  %v834 = vxor.u32 %v833, 2147483648
  %v835 = vmul.f32 %v834, 1.442695
  %v836 = vpow.pop %v835
  %v837 = vadd.f32 %v836, 1.0
  %v838 = vrcp.pop %v837
  %v839 = vmul.f32 1.0, %v838
  %v840 = vtanh.pop %v833
  %v841 = vmul.f32 %v839, %v576
  %843 = vrot.lane.b32.xlu0 %v840, 64
  %v844 = vpop.permute.xlu0 %843
  %v846 = vmul.f32 %v839, %v844
  %848 = vrot.lane.b32.xlu0 %v846, 32
  %v849 = vpop.permute.xlu0 %848
  %v851 = vadd.f32 %v841, %v849
  %v852 = vtanh.pop %v851
  %854 = vrot.lane.b32.xlu0 %v852, 64
  %v855 = vpop.permute.xlu0 %854
  %v857 = vmul.f32 %v839, %v855
  %859 = vrot.lane.b32.xlu0 %v857, 32
  %v860 = vpop.permute.xlu0 %859
  %v861 = vsel %vm206, %v860, 0
  %863 = vmatprep.subr.mxu0 0.0
  %864 = vmatpush1.msra.mxu0 %v35
  %865 = vmatprep.subr.mxu0 0.0
  %866 = vmatpush1.msra.mxu0 %v36
  %867 = vmatprep.subr.mxu0 0.0
  %868 = vmatpush1.msra.mxu0 %v37
  %869 = vmatprep.subr.mxu0 0.0
  %870 = vmatpush1.msra.mxu0 %v38
  %871 = vmatprep.subr.mxu0 0.0
  %872 = vmatpush1.msra.mxu0 0.0
  %873 = vmatprep.subr.mxu0 0.0
  %874 = vmatpush1.msra.mxu0 0.0
  %875 = vmatprep.subr.mxu0 0.0
  %876 = vmatpush1.msra.mxu0 0.0
  %877 = vmatprep.subr.mxu0 0.0
  %878 = vmatpush1.msra.mxu0 0.0
  %879 = vmatprep.subr.mxu0 0.0
  %880 = vmatpush1.msra.mxu0 0.0
  %881 = vmatprep.subr.mxu0 0.0
  %882 = vmatpush1.msra.mxu0 0.0
  %883 = vmatprep.subr.mxu0 0.0
  %884 = vmatpush1.msra.mxu0 0.0
  %885 = vmatprep.subr.mxu0 0.0
  %886 = vmatpush1.msra.mxu0 0.0
  %887 = vmatprep.subr.mxu0 0.0
  %888 = vmatpush1.msra.mxu0 0.0
  %889 = vmatprep.subr.mxu0 0.0
  %890 = vmatpush1.msra.mxu0 0.0
  %891 = vmatprep.subr.mxu0 0.0
  %892 = vmatpush1.msra.mxu0 0.0
  %893 = vmatprep.subr.mxu0 0.0
  %894 = vmatpush1.msra.mxu0 0.0
  %895 = vmatprep.subr.mxu0 0.0
  %896 = vmatpush1.msra.mxu0 0.0
  %897 = vmatprep.subr.mxu0 0.0
  %898 = vmatpush1.msra.mxu0 0.0
  %899 = vmatprep.subr.mxu0 0.0
  %900 = vmatpush1.msra.mxu0 0.0
  %901 = vmatprep.subr.mxu0 0.0
  %902 = vmatpush1.msra.mxu0 0.0
  %903 = vmatprep.subr.mxu0 0.0
  %904 = vmatpush1.msra.mxu0 0.0
  %905 = vmatprep.subr.mxu0 0.0
  %906 = vmatpush1.msra.mxu0 0.0
  %907 = vmatprep.subr.mxu0 0.0
  %908 = vmatpush1.msra.mxu0 0.0
  %909 = vmatprep.subr.mxu0 0.0
  %910 = vmatpush1.msra.mxu0 0.0
  %911 = vmatprep.subr.mxu0 0.0
  %912 = vmatpush1.msra.mxu0 0.0
  %913 = vmatprep.subr.mxu0 0.0
  %914 = vmatpush1.msra.mxu0 0.0
  %915 = vmatprep.subr.mxu0 0.0
  %916 = vmatpush1.msra.mxu0 0.0
  %917 = vmatprep.subr.mxu0 0.0
  %918 = vmatpush1.msra.mxu0 0.0
  %919 = vmatprep.subr.mxu0 0.0
  %920 = vmatpush1.msra.mxu0 0.0
  %921 = vmatprep.subr.mxu0 0.0
  %922 = vmatpush1.msra.mxu0 0.0
  %923 = vmatprep.subr.mxu0 0.0
  %924 = vmatpush1.msra.mxu0 0.0
  %925 = vmatprep.subr.mxu0 0.0
  %926 = vmatpush1.msra.mxu0 0.0
  %927 = vmatprep.mubr.f32.mxu0 0.0
  %928 = vmatmul.mubr.f32.gmra.mrb[0].mxu0 %v861
  %v929 = vpop.f32.mrb[0].mxu0
  %v930 = vadd.f32 %v309, %v929
  %v931 = vpop.f32.mrb[0].mxu0
  %932 = vdwg.mxu0
  %v933 = vsel %vm206, %v757, 0
  %935 = vmatprep.subr.mxu0 0.0
  %936 = vmatpush1.msra.mxu0 %v43
  %937 = vmatprep.subr.mxu0 0.0
  %938 = vmatpush1.msra.mxu0 %v44
  %939 = vmatprep.subr.mxu0 0.0
  %940 = vmatpush1.msra.mxu0 %v45
  %941 = vmatprep.subr.mxu0 0.0
  %942 = vmatpush1.msra.mxu0 %v46
  %943 = vmatprep.subr.mxu0 0.0
  %944 = vmatpush1.msra.mxu0 0.0
  %945 = vmatprep.subr.mxu0 0.0
  %946 = vmatpush1.msra.mxu0 0.0
  %947 = vmatprep.subr.mxu0 0.0
  %948 = vmatpush1.msra.mxu0 0.0
  %949 = vmatprep.subr.mxu0 0.0
  %950 = vmatpush1.msra.mxu0 0.0
  %951 = vmatprep.subr.mxu0 0.0
  %952 = vmatpush1.msra.mxu0 0.0
  %953 = vmatprep.subr.mxu0 0.0
  %954 = vmatpush1.msra.mxu0 0.0
  %955 = vmatprep.subr.mxu0 0.0
  %956 = vmatpush1.msra.mxu0 0.0
  %957 = vmatprep.subr.mxu0 0.0
  %958 = vmatpush1.msra.mxu0 0.0
  %959 = vmatprep.subr.mxu0 0.0
  %960 = vmatpush1.msra.mxu0 0.0
  %961 = vmatprep.subr.mxu0 0.0
  %962 = vmatpush1.msra.mxu0 0.0
  %963 = vmatprep.subr.mxu0 0.0
  %964 = vmatpush1.msra.mxu0 0.0
  %965 = vmatprep.subr.mxu0 0.0
  %966 = vmatpush1.msra.mxu0 0.0
  %967 = vmatprep.subr.mxu0 0.0
  %968 = vmatpush1.msra.mxu0 0.0
  %969 = vmatprep.subr.mxu0 0.0
  %970 = vmatpush1.msra.mxu0 0.0
  %971 = vmatprep.subr.mxu0 0.0
  %972 = vmatpush1.msra.mxu0 0.0
  %973 = vmatprep.subr.mxu0 0.0
  %974 = vmatpush1.msra.mxu0 0.0
  %975 = vmatprep.subr.mxu0 0.0
  %976 = vmatpush1.msra.mxu0 0.0
  %977 = vmatprep.subr.mxu0 0.0
  %978 = vmatpush1.msra.mxu0 0.0
  %979 = vmatprep.subr.mxu0 0.0
  %980 = vmatpush1.msra.mxu0 0.0
  %981 = vmatprep.subr.mxu0 0.0
  %982 = vmatpush1.msra.mxu0 0.0
  %983 = vmatprep.subr.mxu0 0.0
  %984 = vmatpush1.msra.mxu0 0.0
  %985 = vmatprep.subr.mxu0 0.0
  %986 = vmatpush1.msra.mxu0 0.0
  %987 = vmatprep.subr.mxu0 0.0
  %988 = vmatpush1.msra.mxu0 0.0
  %989 = vmatprep.subr.mxu0 0.0
  %990 = vmatpush1.msra.mxu0 0.0
  %991 = vmatprep.subr.mxu0 0.0
  %992 = vmatpush1.msra.mxu0 0.0
  %993 = vmatprep.subr.mxu0 0.0
  %994 = vmatpush1.msra.mxu0 0.0
  %995 = vmatprep.subr.mxu0 0.0
  %996 = vmatpush1.msra.mxu0 0.0
  %997 = vmatprep.subr.mxu0 0.0
  %998 = vmatpush1.msra.mxu0 0.0
  %999 = vmatprep.mubr.f32.mxu0 0.0
  %1000 = vmatmul.mubr.f32.gmra.mrb[0].mxu0 %v933
  %v1001 = vpop.f32.mrb[0].mxu0
  %v1002 = vadd.f32 0.0, %v1001
  %v1003 = vpop.f32.mrb[0].mxu0
  %1004 = vdwg.mxu0
  %v1005 = vadd.f32 %v930, %v1002
  %v1006 = vxor.u32 %v1005, 2147483648
  %v1007 = vmul.f32 %v1006, 1.442695
  %v1008 = vpow.pop %v1007
  %v1009 = vadd.f32 %v1008, 1.0
  %v1010 = vrcp.pop %v1009
  %v1011 = vmul.f32 1.0, %v1010
  %v1012 = vtanh.pop %v1005
  %v1013 = vmul.f32 %v1011, %v748
  %1015 = vrot.lane.b32.xlu0 %v1012, 64
  %v1016 = vpop.permute.xlu0 %1015
  %v1018 = vmul.f32 %v1011, %v1016
  %1020 = vrot.lane.b32.xlu0 %v1018, 32
  %v1021 = vpop.permute.xlu0 %1020
  %v1023 = vadd.f32 %v1013, %v1021
  %v1024 = vtanh.pop %v1023
  %1026 = vrot.lane.b32.xlu0 %v1024, 64
  %v1027 = vpop.permute.xlu0 %1026
  %v1029 = vmul.f32 %v1011, %v1027
  %1031 = vrot.lane.b32.xlu0 %v1029, 32
  %v1032 = vpop.permute.xlu0 %1031
  %s1034 = scalar_lea.vmem [#allocation3], 16
  %1035 = vst.msk [vmem:[%s1034] sm:$0xff] %vm206, %v1032
  %s1036 = scalar_lea.vmem [#allocation2], 24
  %v1037 = vld [vmem:[%s1036] sm:$0xff]
  %1038 = vmatprep.subr.mxu0 0.0
  %1039 = vmatpush1.msra.mxu0 %v39
  %1040 = vmatprep.subr.mxu0 0.0
  %1041 = vmatpush1.msra.mxu0 %v40
  %1042 = vmatprep.subr.mxu0 0.0
  %1043 = vmatpush1.msra.mxu0 %v41
  %1044 = vmatprep.subr.mxu0 0.0
  %1045 = vmatpush1.msra.mxu0 %v42
  %1046 = vmatprep.subr.mxu0 0.0
  %1047 = vmatpush1.msra.mxu0 0.0
  %1048 = vmatprep.subr.mxu0 0.0
  %1049 = vmatpush1.msra.mxu0 0.0
  %1050 = vmatprep.subr.mxu0 0.0
  %1051 = vmatpush1.msra.mxu0 0.0
  %1052 = vmatprep.subr.mxu0 0.0
  %1053 = vmatpush1.msra.mxu0 0.0
  %1054 = vmatprep.subr.mxu0 0.0
  %1055 = vmatpush1.msra.mxu0 0.0
  %1056 = vmatprep.subr.mxu0 0.0
  %1057 = vmatpush1.msra.mxu0 0.0
  %1058 = vmatprep.subr.mxu0 0.0
  %1059 = vmatpush1.msra.mxu0 0.0
  %1060 = vmatprep.subr.mxu0 0.0
  %1061 = vmatpush1.msra.mxu0 0.0
  %1062 = vmatprep.subr.mxu0 0.0
  %1063 = vmatpush1.msra.mxu0 0.0
  %1064 = vmatprep.subr.mxu0 0.0
  %1065 = vmatpush1.msra.mxu0 0.0
  %1066 = vmatprep.subr.mxu0 0.0
  %1067 = vmatpush1.msra.mxu0 0.0
  %1068 = vmatprep.subr.mxu0 0.0
  %1069 = vmatpush1.msra.mxu0 0.0
  %1070 = vmatprep.subr.mxu0 0.0
  %1071 = vmatpush1.msra.mxu0 0.0
  %1072 = vmatprep.subr.mxu0 0.0
  %1073 = vmatpush1.msra.mxu0 0.0
  %1074 = vmatprep.subr.mxu0 0.0
  %1075 = vmatpush1.msra.mxu0 0.0
  %1076 = vmatprep.subr.mxu0 0.0
  %1077 = vmatpush1.msra.mxu0 0.0
  %1078 = vmatprep.subr.mxu0 0.0
  %1079 = vmatpush1.msra.mxu0 0.0
  %1080 = vmatprep.subr.mxu0 0.0
  %1081 = vmatpush1.msra.mxu0 0.0
  %1082 = vmatprep.subr.mxu0 0.0
  %1083 = vmatpush1.msra.mxu0 0.0
  %1084 = vmatprep.subr.mxu0 0.0
  %1085 = vmatpush1.msra.mxu0 0.0
  %1086 = vmatprep.subr.mxu0 0.0
  %1087 = vmatpush1.msra.mxu0 0.0
  %1088 = vmatprep.subr.mxu0 0.0
  %1089 = vmatpush1.msra.mxu0 0.0
  %1090 = vmatprep.subr.mxu0 0.0
  %1091 = vmatpush1.msra.mxu0 0.0
  %1092 = vmatprep.subr.mxu0 0.0
  %1093 = vmatpush1.msra.mxu0 0.0
  %1094 = vmatprep.subr.mxu0 0.0
  %1095 = vmatpush1.msra.mxu0 0.0
  %1096 = vmatprep.subr.mxu0 0.0
  %1097 = vmatpush1.msra.mxu0 0.0
  %1098 = vmatprep.subr.mxu0 0.0
  %1099 = vmatpush1.msra.mxu0 0.0
  %1100 = vmatprep.subr.mxu0 0.0
  %1101 = vmatpush1.msra.mxu0 0.0
  %1102 = vmatprep.mubr.f32.mxu0 0.0
  %1103 = vmatmul.mubr.f32.gmra.mrb[0].mxu0 %v861
  %v1104 = vpop.f32.mrb[0].mxu0
  %v1105 = vadd.f32 0.0, %v1104
  %v1106 = vpop.f32.mrb[0].mxu0
  %1107 = vdwg.mxu0
  %v1108 = vadd.f32 %v1037, %v1105
  %v1109 = vxor.u32 %v1108, 2147483648
  %v1110 = vmul.f32 %v1109, 1.442695
  %v1111 = vpow.pop %v1110
  %v1112 = vadd.f32 %v1111, 1.0
  %v1113 = vrcp.pop %v1112
  %v1114 = vmul.f32 1.0, %v1113
  %v1115 = vtanh.pop %v1108
  %v1116 = vmul.f32 %v1114, %v851
  %1118 = vrot.lane.b32.xlu0 %v1115, 64
  %v1119 = vpop.permute.xlu0 %1118
  %v1121 = vmul.f32 %v1114, %v1119
  %1123 = vrot.lane.b32.xlu0 %v1121, 32
  %v1124 = vpop.permute.xlu0 %1123
  %v1126 = vadd.f32 %v1116, %v1124
  %v1127 = vtanh.pop %v1126
  %1129 = vrot.lane.b32.xlu0 %v1127, 64
  %v1130 = vpop.permute.xlu0 %1129
  %v1132 = vmul.f32 %v1114, %v1130
  %1134 = vrot.lane.b32.xlu0 %v1132, 32
  %v1135 = vpop.permute.xlu0 %1134
  %v1136 = vsel %vm206, %v1135, 0
  %1138 = vmatprep.subr.mxu0 0.0
  %1139 = vmatpush1.msra.mxu0 %v35
  %1140 = vmatprep.subr.mxu0 0.0
  %1141 = vmatpush1.msra.mxu0 %v36
  %1142 = vmatprep.subr.mxu0 0.0
  %1143 = vmatpush1.msra.mxu0 %v37
  %1144 = vmatprep.subr.mxu0 0.0
  %1145 = vmatpush1.msra.mxu0 %v38
  %1146 = vmatprep.subr.mxu0 0.0
  %1147 = vmatpush1.msra.mxu0 0.0
  %1148 = vmatprep.subr.mxu0 0.0
  %1149 = vmatpush1.msra.mxu0 0.0
  %1150 = vmatprep.subr.mxu0 0.0
  %1151 = vmatpush1.msra.mxu0 0.0
  %1152 = vmatprep.subr.mxu0 0.0
  %1153 = vmatpush1.msra.mxu0 0.0
  %1154 = vmatprep.subr.mxu0 0.0
  %1155 = vmatpush1.msra.mxu0 0.0
  %1156 = vmatprep.subr.mxu0 0.0
  %1157 = vmatpush1.msra.mxu0 0.0
  %1158 = vmatprep.subr.mxu0 0.0
  %1159 = vmatpush1.msra.mxu0 0.0
  %1160 = vmatprep.subr.mxu0 0.0
  %1161 = vmatpush1.msra.mxu0 0.0
  %1162 = vmatprep.subr.mxu0 0.0
  %1163 = vmatpush1.msra.mxu0 0.0
  %1164 = vmatprep.subr.mxu0 0.0
  %1165 = vmatpush1.msra.mxu0 0.0
  %1166 = vmatprep.subr.mxu0 0.0
  %1167 = vmatpush1.msra.mxu0 0.0
  %1168 = vmatprep.subr.mxu0 0.0
  %1169 = vmatpush1.msra.mxu0 0.0
  %1170 = vmatprep.subr.mxu0 0.0
  %1171 = vmatpush1.msra.mxu0 0.0
  %1172 = vmatprep.subr.mxu0 0.0
  %1173 = vmatpush1.msra.mxu0 0.0
  %1174 = vmatprep.subr.mxu0 0.0
  %1175 = vmatpush1.msra.mxu0 0.0
  %1176 = vmatprep.subr.mxu0 0.0
  %1177 = vmatpush1.msra.mxu0 0.0
  %1178 = vmatprep.subr.mxu0 0.0
  %1179 = vmatpush1.msra.mxu0 0.0
  %1180 = vmatprep.subr.mxu0 0.0
  %1181 = vmatpush1.msra.mxu0 0.0
  %1182 = vmatprep.subr.mxu0 0.0
  %1183 = vmatpush1.msra.mxu0 0.0
  %1184 = vmatprep.subr.mxu0 0.0
  %1185 = vmatpush1.msra.mxu0 0.0
  %1186 = vmatprep.subr.mxu0 0.0
  %1187 = vmatpush1.msra.mxu0 0.0
  %1188 = vmatprep.subr.mxu0 0.0
  %1189 = vmatpush1.msra.mxu0 0.0
  %1190 = vmatprep.subr.mxu0 0.0
  %1191 = vmatpush1.msra.mxu0 0.0
  %1192 = vmatprep.subr.mxu0 0.0
  %1193 = vmatpush1.msra.mxu0 0.0
  %1194 = vmatprep.subr.mxu0 0.0
  %1195 = vmatpush1.msra.mxu0 0.0
  %1196 = vmatprep.subr.mxu0 0.0
  %1197 = vmatpush1.msra.mxu0 0.0
  %1198 = vmatprep.subr.mxu0 0.0
  %1199 = vmatpush1.msra.mxu0 0.0
  %1200 = vmatprep.subr.mxu0 0.0
  %1201 = vmatpush1.msra.mxu0 0.0
  %1202 = vmatprep.mubr.f32.mxu0 0.0
  %1203 = vmatmul.mubr.f32.gmra.mrb[0].mxu0 %v1136
  %v1204 = vpop.f32.mrb[0].mxu0
  %v1205 = vadd.f32 %v309, %v1204
  %v1206 = vpop.f32.mrb[0].mxu0
  %1207 = vdwg.mxu0
  %v1208 = vsel %vm206, %v1032, 0
  %1210 = vmatprep.subr.mxu0 0.0
  %1211 = vmatpush1.msra.mxu0 %v43
  %1212 = vmatprep.subr.mxu0 0.0
  %1213 = vmatpush1.msra.mxu0 %v44
  %1214 = vmatprep.subr.mxu0 0.0
  %1215 = vmatpush1.msra.mxu0 %v45
  %1216 = vmatprep.subr.mxu0 0.0
  %1217 = vmatpush1.msra.mxu0 %v46
  %1218 = vmatprep.subr.mxu0 0.0
  %1219 = vmatpush1.msra.mxu0 0.0
  %1220 = vmatprep.subr.mxu0 0.0
  %1221 = vmatpush1.msra.mxu0 0.0
  %1222 = vmatprep.subr.mxu0 0.0
  %1223 = vmatpush1.msra.mxu0 0.0
  %1224 = vmatprep.subr.mxu0 0.0
  %1225 = vmatpush1.msra.mxu0 0.0
  %1226 = vmatprep.subr.mxu0 0.0
  %1227 = vmatpush1.msra.mxu0 0.0
  %1228 = vmatprep.subr.mxu0 0.0
  %1229 = vmatpush1.msra.mxu0 0.0
  %1230 = vmatprep.subr.mxu0 0.0
  %1231 = vmatpush1.msra.mxu0 0.0
  %1232 = vmatprep.subr.mxu0 0.0
  %1233 = vmatpush1.msra.mxu0 0.0
  %1234 = vmatprep.subr.mxu0 0.0
  %1235 = vmatpush1.msra.mxu0 0.0
  %1236 = vmatprep.subr.mxu0 0.0
  %1237 = vmatpush1.msra.mxu0 0.0
  %1238 = vmatprep.subr.mxu0 0.0
  %1239 = vmatpush1.msra.mxu0 0.0
  %1240 = vmatprep.subr.mxu0 0.0
  %1241 = vmatpush1.msra.mxu0 0.0
  %1242 = vmatprep.subr.mxu0 0.0
  %1243 = vmatpush1.msra.mxu0 0.0
  %1244 = vmatprep.subr.mxu0 0.0
  %1245 = vmatpush1.msra.mxu0 0.0
  %1246 = vmatprep.subr.mxu0 0.0
  %1247 = vmatpush1.msra.mxu0 0.0
  %1248 = vmatprep.subr.mxu0 0.0
  %1249 = vmatpush1.msra.mxu0 0.0
  %1250 = vmatprep.subr.mxu0 0.0
  %1251 = vmatpush1.msra.mxu0 0.0
  %1252 = vmatprep.subr.mxu0 0.0
  %1253 = vmatpush1.msra.mxu0 0.0
  %1254 = vmatprep.subr.mxu0 0.0
  %1255 = vmatpush1.msra.mxu0 0.0
  %1256 = vmatprep.subr.mxu0 0.0
  %1257 = vmatpush1.msra.mxu0 0.0
  %1258 = vmatprep.subr.mxu0 0.0
  %1259 = vmatpush1.msra.mxu0 0.0
  %1260 = vmatprep.subr.mxu0 0.0
  %1261 = vmatpush1.msra.mxu0 0.0
  %1262 = vmatprep.subr.mxu0 0.0
  %1263 = vmatpush1.msra.mxu0 0.0
  %1264 = vmatprep.subr.mxu0 0.0
  %1265 = vmatpush1.msra.mxu0 0.0
  %1266 = vmatprep.subr.mxu0 0.0
  %1267 = vmatpush1.msra.mxu0 0.0
  %1268 = vmatprep.subr.mxu0 0.0
  %1269 = vmatpush1.msra.mxu0 0.0
  %1270 = vmatprep.subr.mxu0 0.0
  %1271 = vmatpush1.msra.mxu0 0.0
  %1272 = vmatprep.subr.mxu0 0.0
  %1273 = vmatpush1.msra.mxu0 0.0
  %1274 = vmatprep.mubr.f32.mxu0 0.0
  %1275 = vmatmul.mubr.f32.gmra.mrb[0].mxu0 %v1208
  %v1276 = vpop.f32.mrb[0].mxu0
  %v1277 = vadd.f32 0.0, %v1276
  %v1278 = vpop.f32.mrb[0].mxu0
  %1279 = vdwg.mxu0
  %v1280 = vadd.f32 %v1205, %v1277
  %v1281 = vxor.u32 %v1280, 2147483648
  %v1282 = vmul.f32 %v1281, 1.442695
  %v1283 = vpow.pop %v1282
  %v1284 = vadd.f32 %v1283, 1.0
  %v1285 = vrcp.pop %v1284
  %v1286 = vmul.f32 1.0, %v1285
  %v1287 = vtanh.pop %v1280
  %v1288 = vmul.f32 %v1286, %v1023
  %1290 = vrot.lane.b32.xlu0 %v1287, 64
  %v1291 = vpop.permute.xlu0 %1290
  %v1293 = vmul.f32 %v1286, %v1291
  %1295 = vrot.lane.b32.xlu0 %v1293, 32
  %v1296 = vpop.permute.xlu0 %1295
  %v1298 = vadd.f32 %v1288, %v1296
  %v1299 = vtanh.pop %v1298
  %1301 = vrot.lane.b32.xlu0 %v1299, 64
  %v1302 = vpop.permute.xlu0 %1301
  %v1304 = vmul.f32 %v1286, %v1302
  %1306 = vrot.lane.b32.xlu0 %v1304, 32
  %v1307 = vpop.permute.xlu0 %1306
  %s1309 = scalar_lea.vmem [#allocation3], 24
  %1310 = vst.msk [vmem:[%s1309] sm:$0xff] %vm206, %v1307
  %s1311 = scalar_lea.vmem [#allocation2], 32
  %v1312 = vld [vmem:[%s1311] sm:$0xff]
  %1313 = vmatprep.subr.mxu0 0.0
  %1314 = vmatpush1.msra.mxu0 %v39
  %1315 = vmatprep.subr.mxu0 0.0
  %1316 = vmatpush1.msra.mxu0 %v40
  %1317 = vmatprep.subr.mxu0 0.0
  %1318 = vmatpush1.msra.mxu0 %v41
  %1319 = vmatprep.subr.mxu0 0.0
  %1320 = vmatpush1.msra.mxu0 %v42
  %1321 = vmatprep.subr.mxu0 0.0
  %1322 = vmatpush1.msra.mxu0 0.0
  %1323 = vmatprep.subr.mxu0 0.0
  %1324 = vmatpush1.msra.mxu0 0.0
  %1325 = vmatprep.subr.mxu0 0.0
  %1326 = vmatpush1.msra.mxu0 0.0
  %1327 = vmatprep.subr.mxu0 0.0
  %1328 = vmatpush1.msra.mxu0 0.0
  %1329 = vmatprep.subr.mxu0 0.0
  %1330 = vmatpush1.msra.mxu0 0.0
  %1331 = vmatprep.subr.mxu0 0.0
  %1332 = vmatpush1.msra.mxu0 0.0
  %1333 = vmatprep.subr.mxu0 0.0
  %1334 = vmatpush1.msra.mxu0 0.0
  %1335 = vmatprep.subr.mxu0 0.0
  %1336 = vmatpush1.msra.mxu0 0.0
  %1337 = vmatprep.subr.mxu0 0.0
  %1338 = vmatpush1.msra.mxu0 0.0
  %1339 = vmatprep.subr.mxu0 0.0
  %1340 = vmatpush1.msra.mxu0 0.0
  %1341 = vmatprep.subr.mxu0 0.0
  %1342 = vmatpush1.msra.mxu0 0.0
  %1343 = vmatprep.subr.mxu0 0.0
  %1344 = vmatpush1.msra.mxu0 0.0
  %1345 = vmatprep.subr.mxu0 0.0
  %1346 = vmatpush1.msra.mxu0 0.0
  %1347 = vmatprep.subr.mxu0 0.0
  %1348 = vmatpush1.msra.mxu0 0.0
  %1349 = vmatprep.subr.mxu0 0.0
  %1350 = vmatpush1.msra.mxu0 0.0
  %1351 = vmatprep.subr.mxu0 0.0
  %1352 = vmatpush1.msra.mxu0 0.0
  %1353 = vmatprep.subr.mxu0 0.0
  %1354 = vmatpush1.msra.mxu0 0.0
  %1355 = vmatprep.subr.mxu0 0.0
  %1356 = vmatpush1.msra.mxu0 0.0
  %1357 = vmatprep.subr.mxu0 0.0
  %1358 = vmatpush1.msra.mxu0 0.0
  %1359 = vmatprep.subr.mxu0 0.0
  %1360 = vmatpush1.msra.mxu0 0.0
  %1361 = vmatprep.subr.mxu0 0.0
  %1362 = vmatpush1.msra.mxu0 0.0
  %1363 = vmatprep.subr.mxu0 0.0
  %1364 = vmatpush1.msra.mxu0 0.0
  %1365 = vmatprep.subr.mxu0 0.0
  %1366 = vmatpush1.msra.mxu0 0.0
  %1367 = vmatprep.subr.mxu0 0.0
  %1368 = vmatpush1.msra.mxu0 0.0
  %1369 = vmatprep.subr.mxu0 0.0
  %1370 = vmatpush1.msra.mxu0 0.0
  %1371 = vmatprep.subr.mxu0 0.0
  %1372 = vmatpush1.msra.mxu0 0.0
  %1373 = vmatprep.subr.mxu0 0.0
  %1374 = vmatpush1.msra.mxu0 0.0
  %1375 = vmatprep.subr.mxu0 0.0
  %1376 = vmatpush1.msra.mxu0 0.0
  %1377 = vmatprep.mubr.f32.mxu0 0.0
  %1378 = vmatmul.mubr.f32.gmra.mrb[0].mxu0 %v1136
  %v1379 = vpop.f32.mrb[0].mxu0
  %v1380 = vadd.f32 0.0, %v1379
  %v1381 = vpop.f32.mrb[0].mxu0
  %1382 = vdwg.mxu0
  %v1383 = vadd.f32 %v1312, %v1380
  %v1384 = vxor.u32 %v1383, 2147483648
  %v1385 = vmul.f32 %v1384, 1.442695
  %v1386 = vpow.pop %v1385
  %v1387 = vadd.f32 %v1386, 1.0
  %v1388 = vrcp.pop %v1387
  %v1389 = vmul.f32 1.0, %v1388
  %v1390 = vtanh.pop %v1383
  %v1391 = vmul.f32 %v1389, %v1126
  %1393 = vrot.lane.b32.xlu0 %v1390, 64
  %v1394 = vpop.permute.xlu0 %1393
  %v1396 = vmul.f32 %v1389, %v1394
  %1398 = vrot.lane.b32.xlu0 %v1396, 32
  %v1399 = vpop.permute.xlu0 %1398
  %v1401 = vadd.f32 %v1391, %v1399
  %v1402 = vtanh.pop %v1401
  %1404 = vrot.lane.b32.xlu0 %v1402, 64
  %v1405 = vpop.permute.xlu0 %1404
  %v1407 = vmul.f32 %v1389, %v1405
  %1409 = vrot.lane.b32.xlu0 %v1407, 32
  %v1410 = vpop.permute.xlu0 %1409
  %v1411 = vsel %vm206, %v1410, 0
  %1413 = vmatprep.subr.mxu0 0.0
  %1414 = vmatpush1.msra.mxu0 %v35
  %1415 = vmatprep.subr.mxu0 0.0
  %1416 = vmatpush1.msra.mxu0 %v36
  %1417 = vmatprep.subr.mxu0 0.0
  %1418 = vmatpush1.msra.mxu0 %v37
  %1419 = vmatprep.subr.mxu0 0.0
  %1420 = vmatpush1.msra.mxu0 %v38
  %1421 = vmatprep.subr.mxu0 0.0
  %1422 = vmatpush1.msra.mxu0 0.0
  %1423 = vmatprep.subr.mxu0 0.0
  %1424 = vmatpush1.msra.mxu0 0.0
  %1425 = vmatprep.subr.mxu0 0.0
  %1426 = vmatpush1.msra.mxu0 0.0
  %1427 = vmatprep.subr.mxu0 0.0
  %1428 = vmatpush1.msra.mxu0 0.0
  %1429 = vmatprep.subr.mxu0 0.0
  %1430 = vmatpush1.msra.mxu0 0.0
  %1431 = vmatprep.subr.mxu0 0.0
  %1432 = vmatpush1.msra.mxu0 0.0
  %1433 = vmatprep.subr.mxu0 0.0
  %1434 = vmatpush1.msra.mxu0 0.0
  %1435 = vmatprep.subr.mxu0 0.0
  %1436 = vmatpush1.msra.mxu0 0.0
  %1437 = vmatprep.subr.mxu0 0.0
  %1438 = vmatpush1.msra.mxu0 0.0
  %1439 = vmatprep.subr.mxu0 0.0
  %1440 = vmatpush1.msra.mxu0 0.0
  %1441 = vmatprep.subr.mxu0 0.0
  %1442 = vmatpush1.msra.mxu0 0.0
  %1443 = vmatprep.subr.mxu0 0.0
  %1444 = vmatpush1.msra.mxu0 0.0
  %1445 = vmatprep.subr.mxu0 0.0
  %1446 = vmatpush1.msra.mxu0 0.0
  %1447 = vmatprep.subr.mxu0 0.0
  %1448 = vmatpush1.msra.mxu0 0.0
  %1449 = vmatprep.subr.mxu0 0.0
  %1450 = vmatpush1.msra.mxu0 0.0
  %1451 = vmatprep.subr.mxu0 0.0
  %1452 = vmatpush1.msra.mxu0 0.0
  %1453 = vmatprep.subr.mxu0 0.0
  %1454 = vmatpush1.msra.mxu0 0.0
  %1455 = vmatprep.subr.mxu0 0.0
  %1456 = vmatpush1.msra.mxu0 0.0
  %1457 = vmatprep.subr.mxu0 0.0
  %1458 = vmatpush1.msra.mxu0 0.0
  %1459 = vmatprep.subr.mxu0 0.0
  %1460 = vmatpush1.msra.mxu0 0.0
  %1461 = vmatprep.subr.mxu0 0.0
  %1462 = vmatpush1.msra.mxu0 0.0
  %1463 = vmatprep.subr.mxu0 0.0
  %1464 = vmatpush1.msra.mxu0 0.0
  %1465 = vmatprep.subr.mxu0 0.0
  %1466 = vmatpush1.msra.mxu0 0.0
  %1467 = vmatprep.subr.mxu0 0.0
  %1468 = vmatpush1.msra.mxu0 0.0
  %1469 = vmatprep.subr.mxu0 0.0
  %1470 = vmatpush1.msra.mxu0 0.0
  %1471 = vmatprep.subr.mxu0 0.0
  %1472 = vmatpush1.msra.mxu0 0.0
  %1473 = vmatprep.subr.mxu0 0.0
  %1474 = vmatpush1.msra.mxu0 0.0
  %1475 = vmatprep.subr.mxu0 0.0
  %1476 = vmatpush1.msra.mxu0 0.0
  %1477 = vmatprep.mubr.f32.mxu0 0.0
  %1478 = vmatmul.mubr.f32.gmra.mrb[0].mxu0 %v1411
  %v1479 = vpop.f32.mrb[0].mxu0
  %v1480 = vadd.f32 %v309, %v1479
  %v1481 = vpop.f32.mrb[0].mxu0
  %1482 = vdwg.mxu0
  %v1483 = vsel %vm206, %v1307, 0
  %1485 = vmatprep.subr.mxu0 0.0
  %1486 = vmatpush1.msra.mxu0 %v43
  %1487 = vmatprep.subr.mxu0 0.0
  %1488 = vmatpush1.msra.mxu0 %v44
  %1489 = vmatprep.subr.mxu0 0.0
  %1490 = vmatpush1.msra.mxu0 %v45
  %1491 = vmatprep.subr.mxu0 0.0
  %1492 = vmatpush1.msra.mxu0 %v46
  %1493 = vmatprep.subr.mxu0 0.0
  %1494 = vmatpush1.msra.mxu0 0.0
  %1495 = vmatprep.subr.mxu0 0.0
  %1496 = vmatpush1.msra.mxu0 0.0
  %1497 = vmatprep.subr.mxu0 0.0
  %1498 = vmatpush1.msra.mxu0 0.0
  %1499 = vmatprep.subr.mxu0 0.0
  %1500 = vmatpush1.msra.mxu0 0.0
  %1501 = vmatprep.subr.mxu0 0.0
  %1502 = vmatpush1.msra.mxu0 0.0
  %1503 = vmatprep.subr.mxu0 0.0
  %1504 = vmatpush1.msra.mxu0 0.0
  %1505 = vmatprep.subr.mxu0 0.0
  %1506 = vmatpush1.msra.mxu0 0.0
  %1507 = vmatprep.subr.mxu0 0.0
  %1508 = vmatpush1.msra.mxu0 0.0
  %1509 = vmatprep.subr.mxu0 0.0
  %1510 = vmatpush1.msra.mxu0 0.0
  %1511 = vmatprep.subr.mxu0 0.0
  %1512 = vmatpush1.msra.mxu0 0.0
  %1513 = vmatprep.subr.mxu0 0.0
  %1514 = vmatpush1.msra.mxu0 0.0
  %1515 = vmatprep.subr.mxu0 0.0
  %1516 = vmatpush1.msra.mxu0 0.0
  %1517 = vmatprep.subr.mxu0 0.0
  %1518 = vmatpush1.msra.mxu0 0.0
  %1519 = vmatprep.subr.mxu0 0.0
  %1520 = vmatpush1.msra.mxu0 0.0
  %1521 = vmatprep.subr.mxu0 0.0
  %1522 = vmatpush1.msra.mxu0 0.0
  %1523 = vmatprep.subr.mxu0 0.0
  %1524 = vmatpush1.msra.mxu0 0.0
  %1525 = vmatprep.subr.mxu0 0.0
  %1526 = vmatpush1.msra.mxu0 0.0
  %1527 = vmatprep.subr.mxu0 0.0
  %1528 = vmatpush1.msra.mxu0 0.0
  %1529 = vmatprep.subr.mxu0 0.0
  %1530 = vmatpush1.msra.mxu0 0.0
  %1531 = vmatprep.subr.mxu0 0.0
  %1532 = vmatpush1.msra.mxu0 0.0
  %1533 = vmatprep.subr.mxu0 0.0
  %1534 = vmatpush1.msra.mxu0 0.0
  %1535 = vmatprep.subr.mxu0 0.0
  %1536 = vmatpush1.msra.mxu0 0.0
  %1537 = vmatprep.subr.mxu0 0.0
  %1538 = vmatpush1.msra.mxu0 0.0
  %1539 = vmatprep.subr.mxu0 0.0
  %1540 = vmatpush1.msra.mxu0 0.0
  %1541 = vmatprep.subr.mxu0 0.0
  %1542 = vmatpush1.msra.mxu0 0.0
  %1543 = vmatprep.subr.mxu0 0.0
  %1544 = vmatpush1.msra.mxu0 0.0
  %1545 = vmatprep.subr.mxu0 0.0
  %1546 = vmatpush1.msra.mxu0 0.0
  %1547 = vmatprep.subr.mxu0 0.0
  %1548 = vmatpush1.msra.mxu0 0.0
  %1549 = vmatprep.mubr.f32.mxu0 0.0
  %1550 = vmatmul.mubr.f32.gmra.mrb[0].mxu0 %v1483
  %v1551 = vpop.f32.mrb[0].mxu0
  %v1552 = vadd.f32 0.0, %v1551
  %v1553 = vpop.f32.mrb[0].mxu0
  %1554 = vdwg.mxu0
  %v1555 = vadd.f32 %v1480, %v1552
  %v1556 = vxor.u32 %v1555, 2147483648
  %v1557 = vmul.f32 %v1556, 1.442695
  %v1558 = vpow.pop %v1557
  %v1559 = vadd.f32 %v1558, 1.0
  %v1560 = vrcp.pop %v1559
  %v1561 = vmul.f32 1.0, %v1560
  %v1562 = vtanh.pop %v1555
  %v1563 = vmul.f32 %v1561, %v1298
  %1565 = vrot.lane.b32.xlu0 %v1562, 64
  %v1566 = vpop.permute.xlu0 %1565
  %v1568 = vmul.f32 %v1561, %v1566
  %1570 = vrot.lane.b32.xlu0 %v1568, 32
  %v1571 = vpop.permute.xlu0 %1570
  %v1573 = vadd.f32 %v1563, %v1571
  %v1574 = vtanh.pop %v1573
  %1576 = vrot.lane.b32.xlu0 %v1574, 64
  %v1577 = vpop.permute.xlu0 %1576
  %v1579 = vmul.f32 %v1561, %v1577
  %1581 = vrot.lane.b32.xlu0 %v1579, 32
  %v1582 = vpop.permute.xlu0 %1581
  %s1584 = scalar_lea.vmem [#allocation3], 32
  %1585 = vst.msk [vmem:[%s1584] sm:$0xff] %vm206, %v1582
  %s1586 = scalar_lea.vmem [#allocation2], 40
  %v1587 = vld [vmem:[%s1586] sm:$0xff]
  %1588 = vmatprep.subr.mxu0 0.0
  %1589 = vmatpush1.msra.mxu0 %v39
  %1590 = vmatprep.subr.mxu0 0.0
  %1591 = vmatpush1.msra.mxu0 %v40
  %1592 = vmatprep.subr.mxu0 0.0
  %1593 = vmatpush1.msra.mxu0 %v41
  %1594 = vmatprep.subr.mxu0 0.0
  %1595 = vmatpush1.msra.mxu0 %v42
  %1596 = vmatprep.subr.mxu0 0.0
  %1597 = vmatpush1.msra.mxu0 0.0
  %1598 = vmatprep.subr.mxu0 0.0
  %1599 = vmatpush1.msra.mxu0 0.0
  %1600 = vmatprep.subr.mxu0 0.0
  %1601 = vmatpush1.msra.mxu0 0.0
  %1602 = vmatprep.subr.mxu0 0.0
  %1603 = vmatpush1.msra.mxu0 0.0
  %1604 = vmatprep.subr.mxu0 0.0
  %1605 = vmatpush1.msra.mxu0 0.0
  %1606 = vmatprep.subr.mxu0 0.0
  %1607 = vmatpush1.msra.mxu0 0.0
  %1608 = vmatprep.subr.mxu0 0.0
  %1609 = vmatpush1.msra.mxu0 0.0
  %1610 = vmatprep.subr.mxu0 0.0
  %1611 = vmatpush1.msra.mxu0 0.0
  %1612 = vmatprep.subr.mxu0 0.0
  %1613 = vmatpush1.msra.mxu0 0.0
  %1614 = vmatprep.subr.mxu0 0.0
  %1615 = vmatpush1.msra.mxu0 0.0
  %1616 = vmatprep.subr.mxu0 0.0
  %1617 = vmatpush1.msra.mxu0 0.0
  %1618 = vmatprep.subr.mxu0 0.0
  %1619 = vmatpush1.msra.mxu0 0.0
  %1620 = vmatprep.subr.mxu0 0.0
  %1621 = vmatpush1.msra.mxu0 0.0
  %1622 = vmatprep.subr.mxu0 0.0
  %1623 = vmatpush1.msra.mxu0 0.0
  %1624 = vmatprep.subr.mxu0 0.0
  %1625 = vmatpush1.msra.mxu0 0.0
  %1626 = vmatprep.subr.mxu0 0.0
  %1627 = vmatpush1.msra.mxu0 0.0
  %1628 = vmatprep.subr.mxu0 0.0
  %1629 = vmatpush1.msra.mxu0 0.0
  %1630 = vmatprep.subr.mxu0 0.0
  %1631 = vmatpush1.msra.mxu0 0.0
  %1632 = vmatprep.subr.mxu0 0.0
  %1633 = vmatpush1.msra.mxu0 0.0
  %1634 = vmatprep.subr.mxu0 0.0
  %1635 = vmatpush1.msra.mxu0 0.0
  %1636 = vmatprep.subr.mxu0 0.0
  %1637 = vmatpush1.msra.mxu0 0.0
  %1638 = vmatprep.subr.mxu0 0.0
  %1639 = vmatpush1.msra.mxu0 0.0
  %1640 = vmatprep.subr.mxu0 0.0
  %1641 = vmatpush1.msra.mxu0 0.0
  %1642 = vmatprep.subr.mxu0 0.0
  %1643 = vmatpush1.msra.mxu0 0.0
  %1644 = vmatprep.subr.mxu0 0.0
  %1645 = vmatpush1.msra.mxu0 0.0
  %1646 = vmatprep.subr.mxu0 0.0
  %1647 = vmatpush1.msra.mxu0 0.0
  %1648 = vmatprep.subr.mxu0 0.0
  %1649 = vmatpush1.msra.mxu0 0.0
  %1650 = vmatprep.subr.mxu0 0.0
  %1651 = vmatpush1.msra.mxu0 0.0
  %1652 = vmatprep.mubr.f32.mxu0 0.0
  %1653 = vmatmul.mubr.f32.gmra.mrb[0].mxu0 %v1411
  %v1654 = vpop.f32.mrb[0].mxu0
  %v1655 = vadd.f32 0.0, %v1654
  %v1656 = vpop.f32.mrb[0].mxu0
  %1657 = vdwg.mxu0
  %v1658 = vadd.f32 %v1587, %v1655
  %v1659 = vxor.u32 %v1658, 2147483648
  %v1660 = vmul.f32 %v1659, 1.442695
  %v1661 = vpow.pop %v1660
  %v1662 = vadd.f32 %v1661, 1.0
  %v1663 = vrcp.pop %v1662
  %v1664 = vmul.f32 1.0, %v1663
  %v1665 = vtanh.pop %v1658
  %v1666 = vmul.f32 %v1664, %v1401
  %1668 = vrot.lane.b32.xlu0 %v1665, 64
  %v1669 = vpop.permute.xlu0 %1668
  %v1671 = vmul.f32 %v1664, %v1669
  %1673 = vrot.lane.b32.xlu0 %v1671, 32
  %v1674 = vpop.permute.xlu0 %1673
  %v1676 = vadd.f32 %v1666, %v1674
  %v1677 = vtanh.pop %v1676
  %1679 = vrot.lane.b32.xlu0 %v1677, 64
  %v1680 = vpop.permute.xlu0 %1679
  %v1682 = vmul.f32 %v1664, %v1680
  %1684 = vrot.lane.b32.xlu0 %v1682, 32
  %v1685 = vpop.permute.xlu0 %1684
  %v1686 = vsel %vm206, %v1685, 0
  %1688 = vmatprep.subr.mxu0 0.0
  %1689 = vmatpush1.msra.mxu0 %v35
  %1690 = vmatprep.subr.mxu0 0.0
  %1691 = vmatpush1.msra.mxu0 %v36
  %1692 = vmatprep.subr.mxu0 0.0
  %1693 = vmatpush1.msra.mxu0 %v37
  %1694 = vmatprep.subr.mxu0 0.0
  %1695 = vmatpush1.msra.mxu0 %v38
  %1696 = vmatprep.subr.mxu0 0.0
  %1697 = vmatpush1.msra.mxu0 0.0
  %1698 = vmatprep.subr.mxu0 0.0
  %1699 = vmatpush1.msra.mxu0 0.0
  %1700 = vmatprep.subr.mxu0 0.0
  %1701 = vmatpush1.msra.mxu0 0.0
  %1702 = vmatprep.subr.mxu0 0.0
  %1703 = vmatpush1.msra.mxu0 0.0
  %1704 = vmatprep.subr.mxu0 0.0
  %1705 = vmatpush1.msra.mxu0 0.0
  %1706 = vmatprep.subr.mxu0 0.0
  %1707 = vmatpush1.msra.mxu0 0.0
  %1708 = vmatprep.subr.mxu0 0.0
  %1709 = vmatpush1.msra.mxu0 0.0
  %1710 = vmatprep.subr.mxu0 0.0
  %1711 = vmatpush1.msra.mxu0 0.0
  %1712 = vmatprep.subr.mxu0 0.0
  %1713 = vmatpush1.msra.mxu0 0.0
  %1714 = vmatprep.subr.mxu0 0.0
  %1715 = vmatpush1.msra.mxu0 0.0
  %1716 = vmatprep.subr.mxu0 0.0
  %1717 = vmatpush1.msra.mxu0 0.0
  %1718 = vmatprep.subr.mxu0 0.0
  %1719 = vmatpush1.msra.mxu0 0.0
  %1720 = vmatprep.subr.mxu0 0.0
  %1721 = vmatpush1.msra.mxu0 0.0
  %1722 = vmatprep.subr.mxu0 0.0
  %1723 = vmatpush1.msra.mxu0 0.0
  %1724 = vmatprep.subr.mxu0 0.0
  %1725 = vmatpush1.msra.mxu0 0.0
  %1726 = vmatprep.subr.mxu0 0.0
  %1727 = vmatpush1.msra.mxu0 0.0
  %1728 = vmatprep.subr.mxu0 0.0
  %1729 = vmatpush1.msra.mxu0 0.0
  %1730 = vmatprep.subr.mxu0 0.0
  %1731 = vmatpush1.msra.mxu0 0.0
  %1732 = vmatprep.subr.mxu0 0.0
  %1733 = vmatpush1.msra.mxu0 0.0
  %1734 = vmatprep.subr.mxu0 0.0
  %1735 = vmatpush1.msra.mxu0 0.0
  %1736 = vmatprep.subr.mxu0 0.0
  %1737 = vmatpush1.msra.mxu0 0.0
  %1738 = vmatprep.subr.mxu0 0.0
  %1739 = vmatpush1.msra.mxu0 0.0
  %1740 = vmatprep.subr.mxu0 0.0
  %1741 = vmatpush1.msra.mxu0 0.0
  %1742 = vmatprep.subr.mxu0 0.0
  %1743 = vmatpush1.msra.mxu0 0.0
  %1744 = vmatprep.subr.mxu0 0.0
  %1745 = vmatpush1.msra.mxu0 0.0
  %1746 = vmatprep.subr.mxu0 0.0
  %1747 = vmatpush1.msra.mxu0 0.0
  %1748 = vmatprep.subr.mxu0 0.0
  %1749 = vmatpush1.msra.mxu0 0.0
  %1750 = vmatprep.subr.mxu0 0.0
  %1751 = vmatpush1.msra.mxu0 0.0
  %1752 = vmatprep.mubr.f32.mxu0 0.0
  %1753 = vmatmul.mubr.f32.gmra.mrb[0].mxu0 %v1686
  %v1754 = vpop.f32.mrb[0].mxu0
  %v1755 = vadd.f32 %v309, %v1754
  %v1756 = vpop.f32.mrb[0].mxu0
  %1757 = vdwg.mxu0
  %v1758 = vsel %vm206, %v1582, 0
  %1760 = vmatprep.subr.mxu0 0.0
  %1761 = vmatpush1.msra.mxu0 %v43
  %1762 = vmatprep.subr.mxu0 0.0
  %1763 = vmatpush1.msra.mxu0 %v44
  %1764 = vmatprep.subr.mxu0 0.0
  %1765 = vmatpush1.msra.mxu0 %v45
  %1766 = vmatprep.subr.mxu0 0.0
  %1767 = vmatpush1.msra.mxu0 %v46
  %1768 = vmatprep.subr.mxu0 0.0
  %1769 = vmatpush1.msra.mxu0 0.0
  %1770 = vmatprep.subr.mxu0 0.0
  %1771 = vmatpush1.msra.mxu0 0.0
  %1772 = vmatprep.subr.mxu0 0.0
  %1773 = vmatpush1.msra.mxu0 0.0
  %1774 = vmatprep.subr.mxu0 0.0
  %1775 = vmatpush1.msra.mxu0 0.0
  %1776 = vmatprep.subr.mxu0 0.0
  %1777 = vmatpush1.msra.mxu0 0.0
  %1778 = vmatprep.subr.mxu0 0.0
  %1779 = vmatpush1.msra.mxu0 0.0
  %1780 = vmatprep.subr.mxu0 0.0
  %1781 = vmatpush1.msra.mxu0 0.0
  %1782 = vmatprep.subr.mxu0 0.0
  %1783 = vmatpush1.msra.mxu0 0.0
  %1784 = vmatprep.subr.mxu0 0.0
  %1785 = vmatpush1.msra.mxu0 0.0
  %1786 = vmatprep.subr.mxu0 0.0
  %1787 = vmatpush1.msra.mxu0 0.0
  %1788 = vmatprep.subr.mxu0 0.0
  %1789 = vmatpush1.msra.mxu0 0.0
  %1790 = vmatprep.subr.mxu0 0.0
  %1791 = vmatpush1.msra.mxu0 0.0
  %1792 = vmatprep.subr.mxu0 0.0
  %1793 = vmatpush1.msra.mxu0 0.0
  %1794 = vmatprep.subr.mxu0 0.0
  %1795 = vmatpush1.msra.mxu0 0.0
  %1796 = vmatprep.subr.mxu0 0.0
  %1797 = vmatpush1.msra.mxu0 0.0
  %1798 = vmatprep.subr.mxu0 0.0
  %1799 = vmatpush1.msra.mxu0 0.0
  %1800 = vmatprep.subr.mxu0 0.0
  %1801 = vmatpush1.msra.mxu0 0.0
  %1802 = vmatprep.subr.mxu0 0.0
  %1803 = vmatpush1.msra.mxu0 0.0
  %1804 = vmatprep.subr.mxu0 0.0
  %1805 = vmatpush1.msra.mxu0 0.0
  %1806 = vmatprep.subr.mxu0 0.0
  %1807 = vmatpush1.msra.mxu0 0.0
  %1808 = vmatprep.subr.mxu0 0.0
  %1809 = vmatpush1.msra.mxu0 0.0
  %1810 = vmatprep.subr.mxu0 0.0
  %1811 = vmatpush1.msra.mxu0 0.0
  %1812 = vmatprep.subr.mxu0 0.0
  %1813 = vmatpush1.msra.mxu0 0.0
  %1814 = vmatprep.subr.mxu0 0.0
  %1815 = vmatpush1.msra.mxu0 0.0
  %1816 = vmatprep.subr.mxu0 0.0
  %1817 = vmatpush1.msra.mxu0 0.0
  %1818 = vmatprep.subr.mxu0 0.0
  %1819 = vmatpush1.msra.mxu0 0.0
  %1820 = vmatprep.subr.mxu0 0.0
  %1821 = vmatpush1.msra.mxu0 0.0
  %1822 = vmatprep.subr.mxu0 0.0
  %1823 = vmatpush1.msra.mxu0 0.0
  %1824 = vmatprep.mubr.f32.mxu0 0.0
  %1825 = vmatmul.mubr.f32.gmra.mrb[0].mxu0 %v1758
  %v1826 = vpop.f32.mrb[0].mxu0
  %v1827 = vadd.f32 0.0, %v1826
  %v1828 = vpop.f32.mrb[0].mxu0
  %1829 = vdwg.mxu0
  %v1830 = vadd.f32 %v1755, %v1827
  %v1831 = vxor.u32 %v1830, 2147483648
  %v1832 = vmul.f32 %v1831, 1.442695
  %v1833 = vpow.pop %v1832
  %v1834 = vadd.f32 %v1833, 1.0
  %v1835 = vrcp.pop %v1834
  %v1836 = vmul.f32 1.0, %v1835
  %v1837 = vtanh.pop %v1830
  %v1838 = vmul.f32 %v1836, %v1573
  %1840 = vrot.lane.b32.xlu0 %v1837, 64
  %v1841 = vpop.permute.xlu0 %1840
  %v1843 = vmul.f32 %v1836, %v1841
  %1845 = vrot.lane.b32.xlu0 %v1843, 32
  %v1846 = vpop.permute.xlu0 %1845
  %v1848 = vadd.f32 %v1838, %v1846
  %v1849 = vtanh.pop %v1848
  %1851 = vrot.lane.b32.xlu0 %v1849, 64
  %v1852 = vpop.permute.xlu0 %1851
  %v1854 = vmul.f32 %v1836, %v1852
  %1856 = vrot.lane.b32.xlu0 %v1854, 32
  %v1857 = vpop.permute.xlu0 %1856
  %s1859 = scalar_lea.vmem [#allocation3], 40
  %1860 = vst.msk [vmem:[%s1859] sm:$0xff] %vm206, %v1857
  %s1861 = scalar_lea.vmem [#allocation2], 48
  %v1862 = vld [vmem:[%s1861] sm:$0xff]
  %1863 = vmatprep.subr.mxu0 0.0
  %1864 = vmatpush1.msra.mxu0 %v39
  %1865 = vmatprep.subr.mxu0 0.0
  %1866 = vmatpush1.msra.mxu0 %v40
  %1867 = vmatprep.subr.mxu0 0.0
  %1868 = vmatpush1.msra.mxu0 %v41
  %1869 = vmatprep.subr.mxu0 0.0
  %1870 = vmatpush1.msra.mxu0 %v42
  %1871 = vmatprep.subr.mxu0 0.0
  %1872 = vmatpush1.msra.mxu0 0.0
  %1873 = vmatprep.subr.mxu0 0.0
  %1874 = vmatpush1.msra.mxu0 0.0
  %1875 = vmatprep.subr.mxu0 0.0
  %1876 = vmatpush1.msra.mxu0 0.0
  %1877 = vmatprep.subr.mxu0 0.0
  %1878 = vmatpush1.msra.mxu0 0.0
  %1879 = vmatprep.subr.mxu0 0.0
  %1880 = vmatpush1.msra.mxu0 0.0
  %1881 = vmatprep.subr.mxu0 0.0
  %1882 = vmatpush1.msra.mxu0 0.0
  %1883 = vmatprep.subr.mxu0 0.0
  %1884 = vmatpush1.msra.mxu0 0.0
  %1885 = vmatprep.subr.mxu0 0.0
  %1886 = vmatpush1.msra.mxu0 0.0
  %1887 = vmatprep.subr.mxu0 0.0
  %1888 = vmatpush1.msra.mxu0 0.0
  %1889 = vmatprep.subr.mxu0 0.0
  %1890 = vmatpush1.msra.mxu0 0.0
  %1891 = vmatprep.subr.mxu0 0.0
  %1892 = vmatpush1.msra.mxu0 0.0
  %1893 = vmatprep.subr.mxu0 0.0
  %1894 = vmatpush1.msra.mxu0 0.0
  %1895 = vmatprep.subr.mxu0 0.0
  %1896 = vmatpush1.msra.mxu0 0.0
  %1897 = vmatprep.subr.mxu0 0.0
  %1898 = vmatpush1.msra.mxu0 0.0
  %1899 = vmatprep.subr.mxu0 0.0
  %1900 = vmatpush1.msra.mxu0 0.0
  %1901 = vmatprep.subr.mxu0 0.0
  %1902 = vmatpush1.msra.mxu0 0.0
  %1903 = vmatprep.subr.mxu0 0.0
  %1904 = vmatpush1.msra.mxu0 0.0
  %1905 = vmatprep.subr.mxu0 0.0
  %1906 = vmatpush1.msra.mxu0 0.0
  %1907 = vmatprep.subr.mxu0 0.0
  %1908 = vmatpush1.msra.mxu0 0.0
  %1909 = vmatprep.subr.mxu0 0.0
  %1910 = vmatpush1.msra.mxu0 0.0
  %1911 = vmatprep.subr.mxu0 0.0
  %1912 = vmatpush1.msra.mxu0 0.0
  %1913 = vmatprep.subr.mxu0 0.0
  %1914 = vmatpush1.msra.mxu0 0.0
  %1915 = vmatprep.subr.mxu0 0.0
  %1916 = vmatpush1.msra.mxu0 0.0
  %1917 = vmatprep.subr.mxu0 0.0
  %1918 = vmatpush1.msra.mxu0 0.0
  %1919 = vmatprep.subr.mxu0 0.0
  %1920 = vmatpush1.msra.mxu0 0.0
  %1921 = vmatprep.subr.mxu0 0.0
  %1922 = vmatpush1.msra.mxu0 0.0
  %1923 = vmatprep.subr.mxu0 0.0
  %1924 = vmatpush1.msra.mxu0 0.0
  %1925 = vmatprep.subr.mxu0 0.0
  %1926 = vmatpush1.msra.mxu0 0.0
  %1927 = vmatprep.mubr.f32.mxu0 0.0
  %1928 = vmatmul.mubr.f32.gmra.mrb[0].mxu0 %v1686
  %v1929 = vpop.f32.mrb[0].mxu0
  %v1930 = vadd.f32 0.0, %v1929
  %v1931 = vpop.f32.mrb[0].mxu0
  %1932 = vdwg.mxu0
  %v1933 = vadd.f32 %v1862, %v1930
  %v1934 = vxor.u32 %v1933, 2147483648
  %v1935 = vmul.f32 %v1934, 1.442695
  %v1936 = vpow.pop %v1935
  %v1937 = vadd.f32 %v1936, 1.0
  %v1938 = vrcp.pop %v1937
  %v1939 = vmul.f32 1.0, %v1938
  %v1940 = vtanh.pop %v1933
  %v1941 = vmul.f32 %v1939, %v1676
  %1943 = vrot.lane.b32.xlu0 %v1940, 64
  %v1944 = vpop.permute.xlu0 %1943
  %v1946 = vmul.f32 %v1939, %v1944
  %1948 = vrot.lane.b32.xlu0 %v1946, 32
  %v1949 = vpop.permute.xlu0 %1948
  %v1951 = vadd.f32 %v1941, %v1949
  %v1952 = vtanh.pop %v1951
  %1954 = vrot.lane.b32.xlu0 %v1952, 64
  %v1955 = vpop.permute.xlu0 %1954
  %v1957 = vmul.f32 %v1939, %v1955
  %1959 = vrot.lane.b32.xlu0 %v1957, 32
  %v1960 = vpop.permute.xlu0 %1959
  %v1961 = vsel %vm206, %v1960, 0
  %1963 = vmatprep.subr.mxu0 0.0
  %1964 = vmatpush1.msra.mxu0 %v35
  %1965 = vmatprep.subr.mxu0 0.0
  %1966 = vmatpush1.msra.mxu0 %v36
  %1967 = vmatprep.subr.mxu0 0.0
  %1968 = vmatpush1.msra.mxu0 %v37
  %1969 = vmatprep.subr.mxu0 0.0
  %1970 = vmatpush1.msra.mxu0 %v38
  %1971 = vmatprep.subr.mxu0 0.0
  %1972 = vmatpush1.msra.mxu0 0.0
  %1973 = vmatprep.subr.mxu0 0.0
  %1974 = vmatpush1.msra.mxu0 0.0
  %1975 = vmatprep.subr.mxu0 0.0
  %1976 = vmatpush1.msra.mxu0 0.0
  %1977 = vmatprep.subr.mxu0 0.0
  %1978 = vmatpush1.msra.mxu0 0.0
  %1979 = vmatprep.subr.mxu0 0.0
  %1980 = vmatpush1.msra.mxu0 0.0
  %1981 = vmatprep.subr.mxu0 0.0
  %1982 = vmatpush1.msra.mxu0 0.0
  %1983 = vmatprep.subr.mxu0 0.0
  %1984 = vmatpush1.msra.mxu0 0.0
  %1985 = vmatprep.subr.mxu0 0.0
  %1986 = vmatpush1.msra.mxu0 0.0
  %1987 = vmatprep.subr.mxu0 0.0
  %1988 = vmatpush1.msra.mxu0 0.0
  %1989 = vmatprep.subr.mxu0 0.0
  %1990 = vmatpush1.msra.mxu0 0.0
  %1991 = vmatprep.subr.mxu0 0.0
  %1992 = vmatpush1.msra.mxu0 0.0
  %1993 = vmatprep.subr.mxu0 0.0
  %1994 = vmatpush1.msra.mxu0 0.0
  %1995 = vmatprep.subr.mxu0 0.0
  %1996 = vmatpush1.msra.mxu0 0.0
  %1997 = vmatprep.subr.mxu0 0.0
  %1998 = vmatpush1.msra.mxu0 0.0
  %1999 = vmatprep.subr.mxu0 0.0
  %2000 = vmatpush1.msra.mxu0 0.0
  %2001 = vmatprep.subr.mxu0 0.0
  %2002 = vmatpush1.msra.mxu0 0.0
  %2003 = vmatprep.subr.mxu0 0.0
  %2004 = vmatpush1.msra.mxu0 0.0
  %2005 = vmatprep.subr.mxu0 0.0
  %2006 = vmatpush1.msra.mxu0 0.0
  %2007 = vmatprep.subr.mxu0 0.0
  %2008 = vmatpush1.msra.mxu0 0.0
  %2009 = vmatprep.subr.mxu0 0.0
  %2010 = vmatpush1.msra.mxu0 0.0
  %2011 = vmatprep.subr.mxu0 0.0
  %2012 = vmatpush1.msra.mxu0 0.0
  %2013 = vmatprep.subr.mxu0 0.0
  %2014 = vmatpush1.msra.mxu0 0.0
  %2015 = vmatprep.subr.mxu0 0.0
  %2016 = vmatpush1.msra.mxu0 0.0
  %2017 = vmatprep.subr.mxu0 0.0
  %2018 = vmatpush1.msra.mxu0 0.0
  %2019 = vmatprep.subr.mxu0 0.0
  %2020 = vmatpush1.msra.mxu0 0.0
  %2021 = vmatprep.subr.mxu0 0.0
  %2022 = vmatpush1.msra.mxu0 0.0
  %2023 = vmatprep.subr.mxu0 0.0
  %2024 = vmatpush1.msra.mxu0 0.0
  %2025 = vmatprep.subr.mxu0 0.0
  %2026 = vmatpush1.msra.mxu0 0.0
  %2027 = vmatprep.mubr.f32.mxu0 0.0
  %2028 = vmatmul.mubr.f32.gmra.mrb[0].mxu0 %v1961
  %v2029 = vpop.f32.mrb[0].mxu0
  %v2030 = vadd.f32 %v309, %v2029
  %v2031 = vpop.f32.mrb[0].mxu0
  %2032 = vdwg.mxu0
  %v2033 = vsel %vm206, %v1857, 0
  %2035 = vmatprep.subr.mxu0 0.0
  %2036 = vmatpush1.msra.mxu0 %v43
  %2037 = vmatprep.subr.mxu0 0.0
  %2038 = vmatpush1.msra.mxu0 %v44
  %2039 = vmatprep.subr.mxu0 0.0
  %2040 = vmatpush1.msra.mxu0 %v45
  %2041 = vmatprep.subr.mxu0 0.0
  %2042 = vmatpush1.msra.mxu0 %v46
  %2043 = vmatprep.subr.mxu0 0.0
  %2044 = vmatpush1.msra.mxu0 0.0
  %2045 = vmatprep.subr.mxu0 0.0
  %2046 = vmatpush1.msra.mxu0 0.0
  %2047 = vmatprep.subr.mxu0 0.0
  %2048 = vmatpush1.msra.mxu0 0.0
  %2049 = vmatprep.subr.mxu0 0.0
  %2050 = vmatpush1.msra.mxu0 0.0
  %2051 = vmatprep.subr.mxu0 0.0
  %2052 = vmatpush1.msra.mxu0 0.0
  %2053 = vmatprep.subr.mxu0 0.0
  %2054 = vmatpush1.msra.mxu0 0.0
  %2055 = vmatprep.subr.mxu0 0.0
  %2056 = vmatpush1.msra.mxu0 0.0
  %2057 = vmatprep.subr.mxu0 0.0
  %2058 = vmatpush1.msra.mxu0 0.0
  %2059 = vmatprep.subr.mxu0 0.0
  %2060 = vmatpush1.msra.mxu0 0.0
  %2061 = vmatprep.subr.mxu0 0.0
  %2062 = vmatpush1.msra.mxu0 0.0
  %2063 = vmatprep.subr.mxu0 0.0
  %2064 = vmatpush1.msra.mxu0 0.0
  %2065 = vmatprep.subr.mxu0 0.0
  %2066 = vmatpush1.msra.mxu0 0.0
  %2067 = vmatprep.subr.mxu0 0.0
  %2068 = vmatpush1.msra.mxu0 0.0
  %2069 = vmatprep.subr.mxu0 0.0
  %2070 = vmatpush1.msra.mxu0 0.0
  %2071 = vmatprep.subr.mxu0 0.0
  %2072 = vmatpush1.msra.mxu0 0.0
  %2073 = vmatprep.subr.mxu0 0.0
  %2074 = vmatpush1.msra.mxu0 0.0
  %2075 = vmatprep.subr.mxu0 0.0
  %2076 = vmatpush1.msra.mxu0 0.0
  %2077 = vmatprep.subr.mxu0 0.0
  %2078 = vmatpush1.msra.mxu0 0.0
  %2079 = vmatprep.subr.mxu0 0.0
  %2080 = vmatpush1.msra.mxu0 0.0
  %2081 = vmatprep.subr.mxu0 0.0
  %2082 = vmatpush1.msra.mxu0 0.0
  %2083 = vmatprep.subr.mxu0 0.0
  %2084 = vmatpush1.msra.mxu0 0.0
  %2085 = vmatprep.subr.mxu0 0.0
  %2086 = vmatpush1.msra.mxu0 0.0
  %2087 = vmatprep.subr.mxu0 0.0
  %2088 = vmatpush1.msra.mxu0 0.0
  %2089 = vmatprep.subr.mxu0 0.0
  %2090 = vmatpush1.msra.mxu0 0.0
  %2091 = vmatprep.subr.mxu0 0.0
  %2092 = vmatpush1.msra.mxu0 0.0
  %2093 = vmatprep.subr.mxu0 0.0
  %2094 = vmatpush1.msra.mxu0 0.0
  %2095 = vmatprep.subr.mxu0 0.0
  %2096 = vmatpush1.msra.mxu0 0.0
  %2097 = vmatprep.subr.mxu0 0.0
  %2098 = vmatpush1.msra.mxu0 0.0
  %2099 = vmatprep.mubr.f32.mxu0 0.0
  %2100 = vmatmul.mubr.f32.gmra.mrb[0].mxu0 %v2033
  %v2101 = vpop.f32.mrb[0].mxu0
  %v2102 = vadd.f32 0.0, %v2101
  %v2103 = vpop.f32.mrb[0].mxu0
  %2104 = vdwg.mxu0
  %v2105 = vadd.f32 %v2030, %v2102
  %v2106 = vxor.u32 %v2105, 2147483648
  %v2107 = vmul.f32 %v2106, 1.442695
  %v2108 = vpow.pop %v2107
  %v2109 = vadd.f32 %v2108, 1.0
  %v2110 = vrcp.pop %v2109
  %v2111 = vmul.f32 1.0, %v2110
  %v2112 = vtanh.pop %v2105
  %v2113 = vmul.f32 %v2111, %v1848
  %2115 = vrot.lane.b32.xlu0 %v2112, 64
  %v2116 = vpop.permute.xlu0 %2115
  %v2118 = vmul.f32 %v2111, %v2116
  %2120 = vrot.lane.b32.xlu0 %v2118, 32
  %v2121 = vpop.permute.xlu0 %2120
  %v2123 = vadd.f32 %v2113, %v2121
  %v2124 = vtanh.pop %v2123
  %2126 = vrot.lane.b32.xlu0 %v2124, 64
  %v2127 = vpop.permute.xlu0 %2126
  %v2129 = vmul.f32 %v2111, %v2127
  %2131 = vrot.lane.b32.xlu0 %v2129, 32
  %v2132 = vpop.permute.xlu0 %2131
  %s2134 = scalar_lea.vmem [#allocation3], 48
  %2135 = vst.msk [vmem:[%s2134] sm:$0xff] %vm206, %v2132
  %s2136 = scalar_lea.vmem [#allocation2], 56
  %v2137 = vld [vmem:[%s2136] sm:$0xff]
  %2138 = vmatprep.subr.mxu0 0.0
  %2139 = vmatpush1.msra.mxu0 %v39
  %2140 = vmatprep.subr.mxu0 0.0
  %2141 = vmatpush1.msra.mxu0 %v40
  %2142 = vmatprep.subr.mxu0 0.0
  %2143 = vmatpush1.msra.mxu0 %v41
  %2144 = vmatprep.subr.mxu0 0.0
  %2145 = vmatpush1.msra.mxu0 %v42
  %2146 = vmatprep.subr.mxu0 0.0
  %2147 = vmatpush1.msra.mxu0 0.0
  %2148 = vmatprep.subr.mxu0 0.0
  %2149 = vmatpush1.msra.mxu0 0.0
  %2150 = vmatprep.subr.mxu0 0.0
  %2151 = vmatpush1.msra.mxu0 0.0
  %2152 = vmatprep.subr.mxu0 0.0
  %2153 = vmatpush1.msra.mxu0 0.0
  %2154 = vmatprep.subr.mxu0 0.0
  %2155 = vmatpush1.msra.mxu0 0.0
  %2156 = vmatprep.subr.mxu0 0.0
  %2157 = vmatpush1.msra.mxu0 0.0
  %2158 = vmatprep.subr.mxu0 0.0
  %2159 = vmatpush1.msra.mxu0 0.0
  %2160 = vmatprep.subr.mxu0 0.0
  %2161 = vmatpush1.msra.mxu0 0.0
  %2162 = vmatprep.subr.mxu0 0.0
  %2163 = vmatpush1.msra.mxu0 0.0
  %2164 = vmatprep.subr.mxu0 0.0
  %2165 = vmatpush1.msra.mxu0 0.0
  %2166 = vmatprep.subr.mxu0 0.0
  %2167 = vmatpush1.msra.mxu0 0.0
  %2168 = vmatprep.subr.mxu0 0.0
  %2169 = vmatpush1.msra.mxu0 0.0
  %2170 = vmatprep.subr.mxu0 0.0
  %2171 = vmatpush1.msra.mxu0 0.0
  %2172 = vmatprep.subr.mxu0 0.0
  %2173 = vmatpush1.msra.mxu0 0.0
  %2174 = vmatprep.subr.mxu0 0.0
  %2175 = vmatpush1.msra.mxu0 0.0
  %2176 = vmatprep.subr.mxu0 0.0
  %2177 = vmatpush1.msra.mxu0 0.0
  %2178 = vmatprep.subr.mxu0 0.0
  %2179 = vmatpush1.msra.mxu0 0.0
  %2180 = vmatprep.subr.mxu0 0.0
  %2181 = vmatpush1.msra.mxu0 0.0
  %2182 = vmatprep.subr.mxu0 0.0
  %2183 = vmatpush1.msra.mxu0 0.0
  %2184 = vmatprep.subr.mxu0 0.0
  %2185 = vmatpush1.msra.mxu0 0.0
  %2186 = vmatprep.subr.mxu0 0.0
  %2187 = vmatpush1.msra.mxu0 0.0
  %2188 = vmatprep.subr.mxu0 0.0
  %2189 = vmatpush1.msra.mxu0 0.0
  %2190 = vmatprep.subr.mxu0 0.0
  %2191 = vmatpush1.msra.mxu0 0.0
  %2192 = vmatprep.subr.mxu0 0.0
  %2193 = vmatpush1.msra.mxu0 0.0
  %2194 = vmatprep.subr.mxu0 0.0
  %2195 = vmatpush1.msra.mxu0 0.0
  %2196 = vmatprep.subr.mxu0 0.0
  %2197 = vmatpush1.msra.mxu0 0.0
  %2198 = vmatprep.subr.mxu0 0.0
  %2199 = vmatpush1.msra.mxu0 0.0
  %2200 = vmatprep.subr.mxu0 0.0
  %2201 = vmatpush1.msra.mxu0 0.0
  %2202 = vmatprep.mubr.f32.mxu0 0.0
  %2203 = vmatmul.mubr.f32.gmra.mrb[0].mxu0 %v1961
  %v2204 = vpop.f32.mrb[0].mxu0
  %v2205 = vadd.f32 0.0, %v2204
  %v2206 = vpop.f32.mrb[0].mxu0
  %2207 = vdwg.mxu0
  %v2208 = vadd.f32 %v2137, %v2205
  %v2209 = vxor.u32 %v2208, 2147483648
  %v2210 = vmul.f32 %v2209, 1.442695
  %v2211 = vpow.pop %v2210
  %v2212 = vadd.f32 %v2211, 1.0
  %v2213 = vrcp.pop %v2212
  %v2214 = vmul.f32 1.0, %v2213
  %v2215 = vtanh.pop %v2208
  %v2216 = vmul.f32 %v2214, %v1951
  %2218 = vrot.lane.b32.xlu0 %v2215, 64
  %v2219 = vpop.permute.xlu0 %2218
  %v2221 = vmul.f32 %v2214, %v2219
  %2223 = vrot.lane.b32.xlu0 %v2221, 32
  %v2224 = vpop.permute.xlu0 %2223
  %v2226 = vadd.f32 %v2216, %v2224
  %v2227 = vtanh.pop %v2226
  %2229 = vrot.lane.b32.xlu0 %v2227, 64
  %v2230 = vpop.permute.xlu0 %2229
  %v2232 = vmul.f32 %v2214, %v2230
  %2234 = vrot.lane.b32.xlu0 %v2232, 32
  %v2235 = vpop.permute.xlu0 %2234
  %v2236 = vsel %vm206, %v2235, 0
  %2238 = vmatprep.subr.mxu0 0.0
  %2239 = vmatpush1.msra.mxu0 %v35
  %2240 = vmatprep.subr.mxu0 0.0
  %2241 = vmatpush1.msra.mxu0 %v36
  %2242 = vmatprep.subr.mxu0 0.0
  %2243 = vmatpush1.msra.mxu0 %v37
  %2244 = vmatprep.subr.mxu0 0.0
  %2245 = vmatpush1.msra.mxu0 %v38
  %2246 = vmatprep.subr.mxu0 0.0
  %2247 = vmatpush1.msra.mxu0 0.0
  %2248 = vmatprep.subr.mxu0 0.0
  %2249 = vmatpush1.msra.mxu0 0.0
  %2250 = vmatprep.subr.mxu0 0.0
  %2251 = vmatpush1.msra.mxu0 0.0
  %2252 = vmatprep.subr.mxu0 0.0
  %2253 = vmatpush1.msra.mxu0 0.0
  %2254 = vmatprep.subr.mxu0 0.0
  %2255 = vmatpush1.msra.mxu0 0.0
  %2256 = vmatprep.subr.mxu0 0.0
  %2257 = vmatpush1.msra.mxu0 0.0
  %2258 = vmatprep.subr.mxu0 0.0
  %2259 = vmatpush1.msra.mxu0 0.0
  %2260 = vmatprep.subr.mxu0 0.0
  %2261 = vmatpush1.msra.mxu0 0.0
  %2262 = vmatprep.subr.mxu0 0.0
  %2263 = vmatpush1.msra.mxu0 0.0
  %2264 = vmatprep.subr.mxu0 0.0
  %2265 = vmatpush1.msra.mxu0 0.0
  %2266 = vmatprep.subr.mxu0 0.0
  %2267 = vmatpush1.msra.mxu0 0.0
  %2268 = vmatprep.subr.mxu0 0.0
  %2269 = vmatpush1.msra.mxu0 0.0
  %2270 = vmatprep.subr.mxu0 0.0
  %2271 = vmatpush1.msra.mxu0 0.0
  %2272 = vmatprep.subr.mxu0 0.0
  %2273 = vmatpush1.msra.mxu0 0.0
  %2274 = vmatprep.subr.mxu0 0.0
  %2275 = vmatpush1.msra.mxu0 0.0
  %2276 = vmatprep.subr.mxu0 0.0
  %2277 = vmatpush1.msra.mxu0 0.0
  %2278 = vmatprep.subr.mxu0 0.0
  %2279 = vmatpush1.msra.mxu0 0.0
  %2280 = vmatprep.subr.mxu0 0.0
  %2281 = vmatpush1.msra.mxu0 0.0
  %2282 = vmatprep.subr.mxu0 0.0
  %2283 = vmatpush1.msra.mxu0 0.0
  %2284 = vmatprep.subr.mxu0 0.0
  %2285 = vmatpush1.msra.mxu0 0.0
  %2286 = vmatprep.subr.mxu0 0.0
  %2287 = vmatpush1.msra.mxu0 0.0
  %2288 = vmatprep.subr.mxu0 0.0
  %2289 = vmatpush1.msra.mxu0 0.0
  %2290 = vmatprep.subr.mxu0 0.0
  %2291 = vmatpush1.msra.mxu0 0.0
  %2292 = vmatprep.subr.mxu0 0.0
  %2293 = vmatpush1.msra.mxu0 0.0
  %2294 = vmatprep.subr.mxu0 0.0
  %2295 = vmatpush1.msra.mxu0 0.0
  %2296 = vmatprep.subr.mxu0 0.0
  %2297 = vmatpush1.msra.mxu0 0.0
  %2298 = vmatprep.subr.mxu0 0.0
  %2299 = vmatpush1.msra.mxu0 0.0
  %2300 = vmatprep.subr.mxu0 0.0
  %2301 = vmatpush1.msra.mxu0 0.0
  %2302 = vmatprep.mubr.f32.mxu0 0.0
  %2303 = vmatmul.mubr.f32.gmra.mrb[0].mxu0 %v2236
  %v2304 = vpop.f32.mrb[0].mxu0
  %v2305 = vadd.f32 %v309, %v2304
  %v2306 = vpop.f32.mrb[0].mxu0
  %2307 = vdwg.mxu0
  %v2308 = vsel %vm206, %v2132, 0
  %2310 = vmatprep.subr.mxu0 0.0
  %2311 = vmatpush1.msra.mxu0 %v43
  %2312 = vmatprep.subr.mxu0 0.0
  %2313 = vmatpush1.msra.mxu0 %v44
  %2314 = vmatprep.subr.mxu0 0.0
  %2315 = vmatpush1.msra.mxu0 %v45
  %2316 = vmatprep.subr.mxu0 0.0
  %2317 = vmatpush1.msra.mxu0 %v46
  %2318 = vmatprep.subr.mxu0 0.0
  %2319 = vmatpush1.msra.mxu0 0.0
  %2320 = vmatprep.subr.mxu0 0.0
  %2321 = vmatpush1.msra.mxu0 0.0
  %2322 = vmatprep.subr.mxu0 0.0
  %2323 = vmatpush1.msra.mxu0 0.0
  %2324 = vmatprep.subr.mxu0 0.0
  %2325 = vmatpush1.msra.mxu0 0.0
  %2326 = vmatprep.subr.mxu0 0.0
  %2327 = vmatpush1.msra.mxu0 0.0
  %2328 = vmatprep.subr.mxu0 0.0
  %2329 = vmatpush1.msra.mxu0 0.0
  %2330 = vmatprep.subr.mxu0 0.0
  %2331 = vmatpush1.msra.mxu0 0.0
  %2332 = vmatprep.subr.mxu0 0.0
  %2333 = vmatpush1.msra.mxu0 0.0
  %2334 = vmatprep.subr.mxu0 0.0
  %2335 = vmatpush1.msra.mxu0 0.0
  %2336 = vmatprep.subr.mxu0 0.0
  %2337 = vmatpush1.msra.mxu0 0.0
  %2338 = vmatprep.subr.mxu0 0.0
  %2339 = vmatpush1.msra.mxu0 0.0
  %2340 = vmatprep.subr.mxu0 0.0
  %2341 = vmatpush1.msra.mxu0 0.0
  %2342 = vmatprep.subr.mxu0 0.0
  %2343 = vmatpush1.msra.mxu0 0.0
  %2344 = vmatprep.subr.mxu0 0.0
  %2345 = vmatpush1.msra.mxu0 0.0
  %2346 = vmatprep.subr.mxu0 0.0
  %2347 = vmatpush1.msra.mxu0 0.0
  %2348 = vmatprep.subr.mxu0 0.0
  %2349 = vmatpush1.msra.mxu0 0.0
  %2350 = vmatprep.subr.mxu0 0.0
  %2351 = vmatpush1.msra.mxu0 0.0
  %2352 = vmatprep.subr.mxu0 0.0
  %2353 = vmatpush1.msra.mxu0 0.0
  %2354 = vmatprep.subr.mxu0 0.0
  %2355 = vmatpush1.msra.mxu0 0.0
  %2356 = vmatprep.subr.mxu0 0.0
  %2357 = vmatpush1.msra.mxu0 0.0
  %2358 = vmatprep.subr.mxu0 0.0
  %2359 = vmatpush1.msra.mxu0 0.0
  %2360 = vmatprep.subr.mxu0 0.0
  %2361 = vmatpush1.msra.mxu0 0.0
  %2362 = vmatprep.subr.mxu0 0.0
  %2363 = vmatpush1.msra.mxu0 0.0
  %2364 = vmatprep.subr.mxu0 0.0
  %2365 = vmatpush1.msra.mxu0 0.0
  %2366 = vmatprep.subr.mxu0 0.0
  %2367 = vmatpush1.msra.mxu0 0.0
  %2368 = vmatprep.subr.mxu0 0.0
  %2369 = vmatpush1.msra.mxu0 0.0
  %2370 = vmatprep.subr.mxu0 0.0
  %2371 = vmatpush1.msra.mxu0 0.0
  %2372 = vmatprep.subr.mxu0 0.0
  %2373 = vmatpush1.msra.mxu0 0.0
  %2374 = vmatprep.mubr.f32.mxu0 0.0
  %2375 = vmatmul.mubr.f32.gmra.mrb[0].mxu0 %v2308
  %v2376 = vpop.f32.mrb[0].mxu0
  %v2377 = vadd.f32 0.0, %v2376
  %v2378 = vpop.f32.mrb[0].mxu0
  %2379 = vdwg.mxu0
  %v2380 = vadd.f32 %v2305, %v2377
  %v2381 = vxor.u32 %v2380, 2147483648
  %v2382 = vmul.f32 %v2381, 1.442695
  %v2383 = vpow.pop %v2382
  %v2384 = vadd.f32 %v2383, 1.0
  %v2385 = vrcp.pop %v2384
  %v2386 = vmul.f32 1.0, %v2385
  %v2387 = vtanh.pop %v2380
  %v2388 = vmul.f32 %v2386, %v2123
  %2390 = vrot.lane.b32.xlu0 %v2387, 64
  %v2391 = vpop.permute.xlu0 %2390
  %v2393 = vmul.f32 %v2386, %v2391
  %2395 = vrot.lane.b32.xlu0 %v2393, 32
  %v2396 = vpop.permute.xlu0 %2395
  %v2398 = vadd.f32 %v2388, %v2396
  %v2399 = vtanh.pop %v2398
  %2401 = vrot.lane.b32.xlu0 %v2399, 64
  %v2402 = vpop.permute.xlu0 %2401
  %v2404 = vmul.f32 %v2386, %v2402
  %2406 = vrot.lane.b32.xlu0 %v2404, 32
  %v2407 = vpop.permute.xlu0 %2406
  %2409 = vst.msk [vmem:[#allocation3 + $0x38] sm:$0xff] %vm206, %v2407
  %v2410 = vld [vmem:[#allocation3] sm:$0xff]
  %v2411 = vld [vmem:[#allocation3 + $0x8] sm:$0xff]
  %v2412 = vld [vmem:[#allocation3 + $0x10] sm:$0xff]
  %v2413 = vld [vmem:[#allocation3 + $0x18] sm:$0xff]
  %v2414 = vld [vmem:[#allocation3 + $0x20] sm:$0xff]
  %v2415 = vld [vmem:[#allocation3 + $0x28] sm:$0xff]
  %v2416 = vld [vmem:[#allocation3 + $0x30] sm:$0xff]
  %v2417 = vld [vmem:[#allocation3 + $0x38] sm:$0xff]
  %v2418 = vld [vmem:[%s7] sm:$0xff]
  %v2419 = vld [vmem:[%s7 + $0x8] sm:$0xff]
  %v2420 = vld [vmem:[%s7 + $0x10] sm:$0xff]
  %v2421 = vld [vmem:[%s7 + $0x18] sm:$0xff]
  %v2422 = vld [vmem:[#allocation4] sm:$0x1]
  %v2424 = vlaneseq
  %v2425 = vshrl.u32 %v2424, 7
  %v2426 = vsub.s32 0, %v2425
  %v2427 = vrot.slane %v2422, %v2426
  %v2430 = vsel %vm206, %v2410, 0
  %v2433 = vsel %vm206, %v2411, 0
  %v2436 = vsel %vm206, %v2412, 0
  %v2439 = vsel %vm206, %v2413, 0
  %v2442 = vsel %vm206, %v2414, 0
  %v2445 = vsel %vm206, %v2415, 0
  %v2448 = vsel %vm206, %v2416, 0
  %v2451 = vsel %vm206, %v2417, 0
  %2453 = vmatprep.subr.mxu0 0.0
  %2454 = vmatpush1.msra.mxu0 %v2418
  %2455 = vmatprep.subr.mxu0 0.0
  %2456 = vmatpush1.msra.mxu0 %v2419
  %2457 = vmatprep.subr.mxu0 0.0
  %2458 = vmatpush1.msra.mxu0 %v2420
  %2459 = vmatprep.subr.mxu0 0.0
  %2460 = vmatpush1.msra.mxu0 %v2421
  %2461 = vmatprep.subr.mxu0 0.0
  %2462 = vmatpush1.msra.mxu0 0.0
  %2463 = vmatprep.subr.mxu0 0.0
  %2464 = vmatpush1.msra.mxu0 0.0
  %2465 = vmatprep.subr.mxu0 0.0
  %2466 = vmatpush1.msra.mxu0 0.0
  %2467 = vmatprep.subr.mxu0 0.0
  %2468 = vmatpush1.msra.mxu0 0.0
  %2469 = vmatprep.subr.mxu0 0.0
  %2470 = vmatpush1.msra.mxu0 0.0
  %2471 = vmatprep.subr.mxu0 0.0
  %2472 = vmatpush1.msra.mxu0 0.0
  %2473 = vmatprep.subr.mxu0 0.0
  %2474 = vmatpush1.msra.mxu0 0.0
  %2475 = vmatprep.subr.mxu0 0.0
  %2476 = vmatpush1.msra.mxu0 0.0
  %2477 = vmatprep.subr.mxu0 0.0
  %2478 = vmatpush1.msra.mxu0 0.0
  %2479 = vmatprep.subr.mxu0 0.0
  %2480 = vmatpush1.msra.mxu0 0.0
  %2481 = vmatprep.subr.mxu0 0.0
  %2482 = vmatpush1.msra.mxu0 0.0
  %2483 = vmatprep.subr.mxu0 0.0
  %2484 = vmatpush1.msra.mxu0 0.0
  %2485 = vmatprep.subr.mxu0 0.0
  %2486 = vmatpush1.msra.mxu0 0.0
  %2487 = vmatprep.subr.mxu0 0.0
  %2488 = vmatpush1.msra.mxu0 0.0
  %2489 = vmatprep.subr.mxu0 0.0
  %2490 = vmatpush1.msra.mxu0 0.0
  %2491 = vmatprep.subr.mxu0 0.0
  %2492 = vmatpush1.msra.mxu0 0.0
  %2493 = vmatprep.subr.mxu0 0.0
  %2494 = vmatpush1.msra.mxu0 0.0
  %2495 = vmatprep.subr.mxu0 0.0
  %2496 = vmatpush1.msra.mxu0 0.0
  %2497 = vmatprep.subr.mxu0 0.0
  %2498 = vmatpush1.msra.mxu0 0.0
  %2499 = vmatprep.subr.mxu0 0.0
  %2500 = vmatpush1.msra.mxu0 0.0
  %2501 = vmatprep.subr.mxu0 0.0
  %2502 = vmatpush1.msra.mxu0 0.0
  %2503 = vmatprep.subr.mxu0 0.0
  %2504 = vmatpush1.msra.mxu0 0.0
  %2505 = vmatprep.subr.mxu0 0.0
  %2506 = vmatpush1.msra.mxu0 0.0
  %2507 = vmatprep.subr.mxu0 0.0
  %2508 = vmatpush1.msra.mxu0 0.0
  %2509 = vmatprep.subr.mxu0 0.0
  %2510 = vmatpush1.msra.mxu0 0.0
  %2511 = vmatprep.subr.mxu0 0.0
  %2512 = vmatpush1.msra.mxu0 0.0
  %2513 = vmatprep.subr.mxu0 0.0
  %2514 = vmatpush1.msra.mxu0 0.0
  %2515 = vmatprep.subr.mxu0 0.0
  %2516 = vmatpush1.msra.mxu0 0.0
  %2517 = vmatprep.mubr.f32.mxu0 0.0
  %2518 = vmatmul.mubr.f32.gmra.mrb[0].mxu0 %v2430
  %v2519 = vpop.f32.mrb[0].mxu0
  %v2520 = vadd.f32 %v2427, %v2519
  %v2521 = vpop.f32.mrb[0].mxu0
  %2522 = vmatprep.mubr.f32.mxu0 0.0
  %2523 = vmatmul.mubr.f32.gmra.mrb[0].mxu0 %v2433
  %v2524 = vpop.f32.mrb[0].mxu0
  %v2525 = vadd.f32 %v2427, %v2524
  %v2526 = vpop.f32.mrb[0].mxu0
  %2527 = vmatprep.mubr.f32.mxu0 0.0
  %2528 = vmatmul.mubr.f32.gmra.mrb[0].mxu0 %v2436
  %v2529 = vpop.f32.mrb[0].mxu0
  %v2530 = vadd.f32 %v2427, %v2529
  %v2531 = vpop.f32.mrb[0].mxu0
  %2532 = vmatprep.mubr.f32.mxu0 0.0
  %2533 = vmatmul.mubr.f32.gmra.mrb[0].mxu0 %v2439
  %v2534 = vpop.f32.mrb[0].mxu0
  %v2535 = vadd.f32 %v2427, %v2534
  %v2536 = vpop.f32.mrb[0].mxu0
  %2537 = vmatprep.mubr.f32.mxu0 0.0
  %2538 = vmatmul.mubr.f32.gmra.mrb[0].mxu0 %v2442
  %v2539 = vpop.f32.mrb[0].mxu0
  %v2540 = vadd.f32 %v2427, %v2539
  %v2541 = vpop.f32.mrb[0].mxu0
  %2542 = vmatprep.mubr.f32.mxu0 0.0
  %2543 = vmatmul.mubr.f32.gmra.mrb[0].mxu0 %v2445
  %v2544 = vpop.f32.mrb[0].mxu0
  %v2545 = vadd.f32 %v2427, %v2544
  %v2546 = vpop.f32.mrb[0].mxu0
  %2547 = vmatprep.mubr.f32.mxu0 0.0
  %2548 = vmatmul.mubr.f32.gmra.mrb[0].mxu0 %v2448
  %v2549 = vpop.f32.mrb[0].mxu0
  %v2550 = vadd.f32 %v2427, %v2549
  %v2551 = vpop.f32.mrb[0].mxu0
  %2552 = vmatprep.mubr.f32.mxu0 0.0
  %2553 = vmatmul.mubr.f32.gmra.mrb[0].mxu0 %v2451
  %v2554 = vpop.f32.mrb[0].mxu0
  %v2555 = vadd.f32 %v2427, %v2554
  %v2556 = vpop.f32.mrb[0].mxu0
  %2557 = vdwg.mxu0
  %vm2558 = vcmask 7168
  %2559 = vst.msk [vmem:[%s9] sm:$0xff] %vm2558, %v2520
  %2560 = vst.msk [vmem:[%s9 + $0x8] sm:$0xff] %vm2558, %v2525
  %2561 = vst.msk [vmem:[%s9 + $0x10] sm:$0xff] %vm2558, %v2530
  %2562 = vst.msk [vmem:[%s9 + $0x18] sm:$0xff] %vm2558, %v2535
  %2563 = vst.msk [vmem:[%s9 + $0x20] sm:$0xff] %vm2558, %v2540
  %2564 = vst.msk [vmem:[%s9 + $0x28] sm:$0xff] %vm2558, %v2545
  %2565 = vst.msk [vmem:[%s9 + $0x30] sm:$0xff] %vm2558, %v2550
  %2566 = vst.msk [vmem:[%s9 + $0x38] sm:$0xff] %vm2558, %v2555
  // Predicated region
  $region38: #{lstm_model_forward.1} parent=0 // pred_check
    _
  $region39: #{lstm_model_forward.1} parent=0 // pred_check_branch
    %2568 = sbr.rel (0) target = $region41
  $region40: #{lstm_model_forward.1} parent=0 // pred_region
    _
  $region41: #{lstm_model_forward.1} parent=0 // pred_fallthru
    _
  // Predicated region
  $region42: #{lstm_model_forward.1} parent=0 // pred_check
    _
  $region43: #{lstm_model_forward.1} parent=0 // pred_check_branch
    %2570 = sbr.rel (0) target = $region45
  $region44: #{lstm_model_forward.1} parent=0 // pred_region
    _
  $region45: #{lstm_model_forward.1} parent=0 // pred_fallthru
    _

</llo_original>
